<compile_context>
chip_gen: v7x
topology: tpu7x:2x2x1
jax: 0.10.0
libtpu: 0.0.40
codegen_flags: <defaults>
</compile_context>

<pallas_src>
import functools

import numpy as np
import jax
import jax.numpy as jnp
from jax import lax
from jax.experimental import pallas as pl
from jax.experimental.pallas import tpu as pltpu


# MXU input dtype for the conv dots (f32 accumulation via preferred_element_type).
# bf16 is native on v6e/v7x MXUs (~3x f32 matmul throughput) and halves the VMEM
# footprint of the patch matrices.
_MATMUL_DTYPE = jnp.bfloat16


def _round_up(v, m):
    return ((v + m - 1) // m) * m


# ----------------------------------------------------------------------------
# Host-side constant helpers (built at trace time; tiny, folded into the jit)
# ----------------------------------------------------------------------------
def _make_tap_masks(H, W):
    """(9, H*W) f32 validity masks for the 3x3 SAME-padding taps (lane-dense 2-D)."""
    P = H * W
    row = np.arange(P) // W
    col = np.arange(P) % W
    masks = np.zeros((9, P), np.float32)
    t = 0
    for dy in range(3):
        for dx in range(3):
            di, dj = dy - 1, dx - 1
            ok = (row + di >= 0) & (row + di < H) & (col + dj >= 0) & (col + dj < W)
            masks[t] = ok.astype(np.float32)
            t += 1
    return jnp.asarray(masks)


def _make_pool_select(H, W):
    """(H*W, (H//2)*(W//2)) 0/1 matrix gathering the (even-row, even-col) positions."""
    P = H * W
    Ho, Wo = H // 2, W // 2
    Po = Ho * Wo
    sel = np.zeros((P, Po), np.float32)
    q = np.arange(Po)
    src = 2 * (q // Wo) * W + 2 * (q % Wo)
    sel[src, q] = 1.0
    return jnp.asarray(sel)


# ----------------------------------------------------------------------------
# In-kernel building blocks
# ----------------------------------------------------------------------------
def _conv_in_lrelu(x, w_mat, mask_ref, W):
    """x: (Cin, P) f32 row-major over (H, W); w_mat: (Cout, 9*Cin) in _MATMUL_DTYPE with
    column order (dy, dx, cin).  Returns LeakyReLU(InstanceNorm(conv3x3_SAME(x))) f32."""
    P = x.shape[1]
    taps = []
    t = 0
    for dy in range(3):
        for dx in range(3):
            off = (dy - 1) * W + (dx - 1)
            if off == 0:
                taps.append(x)                      # centre tap: always valid, no mask mul
            else:
                # Tap value at flat position p is x[:, p + off] with zero SAME-padding;
                # jnp.roll lowers to the same XLU lane rotate as pltpu.roll.
                shifted = jnp.roll(x, -off, axis=1)
                taps.append(shifted * mask_ref[pl.ds(t, 1)])
            t += 1
    patches = jnp.concatenate(taps, axis=0).astype(w_mat.dtype)        # (9*Cin, P), VMEM
    y = jnp.dot(w_mat, patches, preferred_element_type=jnp.float32)    # (Cout, P) f32
    # InstanceNorm2d(affine=False, eps=1e-5), single pass: var = E[y^2] - mean^2.
    # (No bias add: a per-channel bias is cancelled exactly by the mean subtraction.)
    inv_p = 1.0 / P
    mean = jnp.sum(y, axis=1, keepdims=True) * inv_p
    var = jnp.sum(y * y, axis=1, keepdims=True) * inv_p - mean * mean
    y = (y - mean) * lax.rsqrt(jnp.maximum(var, 0.0) + 1e-5)
    return jnp.maximum(y, 0.01 * y)                 # LeakyReLU(0.01)


def _maxpool_2x2(y, sel, W):
    """2x2 / stride-2 max pool of y (C, H*W) -> (C, H*W/4).  Wrapped lanes from the rolls
    are never selected: only even-row/even-col positions survive the 0/1 selection."""
    hmax = jnp.maximum(y, jnp.roll(y, -1, axis=1))
    vmax = jnp.maximum(hmax, jnp.roll(hmax, -W, axis=1))
    # TODO(synk): the O(P^2/4) selection matmul is fine here (P <= 256) but should become
    # a strided-store compaction when scaling resolution (v7x 64 MiB VMEM hazard).
    return jnp.dot(vmax, sel, preferred_element_type=jnp.float32)


def _fused_encoder_kernel(*refs, meta, num_levels):
    """One grid step = one batch sample through the whole encoder.

    refs = [x] + [w1, w2, mask (+ sel if pooled)] per conv block
               + [enc_0 .. enc_{levels-1}, final_out]
    meta = ((W, pool), ...) per conv block (level blocks, then the optional center).
    """
    idx = 1
    blocks = []
    for (_, pool) in meta:
        w1_ref, w2_ref, mask_ref = refs[idx], refs[idx + 1], refs[idx + 2]
        idx += 3
        sel_ref = None
        if pool:
            sel_ref = refs[idx]
            idx += 1
        blocks.append((w1_ref, w2_ref, mask_ref, sel_ref))
    out_refs = refs[idx:]
    enc_refs, final_ref = out_refs[:num_levels], out_refs[num_levels]

    act = refs[0][0]                                # (Cin_pad, P0) f32, stays in VMEM
    for bi, ((Wl, pool), (w1_ref, w2_ref, mask_ref, sel_ref)) in enumerate(zip(meta, blocks)):
        y = _conv_in_lrelu(act, w1_ref[...], mask_ref, Wl)
        y = _conv_in_lrelu(y, w2_ref[...], mask_ref, Wl)
        if bi < num_levels:
            enc_refs[bi][0] = y.astype(enc_refs[bi].dtype)
        act = _maxpool_2x2(y, sel_ref[...], Wl) if pool else y
    final_ref[0] = act.astype(final_ref.dtype)


# ----------------------------------------------------------------------------
# Wrapper: the whole UNetEncoder forward as a single pallas_call
# ----------------------------------------------------------------------------
def unet_encoder_forward(x_nchw, params):
    """Matches UNetEncoder.forward: returns (encoder_outputs, outputs), all NCHW."""
    n, cin, h, w = x_nchw.shape
    blocks = params["blocks"]
    center = params["center"]
    levels = len(blocks)

    # Pad input channels to a multiple of 8 so every 3x3 tap chunk starts on an
    # 8-sublane tile boundary inside the kernel (no relayout copies for Cin=4).
    cin_pad = _round_up(cin, 8)
    x = x_nchw.reshape(n, cin, h * w).astype(jnp.float32)    # free flatten, no transpose
    if cin_pad != cin:
        x = jnp.pad(x, ((0, 0), (0, cin_pad - cin), (0, 0)))

    def w_to_mat(w_oihw, cin_target):
        cout, ci = int(w_oihw.shape[0]), int(w_oihw.shape[1])
        if cin_target != ci:
            w_oihw = jnp.pad(w_oihw, ((0, 0), (0, cin_target - ci), (0, 0), (0, 0)))
        # (O, I, 3, 3) -> (O, 9*I) with column order (dy, dx, cin), matching the kernel's
        # tap concatenation order.
        return (jnp.transpose(w_oihw, (0, 2, 3, 1))
                .reshape(cout, 9 * cin_target).astype(_MATMUL_DTYPE))

    inputs = [x]
    in_specs = [pl.BlockSpec((1, cin_pad, h * w), lambda i: (i, 0, 0))]
    out_shape, out_specs, meta = [], [], []

    all_blocks = [(b, True) for b in blocks]
    if center is not None:
        all_blocks.append((center, False))

    H, W = h, w
    cur_cin = cin_pad
    for bi, (blk, pool) in enumerate(all_blocks):
        (w1, _b1), (w2, _b2) = blk
        cout = int(w1.shape[0])
        P = H * W
        inputs += [w_to_mat(w1, cur_cin), w_to_mat(w2, cout), _make_tap_masks(H, W)]
        in_specs += [pl.BlockSpec((cout, 9 * cur_cin), lambda i: (0, 0)),
                     pl.BlockSpec((cout, 9 * cout), lambda i: (0, 0)),
                     pl.BlockSpec((9, P), lambda i: (0, 0))]
        if pool:
            # TODO(synk): odd H/W max-pool (PyTorch floor semantics) is not handled here.
            assert H % 2 == 0 and W % 2 == 0, "MaxPool2d(2) path assumes even H, W"
            inputs.append(_make_pool_select(H, W))
            in_specs.append(pl.BlockSpec((P, P // 4), lambda i: (0, 0)))
        meta.append((W, pool))
        if bi < levels:
            # TODO(synk): deep-level outputs (P < 128 lanes) hit masked stores; a
            # batch-folded lane-dense output layout would remove them (minor at 16x16).
            out_shape.append(jax.ShapeDtypeStruct((n, cout, P), jnp.float32))
            out_specs.append(pl.BlockSpec((1, cout, P), lambda i: (i, 0, 0)))
        if pool:
            H, W = H // 2, W // 2
        cur_cin = cout

    # Final output: the center-block output if present, else the last pooled tensor.
    out_shape.append(jax.ShapeDtypeStruct((n, cur_cin, H * W), jnp.float32))
    out_specs.append(pl.BlockSpec((1, cur_cin, H * W), lambda i: (i, 0, 0)))

    kernel = functools.partial(_fused_encoder_kernel, meta=tuple(meta), num_levels=levels)
    # TODO(synk): for batch==1 on v7x add a second "parallel" grid axis (e.g. Cout split)
    # so both TensorCores are fed; with batch>=2 the batch axis shards cleanly.
    # TODO(synk): at real resolutions, tile P with a 1-pixel halo, switch to an
    # accumulator-based InstanceNorm, and set vmem_limit_bytes explicitly for v7x.
    results = pl.pallas_call(
        kernel,
        out_shape=tuple(out_shape),
        grid=(n,),
        in_specs=in_specs,
        out_specs=tuple(out_specs),
        compiler_params=pltpu.CompilerParams(dimension_semantics=("parallel",)),
    )(*inputs)

    encoder_outputs = []
    Hc, Wc = h, w
    for bi in range(levels):
        e = results[bi]
        encoder_outputs.append(e.reshape(n, e.shape[1], Hc, Wc))
        Hc, Wc = Hc // 2, Wc // 2
    final = results[levels]
    return encoder_outputs, final.reshape(n, final.shape[1], Hc, Wc)


# ----------------------------------------------------------------------------
# UNetEncoder parameters
# ----------------------------------------------------------------------------
def init_unet_encoder_params(key, in_channels=4, feature_maps=8, levels=3,
                             use_last_block=True):
    """Deterministic synthetic parameters mirroring the PyTorch module (OIHW weights,
    per-channel bias).  The bias is kept for fidelity but is mathematically cancelled
    by InstanceNorm2d's mean subtraction, so the Pallas kernel never loads it."""
    def conv_params(k, cin, cout):
        k1, k2 = jax.random.split(k)
        w = jax.random.normal(k1, (cout, cin, 3, 3), jnp.float32) / float(9 * cin) ** 0.5
        b = 0.01 * jax.random.normal(k2, (cout,), jnp.float32)
        return w, b

    keys = jax.random.split(key, 2 * levels + 2)
    blocks = []
    in_f = in_channels
    ki = 0
    for i in range(levels):
        out_f = (2 ** i) * feature_maps
        c1 = conv_params(keys[ki], in_f, out_f); ki += 1
        c2 = conv_params(keys[ki], out_f, out_f); ki += 1
        blocks.append((c1, c2))
        in_f = out_f
    center = None
    if use_last_block:
        cin = (2 ** (levels - 1)) * feature_maps
        cout = (2 ** levels) * feature_maps
        c1 = conv_params(keys[ki], cin, cout); ki += 1
        c2 = conv_params(keys[ki], cout, cout); ki += 1
        center = (c1, c2)
    return {"blocks": blocks, "center": center}


# ----------------------------------------------------------------------------
# Pure-XLA reference (bias included; it cancels) for in-script numerical validation.
# With matmul_dtype=bf16 the conv inputs are rounded like the kernel's MXU inputs.
# ----------------------------------------------------------------------------
def _reference_forward(x_nchw, params, matmul_dtype=jnp.float32):
    def q(a):
        return a.astype(matmul_dtype).astype(jnp.float32)

    def conv_norm_relu(x, w, b):
        y = lax.conv_general_dilated(q(x), q(w), window_strides=(1, 1), padding="SAME",
                                     dimension_numbers=("NCHW", "OIHW", "NCHW"))
        y = y + b[None, :, None, None]
        mean = jnp.mean(y, axis=(2, 3), keepdims=True)
        var = jnp.mean(jnp.square(y - mean), axis=(2, 3), keepdims=True)
        y = (y - mean) * lax.rsqrt(var + 1e-5)
        return jnp.where(y >= 0, y, 0.01 * y)

    def max_pool(t):
        return jnp.maximum(
            jnp.maximum(t[:, :, 0::2, 0::2], t[:, :, 0::2, 1::2]),
            jnp.maximum(t[:, :, 1::2, 0::2], t[:, :, 1::2, 1::2]))

    enc_outs, out = [], x_nchw
    for (w1, b1), (w2, b2) in params["blocks"]:
        out = conv_norm_relu(conv_norm_relu(out, w1, b1), w2, b2)
        enc_outs.append(out)
        out = max_pool(out)
    if params["center"] is not None:
        (w1, b1), (w2, b2) = params["center"]
        out = conv_norm_relu(conv_norm_relu(out, w1, b1), w2, b2)
    return enc_outs, out


# ----------------------------------------------------------------------------
if __name__ == "__main__":
    key = jax.random.PRNGKey(0)
    k_x, k_p = jax.random.split(key)

    # Small shapes consistent with the module: batch=2, in_channels=4, 16x16 spatial,
    # feature_maps=8, levels=3, use_last_block=True.
    BATCH, IN_CH, H, W = 2, 4, 16, 16
    FEATURE_MAPS, LEVELS = 8, 3

    x = jax.random.normal(k_x, (BATCH, IN_CH, H, W), jnp.float32)   # NCHW input
    params = init_unet_encoder_params(k_p, in_channels=IN_CH,
                                      feature_maps=FEATURE_MAPS,
                                      levels=LEVELS, use_last_block=True)

    fwd = jax.jit(unet_encoder_forward)
    encoder_outputs, outputs = fwd(x, params)
    jax.block_until_ready(outputs)
    for e in encoder_outputs:
        jax.block_until_ready(e)

    # Shape sanity checks (match the PyTorch module).
    expected_enc = [(BATCH, (2 ** i) * FEATURE_MAPS, H // (2 ** i), W // (2 ** i))
                    for i in range(LEVELS)]
    assert [tuple(e.shape) for e in encoder_outputs] == expected_enc, \
        [tuple(e.shape) for e in encoder_outputs]
    assert tuple(outputs.shape) == (BATCH, (2 ** LEVELS) * FEATURE_MAPS,
                                    H // (2 ** LEVELS), W // (2 ** LEVELS)), outputs.shape

    # Tight check vs a reference that rounds conv inputs to the same MXU dtype (isolates
    # kernel bugs from the intended bf16 input quantization).
    q_enc, q_out = _reference_forward(x, params, matmul_dtype=_MATMUL_DTYPE)
    for got, want in zip(list(encoder_outputs) + [outputs], list(q_enc) + [q_out]):
        assert bool(jnp.allclose(got, want, atol=3e-2, rtol=3e-2)), \
            float(jnp.max(jnp.abs(got - want)))

    # Looser end-to-end check vs the pure-f32 reference (bf16 conv inputs + instance-norm
    # amplification at tiny spatial sizes, e.g. the 2x2 center block, bound the accuracy).
    f_enc, f_out = _reference_forward(x, params, matmul_dtype=jnp.float32)
    for got, want in zip(list(encoder_outputs) + [outputs], list(f_enc) + [f_out]):
        assert bool(jnp.allclose(got, want, atol=0.15, rtol=0.1)), \
            float(jnp.max(jnp.abs(got - want)))

    assert bool(jnp.isfinite(outputs).all())
    assert all(bool(jnp.isfinite(e).all()) for e in encoder_outputs)

    print("KERNEL_OK")
</pallas_src>

<mosaic_0001>
module attributes {stable_mosaic.version = 11 : i64} {
  func.func @_fused_encoder_kernel(%arg0: i32, %arg1: memref<1x8x256xf32, #tpu.memory_space<vmem>>, %arg2: memref<8x72xbf16, #tpu.memory_space<vmem>>, %arg3: memref<8x72xbf16, #tpu.memory_space<vmem>>, %arg4: memref<9x256xf32, #tpu.memory_space<vmem>>, %arg5: memref<256x64xf32, #tpu.memory_space<vmem>>, %arg6: memref<16x72xbf16, #tpu.memory_space<vmem>>, %arg7: memref<16x144xbf16, #tpu.memory_space<vmem>>, %arg8: memref<9x64xf32, #tpu.memory_space<vmem>>, %arg9: memref<64x16xf32, #tpu.memory_space<vmem>>, %arg10: memref<32x144xbf16, #tpu.memory_space<vmem>>, %arg11: memref<32x288xbf16, #tpu.memory_space<vmem>>, %arg12: memref<9x16xf32, #tpu.memory_space<vmem>>, %arg13: memref<16x4xf32, #tpu.memory_space<vmem>>, %arg14: memref<64x288xbf16, #tpu.memory_space<vmem>>, %arg15: memref<64x576xbf16, #tpu.memory_space<vmem>>, %arg16: memref<9x4xf32, #tpu.memory_space<vmem>>, %arg17: memref<1x8x256xf32, #tpu.memory_space<vmem>>, %arg18: memref<1x16x64xf32, #tpu.memory_space<vmem>>, %arg19: memref<1x32x16xf32, #tpu.memory_space<vmem>>, %arg20: memref<1x64x4xf32, #tpu.memory_space<vmem>>) attributes {dimension_semantics = [#tpu.dimension_semantics<parallel>], iteration_bounds = array<i64: 2>, scalar_prefetch = 0 : i64, scratch_operands = 0 : i64, tpu.core_type = #tpu.core_type<tc>, window_params = [{transform_indices = @transform_0, window_bounds = array<i64: 1, 8, 256>}, {pipeline_mode = #tpu.pipeline_mode<synchronous>, transform_indices = @transform_1, window_bounds = array<i64: 8, 72>}, {pipeline_mode = #tpu.pipeline_mode<synchronous>, transform_indices = @transform_2, window_bounds = array<i64: 8, 72>}, {pipeline_mode = #tpu.pipeline_mode<synchronous>, transform_indices = @transform_3, window_bounds = array<i64: 9, 256>}, {pipeline_mode = #tpu.pipeline_mode<synchronous>, transform_indices = @transform_4, window_bounds = array<i64: 256, 64>}, {pipeline_mode = #tpu.pipeline_mode<synchronous>, transform_indices = @transform_5, window_bounds = array<i64: 16, 72>}, {pipeline_mode = #tpu.pipeline_mode<synchronous>, transform_indices = @transform_6, window_bounds = array<i64: 16, 144>}, {pipeline_mode = #tpu.pipeline_mode<synchronous>, transform_indices = @transform_7, window_bounds = array<i64: 9, 64>}, {pipeline_mode = #tpu.pipeline_mode<synchronous>, transform_indices = @transform_8, window_bounds = array<i64: 64, 16>}, {pipeline_mode = #tpu.pipeline_mode<synchronous>, transform_indices = @transform_9, window_bounds = array<i64: 32, 144>}, {pipeline_mode = #tpu.pipeline_mode<synchronous>, transform_indices = @transform_10, window_bounds = array<i64: 32, 288>}, {pipeline_mode = #tpu.pipeline_mode<synchronous>, transform_indices = @transform_11, window_bounds = array<i64: 9, 16>}, {pipeline_mode = #tpu.pipeline_mode<synchronous>, transform_indices = @transform_12, window_bounds = array<i64: 16, 4>}, {pipeline_mode = #tpu.pipeline_mode<synchronous>, transform_indices = @transform_13, window_bounds = array<i64: 64, 288>}, {pipeline_mode = #tpu.pipeline_mode<synchronous>, transform_indices = @transform_14, window_bounds = array<i64: 64, 576>}, {pipeline_mode = #tpu.pipeline_mode<synchronous>, transform_indices = @transform_15, window_bounds = array<i64: 9, 4>}, {transform_indices = @transform_16, window_bounds = array<i64: 1, 8, 256>}, {transform_indices = @transform_17, window_bounds = array<i64: 1, 16, 64>}, {transform_indices = @transform_18, window_bounds = array<i64: 1, 32, 16>}, {transform_indices = @transform_19, window_bounds = array<i64: 1, 64, 4>}]} {
    %c0 = arith.constant 0 : index
    %c0_0 = arith.constant 0 : index
    %c0_1 = arith.constant 0 : index
    %0 = vector.load %arg1[%c0, %c0_0, %c0_1] : memref<1x8x256xf32, #tpu.memory_space<vmem>>, vector<1x8x256xf32>
    %1 = vector.shape_cast %0 : vector<1x8x256xf32> to vector<8x256xf32>
    %c0_2 = arith.constant 0 : index
    %c0_3 = arith.constant 0 : index
    %2 = vector.load %arg2[%c0_2, %c0_3] : memref<8x72xbf16, #tpu.memory_space<vmem>>, vector<8x72xbf16>
    %3 = vector.extract_strided_slice %1 {offsets = [0, 239], sizes = [8, 17], strides = [1, 1]} : vector<8x256xf32> to vector<8x17xf32>
    %4 = vector.extract_strided_slice %1 {offsets = [0, 0], sizes = [8, 239], strides = [1, 1]} : vector<8x256xf32> to vector<8x239xf32>
    %5 = tpu.concatenate %3, %4 in 1 : vector<8x17xf32>, vector<8x239xf32> -> vector<8x256xf32>
    %c0_4 = arith.constant 0 : index
    %c0_5 = arith.constant 0 : index
    %6 = vector.load %arg4[%c0_4, %c0_5] : memref<9x256xf32, #tpu.memory_space<vmem>>, vector<1x256xf32>
    %7 = vector.broadcast %6 : vector<1x256xf32> to vector<8x256xf32>
    %8 = arith.mulf %5, %7 : vector<8x256xf32>
    %9 = vector.extract_strided_slice %1 {offsets = [0, 240], sizes = [8, 16], strides = [1, 1]} : vector<8x256xf32> to vector<8x16xf32>
    %10 = vector.extract_strided_slice %1 {offsets = [0, 0], sizes = [8, 240], strides = [1, 1]} : vector<8x256xf32> to vector<8x240xf32>
    %11 = tpu.concatenate %9, %10 in 1 : vector<8x16xf32>, vector<8x240xf32> -> vector<8x256xf32>
    %c1 = arith.constant 1 : index
    %c0_6 = arith.constant 0 : index
    %12 = vector.load %arg4[%c1, %c0_6] : memref<9x256xf32, #tpu.memory_space<vmem>>, vector<1x256xf32>
    %13 = vector.broadcast %12 : vector<1x256xf32> to vector<8x256xf32>
    %14 = arith.mulf %11, %13 : vector<8x256xf32>
    %15 = vector.extract_strided_slice %1 {offsets = [0, 241], sizes = [8, 15], strides = [1, 1]} : vector<8x256xf32> to vector<8x15xf32>
    %16 = vector.extract_strided_slice %1 {offsets = [0, 0], sizes = [8, 241], strides = [1, 1]} : vector<8x256xf32> to vector<8x241xf32>
    %17 = tpu.concatenate %15, %16 in 1 : vector<8x15xf32>, vector<8x241xf32> -> vector<8x256xf32>
    %c2 = arith.constant 2 : index
    %c0_7 = arith.constant 0 : index
    %18 = vector.load %arg4[%c2, %c0_7] : memref<9x256xf32, #tpu.memory_space<vmem>>, vector<1x256xf32>
    %19 = vector.broadcast %18 : vector<1x256xf32> to vector<8x256xf32>
    %20 = arith.mulf %17, %19 : vector<8x256xf32>
    %21 = vector.extract_strided_slice %1 {offsets = [0, 255], sizes = [8, 1], strides = [1, 1]} : vector<8x256xf32> to vector<8x1xf32>
    %22 = vector.extract_strided_slice %1 {offsets = [0, 0], sizes = [8, 255], strides = [1, 1]} : vector<8x256xf32> to vector<8x255xf32>
    %23 = tpu.concatenate %21, %22 in 1 : vector<8x1xf32>, vector<8x255xf32> -> vector<8x256xf32>
    %c3 = arith.constant 3 : index
    %c0_8 = arith.constant 0 : index
    %24 = vector.load %arg4[%c3, %c0_8] : memref<9x256xf32, #tpu.memory_space<vmem>>, vector<1x256xf32>
    %25 = vector.broadcast %24 : vector<1x256xf32> to vector<8x256xf32>
    %26 = arith.mulf %23, %25 : vector<8x256xf32>
    %27 = vector.extract_strided_slice %1 {offsets = [0, 1], sizes = [8, 255], strides = [1, 1]} : vector<8x256xf32> to vector<8x255xf32>
    %28 = vector.extract_strided_slice %1 {offsets = [0, 0], sizes = [8, 1], strides = [1, 1]} : vector<8x256xf32> to vector<8x1xf32>
    %29 = tpu.concatenate %27, %28 in 1 : vector<8x255xf32>, vector<8x1xf32> -> vector<8x256xf32>
    %c5 = arith.constant 5 : index
    %c0_9 = arith.constant 0 : index
    %30 = vector.load %arg4[%c5, %c0_9] : memref<9x256xf32, #tpu.memory_space<vmem>>, vector<1x256xf32>
    %31 = vector.broadcast %30 : vector<1x256xf32> to vector<8x256xf32>
    %32 = arith.mulf %29, %31 : vector<8x256xf32>
    %33 = vector.extract_strided_slice %1 {offsets = [0, 15], sizes = [8, 241], strides = [1, 1]} : vector<8x256xf32> to vector<8x241xf32>
    %34 = vector.extract_strided_slice %1 {offsets = [0, 0], sizes = [8, 15], strides = [1, 1]} : vector<8x256xf32> to vector<8x15xf32>
    %35 = tpu.concatenate %33, %34 in 1 : vector<8x241xf32>, vector<8x15xf32> -> vector<8x256xf32>
    %c6 = arith.constant 6 : index
    %c0_10 = arith.constant 0 : index
    %36 = vector.load %arg4[%c6, %c0_10] : memref<9x256xf32, #tpu.memory_space<vmem>>, vector<1x256xf32>
    %37 = vector.broadcast %36 : vector<1x256xf32> to vector<8x256xf32>
    %38 = arith.mulf %35, %37 : vector<8x256xf32>
    %39 = vector.extract_strided_slice %1 {offsets = [0, 16], sizes = [8, 240], strides = [1, 1]} : vector<8x256xf32> to vector<8x240xf32>
    %40 = vector.extract_strided_slice %1 {offsets = [0, 0], sizes = [8, 16], strides = [1, 1]} : vector<8x256xf32> to vector<8x16xf32>
    %41 = tpu.concatenate %39, %40 in 1 : vector<8x240xf32>, vector<8x16xf32> -> vector<8x256xf32>
    %c7 = arith.constant 7 : index
    %c0_11 = arith.constant 0 : index
    %42 = vector.load %arg4[%c7, %c0_11] : memref<9x256xf32, #tpu.memory_space<vmem>>, vector<1x256xf32>
    %43 = vector.broadcast %42 : vector<1x256xf32> to vector<8x256xf32>
    %44 = arith.mulf %41, %43 : vector<8x256xf32>
    %45 = vector.extract_strided_slice %1 {offsets = [0, 17], sizes = [8, 239], strides = [1, 1]} : vector<8x256xf32> to vector<8x239xf32>
    %46 = vector.extract_strided_slice %1 {offsets = [0, 0], sizes = [8, 17], strides = [1, 1]} : vector<8x256xf32> to vector<8x17xf32>
    %47 = tpu.concatenate %45, %46 in 1 : vector<8x239xf32>, vector<8x17xf32> -> vector<8x256xf32>
    %c8 = arith.constant 8 : index
    %c0_12 = arith.constant 0 : index
    %48 = vector.load %arg4[%c8, %c0_12] : memref<9x256xf32, #tpu.memory_space<vmem>>, vector<1x256xf32>
    %49 = vector.broadcast %48 : vector<1x256xf32> to vector<8x256xf32>
    %50 = arith.mulf %47, %49 : vector<8x256xf32>
    %51 = tpu.concatenate %8, %14, %20, %26, %1, %32, %38, %44, %50 in 0 : vector<8x256xf32>, vector<8x256xf32>, vector<8x256xf32>, vector<8x256xf32>, vector<8x256xf32>, vector<8x256xf32>, vector<8x256xf32>, vector<8x256xf32>, vector<8x256xf32> -> vector<72x256xf32>
    %52 = arith.truncf %51 : vector<72x256xf32> to vector<72x256xbf16>
    %cst = arith.constant dense<0.000000e+00> : vector<8x256xf32>
    %53 = tpu.matmul %2, %52, %cst {dimension_numbers = #tpu.dot_dimension_numbers<[1], [0], [0], [1], [0, 0, 1, 1], [], []>} : vector<8x72xbf16>, vector<72x256xbf16>, vector<8x256xf32> -> vector<8x256xf32>
    %cst_13 = arith.constant dense<0.000000e+00> : vector<8xf32>
    %54 = vector.multi_reduction <add>, %53, %cst_13 [1] : vector<8x256xf32> to vector<8xf32>
    %55 = vector.shape_cast %54 : vector<8xf32> to vector<8x1xf32>
    %cst_14 = arith.constant 3.906250e-03 : f32
    %56 = vector.broadcast %cst_14 : f32 to vector<8x1xf32>
    %57 = arith.mulf %55, %56 : vector<8x1xf32>
    %58 = arith.mulf %53, %53 : vector<8x256xf32>
    %cst_15 = arith.constant dense<0.000000e+00> : vector<8xf32>
    %59 = vector.multi_reduction <add>, %58, %cst_15 [1] : vector<8x256xf32> to vector<8xf32>
    %60 = vector.shape_cast %59 : vector<8xf32> to vector<8x1xf32>
    %cst_16 = arith.constant 3.906250e-03 : f32
    %61 = vector.broadcast %cst_16 : f32 to vector<8x1xf32>
    %62 = arith.mulf %60, %61 : vector<8x1xf32>
    %63 = arith.mulf %57, %57 : vector<8x1xf32>
    %64 = arith.subf %62, %63 : vector<8x1xf32>
    %65 = vector.broadcast %57 : vector<8x1xf32> to vector<8x256xf32>
    %66 = arith.subf %53, %65 : vector<8x256xf32>
    %cst_17 = arith.constant 0.000000e+00 : f32
    %67 = vector.broadcast %cst_17 : f32 to vector<8x1xf32>
    %68 = arith.maximumf %64, %67 : vector<8x1xf32>
    %cst_18 = arith.constant 9.99999974E-6 : f32
    %69 = vector.broadcast %cst_18 : f32 to vector<8x1xf32>
    %70 = arith.addf %68, %69 : vector<8x1xf32>
    %71 = math.rsqrt %70 : vector<8x1xf32>
    %72 = vector.broadcast %71 : vector<8x1xf32> to vector<8x256xf32>
    %73 = arith.mulf %66, %72 : vector<8x256xf32>
    %cst_19 = arith.constant 0.00999999977 : f32
    %74 = vector.broadcast %cst_19 : f32 to vector<8x256xf32>
    %75 = arith.mulf %74, %73 : vector<8x256xf32>
    %76 = arith.maximumf %73, %75 : vector<8x256xf32>
    %c0_20 = arith.constant 0 : index
    %c0_21 = arith.constant 0 : index
    %77 = vector.load %arg3[%c0_20, %c0_21] : memref<8x72xbf16, #tpu.memory_space<vmem>>, vector<8x72xbf16>
    %78 = vector.extract_strided_slice %76 {offsets = [0, 239], sizes = [8, 17], strides = [1, 1]} : vector<8x256xf32> to vector<8x17xf32>
    %79 = vector.extract_strided_slice %76 {offsets = [0, 0], sizes = [8, 239], strides = [1, 1]} : vector<8x256xf32> to vector<8x239xf32>
    %80 = tpu.concatenate %78, %79 in 1 : vector<8x17xf32>, vector<8x239xf32> -> vector<8x256xf32>
    %c0_22 = arith.constant 0 : index
    %c0_23 = arith.constant 0 : index
    %81 = vector.load %arg4[%c0_22, %c0_23] : memref<9x256xf32, #tpu.memory_space<vmem>>, vector<1x256xf32>
    %82 = vector.broadcast %81 : vector<1x256xf32> to vector<8x256xf32>
    %83 = arith.mulf %80, %82 : vector<8x256xf32>
    %84 = vector.extract_strided_slice %76 {offsets = [0, 240], sizes = [8, 16], strides = [1, 1]} : vector<8x256xf32> to vector<8x16xf32>
    %85 = vector.extract_strided_slice %76 {offsets = [0, 0], sizes = [8, 240], strides = [1, 1]} : vector<8x256xf32> to vector<8x240xf32>
    %86 = tpu.concatenate %84, %85 in 1 : vector<8x16xf32>, vector<8x240xf32> -> vector<8x256xf32>
    %c1_24 = arith.constant 1 : index
    %c0_25 = arith.constant 0 : index
    %87 = vector.load %arg4[%c1_24, %c0_25] : memref<9x256xf32, #tpu.memory_space<vmem>>, vector<1x256xf32>
    %88 = vector.broadcast %87 : vector<1x256xf32> to vector<8x256xf32>
    %89 = arith.mulf %86, %88 : vector<8x256xf32>
    %90 = vector.extract_strided_slice %76 {offsets = [0, 241], sizes = [8, 15], strides = [1, 1]} : vector<8x256xf32> to vector<8x15xf32>
    %91 = vector.extract_strided_slice %76 {offsets = [0, 0], sizes = [8, 241], strides = [1, 1]} : vector<8x256xf32> to vector<8x241xf32>
    %92 = tpu.concatenate %90, %91 in 1 : vector<8x15xf32>, vector<8x241xf32> -> vector<8x256xf32>
    %c2_26 = arith.constant 2 : index
    %c0_27 = arith.constant 0 : index
    %93 = vector.load %arg4[%c2_26, %c0_27] : memref<9x256xf32, #tpu.memory_space<vmem>>, vector<1x256xf32>
    %94 = vector.broadcast %93 : vector<1x256xf32> to vector<8x256xf32>
    %95 = arith.mulf %92, %94 : vector<8x256xf32>
    %96 = vector.extract_strided_slice %76 {offsets = [0, 255], sizes = [8, 1], strides = [1, 1]} : vector<8x256xf32> to vector<8x1xf32>
    %97 = vector.extract_strided_slice %76 {offsets = [0, 0], sizes = [8, 255], strides = [1, 1]} : vector<8x256xf32> to vector<8x255xf32>
    %98 = tpu.concatenate %96, %97 in 1 : vector<8x1xf32>, vector<8x255xf32> -> vector<8x256xf32>
    %c3_28 = arith.constant 3 : index
    %c0_29 = arith.constant 0 : index
    %99 = vector.load %arg4[%c3_28, %c0_29] : memref<9x256xf32, #tpu.memory_space<vmem>>, vector<1x256xf32>
    %100 = vector.broadcast %99 : vector<1x256xf32> to vector<8x256xf32>
    %101 = arith.mulf %98, %100 : vector<8x256xf32>
    %102 = vector.extract_strided_slice %76 {offsets = [0, 1], sizes = [8, 255], strides = [1, 1]} : vector<8x256xf32> to vector<8x255xf32>
    %103 = vector.extract_strided_slice %76 {offsets = [0, 0], sizes = [8, 1], strides = [1, 1]} : vector<8x256xf32> to vector<8x1xf32>
    %104 = tpu.concatenate %102, %103 in 1 : vector<8x255xf32>, vector<8x1xf32> -> vector<8x256xf32>
    %c5_30 = arith.constant 5 : index
    %c0_31 = arith.constant 0 : index
    %105 = vector.load %arg4[%c5_30, %c0_31] : memref<9x256xf32, #tpu.memory_space<vmem>>, vector<1x256xf32>
    %106 = vector.broadcast %105 : vector<1x256xf32> to vector<8x256xf32>
    %107 = arith.mulf %104, %106 : vector<8x256xf32>
    %108 = vector.extract_strided_slice %76 {offsets = [0, 15], sizes = [8, 241], strides = [1, 1]} : vector<8x256xf32> to vector<8x241xf32>
    %109 = vector.extract_strided_slice %76 {offsets = [0, 0], sizes = [8, 15], strides = [1, 1]} : vector<8x256xf32> to vector<8x15xf32>
    %110 = tpu.concatenate %108, %109 in 1 : vector<8x241xf32>, vector<8x15xf32> -> vector<8x256xf32>
    %c6_32 = arith.constant 6 : index
    %c0_33 = arith.constant 0 : index
    %111 = vector.load %arg4[%c6_32, %c0_33] : memref<9x256xf32, #tpu.memory_space<vmem>>, vector<1x256xf32>
    %112 = vector.broadcast %111 : vector<1x256xf32> to vector<8x256xf32>
    %113 = arith.mulf %110, %112 : vector<8x256xf32>
    %114 = vector.extract_strided_slice %76 {offsets = [0, 16], sizes = [8, 240], strides = [1, 1]} : vector<8x256xf32> to vector<8x240xf32>
    %115 = vector.extract_strided_slice %76 {offsets = [0, 0], sizes = [8, 16], strides = [1, 1]} : vector<8x256xf32> to vector<8x16xf32>
    %116 = tpu.concatenate %114, %115 in 1 : vector<8x240xf32>, vector<8x16xf32> -> vector<8x256xf32>
    %c7_34 = arith.constant 7 : index
    %c0_35 = arith.constant 0 : index
    %117 = vector.load %arg4[%c7_34, %c0_35] : memref<9x256xf32, #tpu.memory_space<vmem>>, vector<1x256xf32>
    %118 = vector.broadcast %117 : vector<1x256xf32> to vector<8x256xf32>
    %119 = arith.mulf %116, %118 : vector<8x256xf32>
    %120 = vector.extract_strided_slice %76 {offsets = [0, 17], sizes = [8, 239], strides = [1, 1]} : vector<8x256xf32> to vector<8x239xf32>
    %121 = vector.extract_strided_slice %76 {offsets = [0, 0], sizes = [8, 17], strides = [1, 1]} : vector<8x256xf32> to vector<8x17xf32>
    %122 = tpu.concatenate %120, %121 in 1 : vector<8x239xf32>, vector<8x17xf32> -> vector<8x256xf32>
    %c8_36 = arith.constant 8 : index
    %c0_37 = arith.constant 0 : index
    %123 = vector.load %arg4[%c8_36, %c0_37] : memref<9x256xf32, #tpu.memory_space<vmem>>, vector<1x256xf32>
    %124 = vector.broadcast %123 : vector<1x256xf32> to vector<8x256xf32>
    %125 = arith.mulf %122, %124 : vector<8x256xf32>
    %126 = tpu.concatenate %83, %89, %95, %101, %76, %107, %113, %119, %125 in 0 : vector<8x256xf32>, vector<8x256xf32>, vector<8x256xf32>, vector<8x256xf32>, vector<8x256xf32>, vector<8x256xf32>, vector<8x256xf32>, vector<8x256xf32>, vector<8x256xf32> -> vector<72x256xf32>
    %127 = arith.truncf %126 : vector<72x256xf32> to vector<72x256xbf16>
    %cst_38 = arith.constant dense<0.000000e+00> : vector<8x256xf32>
    %128 = tpu.matmul %77, %127, %cst_38 {dimension_numbers = #tpu.dot_dimension_numbers<[1], [0], [0], [1], [0, 0, 1, 1], [], []>} : vector<8x72xbf16>, vector<72x256xbf16>, vector<8x256xf32> -> vector<8x256xf32>
    %cst_39 = arith.constant dense<0.000000e+00> : vector<8xf32>
    %129 = vector.multi_reduction <add>, %128, %cst_39 [1] : vector<8x256xf32> to vector<8xf32>
    %130 = vector.shape_cast %129 : vector<8xf32> to vector<8x1xf32>
    %cst_40 = arith.constant 3.906250e-03 : f32
    %131 = vector.broadcast %cst_40 : f32 to vector<8x1xf32>
    %132 = arith.mulf %130, %131 : vector<8x1xf32>
    %133 = arith.mulf %128, %128 : vector<8x256xf32>
    %cst_41 = arith.constant dense<0.000000e+00> : vector<8xf32>
    %134 = vector.multi_reduction <add>, %133, %cst_41 [1] : vector<8x256xf32> to vector<8xf32>
    %135 = vector.shape_cast %134 : vector<8xf32> to vector<8x1xf32>
    %cst_42 = arith.constant 3.906250e-03 : f32
    %136 = vector.broadcast %cst_42 : f32 to vector<8x1xf32>
    %137 = arith.mulf %135, %136 : vector<8x1xf32>
    %138 = arith.mulf %132, %132 : vector<8x1xf32>
    %139 = arith.subf %137, %138 : vector<8x1xf32>
    %140 = vector.broadcast %132 : vector<8x1xf32> to vector<8x256xf32>
    %141 = arith.subf %128, %140 : vector<8x256xf32>
    %cst_43 = arith.constant 0.000000e+00 : f32
    %142 = vector.broadcast %cst_43 : f32 to vector<8x1xf32>
    %143 = arith.maximumf %139, %142 : vector<8x1xf32>
    %cst_44 = arith.constant 9.99999974E-6 : f32
    %144 = vector.broadcast %cst_44 : f32 to vector<8x1xf32>
    %145 = arith.addf %143, %144 : vector<8x1xf32>
    %146 = math.rsqrt %145 : vector<8x1xf32>
    %147 = vector.broadcast %146 : vector<8x1xf32> to vector<8x256xf32>
    %148 = arith.mulf %141, %147 : vector<8x256xf32>
    %cst_45 = arith.constant 0.00999999977 : f32
    %149 = vector.broadcast %cst_45 : f32 to vector<8x256xf32>
    %150 = arith.mulf %149, %148 : vector<8x256xf32>
    %151 = arith.maximumf %148, %150 : vector<8x256xf32>
    %c0_46 = arith.constant 0 : index
    %c0_47 = arith.constant 0 : index
    %c0_48 = arith.constant 0 : index
    %152 = vector.load %arg17[%c0_46, %c0_47, %c0_48] : memref<1x8x256xf32, #tpu.memory_space<vmem>>, vector<1x8x256xf32>
    %153 = vector.shape_cast %152 : vector<1x8x256xf32> to vector<8x256xf32>
    %154 = vector.shape_cast %151 : vector<8x256xf32> to vector<1x8x256xf32>
    tpu.vector_store %arg17[%c0_46, %c0_47, %c0_48], %154 {strides = array<i32>} : memref<1x8x256xf32, #tpu.memory_space<vmem>>, vector<1x8x256xf32>,
    %c0_49 = arith.constant 0 : index
    %c0_50 = arith.constant 0 : index
    %155 = vector.load %arg5[%c0_49, %c0_50] : memref<256x64xf32, #tpu.memory_space<vmem>>, vector<256x64xf32>
    %156 = vector.extract_strided_slice %151 {offsets = [0, 1], sizes = [8, 255], strides = [1, 1]} : vector<8x256xf32> to vector<8x255xf32>
    %157 = vector.extract_strided_slice %151 {offsets = [0, 0], sizes = [8, 1], strides = [1, 1]} : vector<8x256xf32> to vector<8x1xf32>
    %158 = tpu.concatenate %156, %157 in 1 : vector<8x255xf32>, vector<8x1xf32> -> vector<8x256xf32>
    %159 = arith.maximumf %151, %158 : vector<8x256xf32>
    %160 = vector.extract_strided_slice %159 {offsets = [0, 16], sizes = [8, 240], strides = [1, 1]} : vector<8x256xf32> to vector<8x240xf32>
    %161 = vector.extract_strided_slice %159 {offsets = [0, 0], sizes = [8, 16], strides = [1, 1]} : vector<8x256xf32> to vector<8x16xf32>
    %162 = tpu.concatenate %160, %161 in 1 : vector<8x240xf32>, vector<8x16xf32> -> vector<8x256xf32>
    %163 = arith.maximumf %159, %162 : vector<8x256xf32>
    %cst_51 = arith.constant dense<0.000000e+00> : vector<8x64xf32>
    %164 = tpu.matmul %163, %155, %cst_51 {dimension_numbers = #tpu.dot_dimension_numbers<[1], [0], [0], [1], [0, 0, 1, 1], [], []>} : vector<8x256xf32>, vector<256x64xf32>, vector<8x64xf32> -> vector<8x64xf32>
    %c0_52 = arith.constant 0 : index
    %c0_53 = arith.constant 0 : index
    %165 = vector.load %arg6[%c0_52, %c0_53] : memref<16x72xbf16, #tpu.memory_space<vmem>>, vector<16x72xbf16>
    %166 = vector.extract_strided_slice %164 {offsets = [0, 55], sizes = [8, 9], strides = [1, 1]} : vector<8x64xf32> to vector<8x9xf32>
    %167 = vector.extract_strided_slice %164 {offsets = [0, 0], sizes = [8, 55], strides = [1, 1]} : vector<8x64xf32> to vector<8x55xf32>
    %168 = tpu.concatenate %166, %167 in 1 : vector<8x9xf32>, vector<8x55xf32> -> vector<8x64xf32>
    %c0_54 = arith.constant 0 : index
    %c0_55 = arith.constant 0 : index
    %169 = vector.load %arg8[%c0_54, %c0_55] : memref<9x64xf32, #tpu.memory_space<vmem>>, vector<1x64xf32>
    %170 = vector.broadcast %169 : vector<1x64xf32> to vector<8x64xf32>
    %171 = arith.mulf %168, %170 : vector<8x64xf32>
    %172 = vector.extract_strided_slice %164 {offsets = [0, 56], sizes = [8, 8], strides = [1, 1]} : vector<8x64xf32> to vector<8x8xf32>
    %173 = vector.extract_strided_slice %164 {offsets = [0, 0], sizes = [8, 56], strides = [1, 1]} : vector<8x64xf32> to vector<8x56xf32>
    %174 = tpu.concatenate %172, %173 in 1 : vector<8x8xf32>, vector<8x56xf32> -> vector<8x64xf32>
    %c1_56 = arith.constant 1 : index
    %c0_57 = arith.constant 0 : index
    %175 = vector.load %arg8[%c1_56, %c0_57] : memref<9x64xf32, #tpu.memory_space<vmem>>, vector<1x64xf32>
    %176 = vector.broadcast %175 : vector<1x64xf32> to vector<8x64xf32>
    %177 = arith.mulf %174, %176 : vector<8x64xf32>
    %178 = vector.extract_strided_slice %164 {offsets = [0, 57], sizes = [8, 7], strides = [1, 1]} : vector<8x64xf32> to vector<8x7xf32>
    %179 = vector.extract_strided_slice %164 {offsets = [0, 0], sizes = [8, 57], strides = [1, 1]} : vector<8x64xf32> to vector<8x57xf32>
    %180 = tpu.concatenate %178, %179 in 1 : vector<8x7xf32>, vector<8x57xf32> -> vector<8x64xf32>
    %c2_58 = arith.constant 2 : index
    %c0_59 = arith.constant 0 : index
    %181 = vector.load %arg8[%c2_58, %c0_59] : memref<9x64xf32, #tpu.memory_space<vmem>>, vector<1x64xf32>
    %182 = vector.broadcast %181 : vector<1x64xf32> to vector<8x64xf32>
    %183 = arith.mulf %180, %182 : vector<8x64xf32>
    %184 = vector.extract_strided_slice %164 {offsets = [0, 63], sizes = [8, 1], strides = [1, 1]} : vector<8x64xf32> to vector<8x1xf32>
    %185 = vector.extract_strided_slice %164 {offsets = [0, 0], sizes = [8, 63], strides = [1, 1]} : vector<8x64xf32> to vector<8x63xf32>
    %186 = tpu.concatenate %184, %185 in 1 : vector<8x1xf32>, vector<8x63xf32> -> vector<8x64xf32>
    %c3_60 = arith.constant 3 : index
    %c0_61 = arith.constant 0 : index
    %187 = vector.load %arg8[%c3_60, %c0_61] : memref<9x64xf32, #tpu.memory_space<vmem>>, vector<1x64xf32>
    %188 = vector.broadcast %187 : vector<1x64xf32> to vector<8x64xf32>
    %189 = arith.mulf %186, %188 : vector<8x64xf32>
    %190 = vector.extract_strided_slice %164 {offsets = [0, 1], sizes = [8, 63], strides = [1, 1]} : vector<8x64xf32> to vector<8x63xf32>
    %191 = vector.extract_strided_slice %164 {offsets = [0, 0], sizes = [8, 1], strides = [1, 1]} : vector<8x64xf32> to vector<8x1xf32>
    %192 = tpu.concatenate %190, %191 in 1 : vector<8x63xf32>, vector<8x1xf32> -> vector<8x64xf32>
    %c5_62 = arith.constant 5 : index
    %c0_63 = arith.constant 0 : index
    %193 = vector.load %arg8[%c5_62, %c0_63] : memref<9x64xf32, #tpu.memory_space<vmem>>, vector<1x64xf32>
    %194 = vector.broadcast %193 : vector<1x64xf32> to vector<8x64xf32>
    %195 = arith.mulf %192, %194 : vector<8x64xf32>
    %196 = vector.extract_strided_slice %164 {offsets = [0, 7], sizes = [8, 57], strides = [1, 1]} : vector<8x64xf32> to vector<8x57xf32>
    %197 = vector.extract_strided_slice %164 {offsets = [0, 0], sizes = [8, 7], strides = [1, 1]} : vector<8x64xf32> to vector<8x7xf32>
    %198 = tpu.concatenate %196, %197 in 1 : vector<8x57xf32>, vector<8x7xf32> -> vector<8x64xf32>
    %c6_64 = arith.constant 6 : index
    %c0_65 = arith.constant 0 : index
    %199 = vector.load %arg8[%c6_64, %c0_65] : memref<9x64xf32, #tpu.memory_space<vmem>>, vector<1x64xf32>
    %200 = vector.broadcast %199 : vector<1x64xf32> to vector<8x64xf32>
    %201 = arith.mulf %198, %200 : vector<8x64xf32>
    %202 = vector.extract_strided_slice %164 {offsets = [0, 8], sizes = [8, 56], strides = [1, 1]} : vector<8x64xf32> to vector<8x56xf32>
    %203 = vector.extract_strided_slice %164 {offsets = [0, 0], sizes = [8, 8], strides = [1, 1]} : vector<8x64xf32> to vector<8x8xf32>
    %204 = tpu.concatenate %202, %203 in 1 : vector<8x56xf32>, vector<8x8xf32> -> vector<8x64xf32>
    %c7_66 = arith.constant 7 : index
    %c0_67 = arith.constant 0 : index
    %205 = vector.load %arg8[%c7_66, %c0_67] : memref<9x64xf32, #tpu.memory_space<vmem>>, vector<1x64xf32>
    %206 = vector.broadcast %205 : vector<1x64xf32> to vector<8x64xf32>
    %207 = arith.mulf %204, %206 : vector<8x64xf32>
    %208 = vector.extract_strided_slice %164 {offsets = [0, 9], sizes = [8, 55], strides = [1, 1]} : vector<8x64xf32> to vector<8x55xf32>
    %209 = vector.extract_strided_slice %164 {offsets = [0, 0], sizes = [8, 9], strides = [1, 1]} : vector<8x64xf32> to vector<8x9xf32>
    %210 = tpu.concatenate %208, %209 in 1 : vector<8x55xf32>, vector<8x9xf32> -> vector<8x64xf32>
    %c8_68 = arith.constant 8 : index
    %c0_69 = arith.constant 0 : index
    %211 = vector.load %arg8[%c8_68, %c0_69] : memref<9x64xf32, #tpu.memory_space<vmem>>, vector<1x64xf32>
    %212 = vector.broadcast %211 : vector<1x64xf32> to vector<8x64xf32>
    %213 = arith.mulf %210, %212 : vector<8x64xf32>
    %214 = tpu.concatenate %171, %177, %183, %189, %164, %195, %201, %207, %213 in 0 : vector<8x64xf32>, vector<8x64xf32>, vector<8x64xf32>, vector<8x64xf32>, vector<8x64xf32>, vector<8x64xf32>, vector<8x64xf32>, vector<8x64xf32>, vector<8x64xf32> -> vector<72x64xf32>
    %215 = arith.truncf %214 : vector<72x64xf32> to vector<72x64xbf16>
    %cst_70 = arith.constant dense<0.000000e+00> : vector<16x64xf32>
    %216 = tpu.matmul %165, %215, %cst_70 {dimension_numbers = #tpu.dot_dimension_numbers<[1], [0], [0], [1], [0, 0, 1, 1], [], []>} : vector<16x72xbf16>, vector<72x64xbf16>, vector<16x64xf32> -> vector<16x64xf32>
    %cst_71 = arith.constant dense<0.000000e+00> : vector<16xf32>
    %217 = vector.multi_reduction <add>, %216, %cst_71 [1] : vector<16x64xf32> to vector<16xf32>
    %218 = vector.shape_cast %217 : vector<16xf32> to vector<16x1xf32>
    %cst_72 = arith.constant 1.562500e-02 : f32
    %219 = vector.broadcast %cst_72 : f32 to vector<16x1xf32>
    %220 = arith.mulf %218, %219 : vector<16x1xf32>
    %221 = arith.mulf %216, %216 : vector<16x64xf32>
    %cst_73 = arith.constant dense<0.000000e+00> : vector<16xf32>
    %222 = vector.multi_reduction <add>, %221, %cst_73 [1] : vector<16x64xf32> to vector<16xf32>
    %223 = vector.shape_cast %222 : vector<16xf32> to vector<16x1xf32>
    %cst_74 = arith.constant 1.562500e-02 : f32
    %224 = vector.broadcast %cst_74 : f32 to vector<16x1xf32>
    %225 = arith.mulf %223, %224 : vector<16x1xf32>
    %226 = arith.mulf %220, %220 : vector<16x1xf32>
    %227 = arith.subf %225, %226 : vector<16x1xf32>
    %228 = vector.broadcast %220 : vector<16x1xf32> to vector<16x64xf32>
    %229 = arith.subf %216, %228 : vector<16x64xf32>
    %cst_75 = arith.constant 0.000000e+00 : f32
    %230 = vector.broadcast %cst_75 : f32 to vector<16x1xf32>
    %231 = arith.maximumf %227, %230 : vector<16x1xf32>
    %cst_76 = arith.constant 9.99999974E-6 : f32
    %232 = vector.broadcast %cst_76 : f32 to vector<16x1xf32>
    %233 = arith.addf %231, %232 : vector<16x1xf32>
    %234 = math.rsqrt %233 : vector<16x1xf32>
    %235 = vector.broadcast %234 : vector<16x1xf32> to vector<16x64xf32>
    %236 = arith.mulf %229, %235 : vector<16x64xf32>
    %cst_77 = arith.constant 0.00999999977 : f32
    %237 = vector.broadcast %cst_77 : f32 to vector<16x64xf32>
    %238 = arith.mulf %237, %236 : vector<16x64xf32>
    %239 = arith.maximumf %236, %238 : vector<16x64xf32>
    %c0_78 = arith.constant 0 : index
    %c0_79 = arith.constant 0 : index
    %240 = vector.load %arg7[%c0_78, %c0_79] : memref<16x144xbf16, #tpu.memory_space<vmem>>, vector<16x144xbf16>
    %241 = vector.extract_strided_slice %239 {offsets = [0, 55], sizes = [16, 9], strides = [1, 1]} : vector<16x64xf32> to vector<16x9xf32>
    %242 = vector.extract_strided_slice %239 {offsets = [0, 0], sizes = [16, 55], strides = [1, 1]} : vector<16x64xf32> to vector<16x55xf32>
    %243 = tpu.concatenate %241, %242 in 1 : vector<16x9xf32>, vector<16x55xf32> -> vector<16x64xf32>
    %c0_80 = arith.constant 0 : index
    %c0_81 = arith.constant 0 : index
    %244 = vector.load %arg8[%c0_80, %c0_81] : memref<9x64xf32, #tpu.memory_space<vmem>>, vector<1x64xf32>
    %245 = vector.broadcast %244 : vector<1x64xf32> to vector<16x64xf32>
    %246 = arith.mulf %243, %245 : vector<16x64xf32>
    %247 = vector.extract_strided_slice %239 {offsets = [0, 56], sizes = [16, 8], strides = [1, 1]} : vector<16x64xf32> to vector<16x8xf32>
    %248 = vector.extract_strided_slice %239 {offsets = [0, 0], sizes = [16, 56], strides = [1, 1]} : vector<16x64xf32> to vector<16x56xf32>
    %249 = tpu.concatenate %247, %248 in 1 : vector<16x8xf32>, vector<16x56xf32> -> vector<16x64xf32>
    %c1_82 = arith.constant 1 : index
    %c0_83 = arith.constant 0 : index
    %250 = vector.load %arg8[%c1_82, %c0_83] : memref<9x64xf32, #tpu.memory_space<vmem>>, vector<1x64xf32>
    %251 = vector.broadcast %250 : vector<1x64xf32> to vector<16x64xf32>
    %252 = arith.mulf %249, %251 : vector<16x64xf32>
    %253 = vector.extract_strided_slice %239 {offsets = [0, 57], sizes = [16, 7], strides = [1, 1]} : vector<16x64xf32> to vector<16x7xf32>
    %254 = vector.extract_strided_slice %239 {offsets = [0, 0], sizes = [16, 57], strides = [1, 1]} : vector<16x64xf32> to vector<16x57xf32>
    %255 = tpu.concatenate %253, %254 in 1 : vector<16x7xf32>, vector<16x57xf32> -> vector<16x64xf32>
    %c2_84 = arith.constant 2 : index
    %c0_85 = arith.constant 0 : index
    %256 = vector.load %arg8[%c2_84, %c0_85] : memref<9x64xf32, #tpu.memory_space<vmem>>, vector<1x64xf32>
    %257 = vector.broadcast %256 : vector<1x64xf32> to vector<16x64xf32>
    %258 = arith.mulf %255, %257 : vector<16x64xf32>
    %259 = vector.extract_strided_slice %239 {offsets = [0, 63], sizes = [16, 1], strides = [1, 1]} : vector<16x64xf32> to vector<16x1xf32>
    %260 = vector.extract_strided_slice %239 {offsets = [0, 0], sizes = [16, 63], strides = [1, 1]} : vector<16x64xf32> to vector<16x63xf32>
    %261 = tpu.concatenate %259, %260 in 1 : vector<16x1xf32>, vector<16x63xf32> -> vector<16x64xf32>
    %c3_86 = arith.constant 3 : index
    %c0_87 = arith.constant 0 : index
    %262 = vector.load %arg8[%c3_86, %c0_87] : memref<9x64xf32, #tpu.memory_space<vmem>>, vector<1x64xf32>
    %263 = vector.broadcast %262 : vector<1x64xf32> to vector<16x64xf32>
    %264 = arith.mulf %261, %263 : vector<16x64xf32>
    %265 = vector.extract_strided_slice %239 {offsets = [0, 1], sizes = [16, 63], strides = [1, 1]} : vector<16x64xf32> to vector<16x63xf32>
    %266 = vector.extract_strided_slice %239 {offsets = [0, 0], sizes = [16, 1], strides = [1, 1]} : vector<16x64xf32> to vector<16x1xf32>
    %267 = tpu.concatenate %265, %266 in 1 : vector<16x63xf32>, vector<16x1xf32> -> vector<16x64xf32>
    %c5_88 = arith.constant 5 : index
    %c0_89 = arith.constant 0 : index
    %268 = vector.load %arg8[%c5_88, %c0_89] : memref<9x64xf32, #tpu.memory_space<vmem>>, vector<1x64xf32>
    %269 = vector.broadcast %268 : vector<1x64xf32> to vector<16x64xf32>
    %270 = arith.mulf %267, %269 : vector<16x64xf32>
    %271 = vector.extract_strided_slice %239 {offsets = [0, 7], sizes = [16, 57], strides = [1, 1]} : vector<16x64xf32> to vector<16x57xf32>
    %272 = vector.extract_strided_slice %239 {offsets = [0, 0], sizes = [16, 7], strides = [1, 1]} : vector<16x64xf32> to vector<16x7xf32>
    %273 = tpu.concatenate %271, %272 in 1 : vector<16x57xf32>, vector<16x7xf32> -> vector<16x64xf32>
    %c6_90 = arith.constant 6 : index
    %c0_91 = arith.constant 0 : index
    %274 = vector.load %arg8[%c6_90, %c0_91] : memref<9x64xf32, #tpu.memory_space<vmem>>, vector<1x64xf32>
    %275 = vector.broadcast %274 : vector<1x64xf32> to vector<16x64xf32>
    %276 = arith.mulf %273, %275 : vector<16x64xf32>
    %277 = vector.extract_strided_slice %239 {offsets = [0, 8], sizes = [16, 56], strides = [1, 1]} : vector<16x64xf32> to vector<16x56xf32>
    %278 = vector.extract_strided_slice %239 {offsets = [0, 0], sizes = [16, 8], strides = [1, 1]} : vector<16x64xf32> to vector<16x8xf32>
    %279 = tpu.concatenate %277, %278 in 1 : vector<16x56xf32>, vector<16x8xf32> -> vector<16x64xf32>
    %c7_92 = arith.constant 7 : index
    %c0_93 = arith.constant 0 : index
    %280 = vector.load %arg8[%c7_92, %c0_93] : memref<9x64xf32, #tpu.memory_space<vmem>>, vector<1x64xf32>
    %281 = vector.broadcast %280 : vector<1x64xf32> to vector<16x64xf32>
    %282 = arith.mulf %279, %281 : vector<16x64xf32>
    %283 = vector.extract_strided_slice %239 {offsets = [0, 9], sizes = [16, 55], strides = [1, 1]} : vector<16x64xf32> to vector<16x55xf32>
    %284 = vector.extract_strided_slice %239 {offsets = [0, 0], sizes = [16, 9], strides = [1, 1]} : vector<16x64xf32> to vector<16x9xf32>
    %285 = tpu.concatenate %283, %284 in 1 : vector<16x55xf32>, vector<16x9xf32> -> vector<16x64xf32>
    %c8_94 = arith.constant 8 : index
    %c0_95 = arith.constant 0 : index
    %286 = vector.load %arg8[%c8_94, %c0_95] : memref<9x64xf32, #tpu.memory_space<vmem>>, vector<1x64xf32>
    %287 = vector.broadcast %286 : vector<1x64xf32> to vector<16x64xf32>
    %288 = arith.mulf %285, %287 : vector<16x64xf32>
    %289 = tpu.concatenate %246, %252, %258, %264, %239, %270, %276, %282, %288 in 0 : vector<16x64xf32>, vector<16x64xf32>, vector<16x64xf32>, vector<16x64xf32>, vector<16x64xf32>, vector<16x64xf32>, vector<16x64xf32>, vector<16x64xf32>, vector<16x64xf32> -> vector<144x64xf32>
    %290 = arith.truncf %289 : vector<144x64xf32> to vector<144x64xbf16>
    %cst_96 = arith.constant dense<0.000000e+00> : vector<16x64xf32>
    %291 = tpu.matmul %240, %290, %cst_96 {dimension_numbers = #tpu.dot_dimension_numbers<[1], [0], [0], [1], [0, 0, 1, 1], [], []>} : vector<16x144xbf16>, vector<144x64xbf16>, vector<16x64xf32> -> vector<16x64xf32>
    %cst_97 = arith.constant dense<0.000000e+00> : vector<16xf32>
    %292 = vector.multi_reduction <add>, %291, %cst_97 [1] : vector<16x64xf32> to vector<16xf32>
    %293 = vector.shape_cast %292 : vector<16xf32> to vector<16x1xf32>
    %cst_98 = arith.constant 1.562500e-02 : f32
    %294 = vector.broadcast %cst_98 : f32 to vector<16x1xf32>
    %295 = arith.mulf %293, %294 : vector<16x1xf32>
    %296 = arith.mulf %291, %291 : vector<16x64xf32>
    %cst_99 = arith.constant dense<0.000000e+00> : vector<16xf32>
    %297 = vector.multi_reduction <add>, %296, %cst_99 [1] : vector<16x64xf32> to vector<16xf32>
    %298 = vector.shape_cast %297 : vector<16xf32> to vector<16x1xf32>
    %cst_100 = arith.constant 1.562500e-02 : f32
    %299 = vector.broadcast %cst_100 : f32 to vector<16x1xf32>
    %300 = arith.mulf %298, %299 : vector<16x1xf32>
    %301 = arith.mulf %295, %295 : vector<16x1xf32>
    %302 = arith.subf %300, %301 : vector<16x1xf32>
    %303 = vector.broadcast %295 : vector<16x1xf32> to vector<16x64xf32>
    %304 = arith.subf %291, %303 : vector<16x64xf32>
    %cst_101 = arith.constant 0.000000e+00 : f32
    %305 = vector.broadcast %cst_101 : f32 to vector<16x1xf32>
    %306 = arith.maximumf %302, %305 : vector<16x1xf32>
    %cst_102 = arith.constant 9.99999974E-6 : f32
    %307 = vector.broadcast %cst_102 : f32 to vector<16x1xf32>
    %308 = arith.addf %306, %307 : vector<16x1xf32>
    %309 = math.rsqrt %308 : vector<16x1xf32>
    %310 = vector.broadcast %309 : vector<16x1xf32> to vector<16x64xf32>
    %311 = arith.mulf %304, %310 : vector<16x64xf32>
    %cst_103 = arith.constant 0.00999999977 : f32
    %312 = vector.broadcast %cst_103 : f32 to vector<16x64xf32>
    %313 = arith.mulf %312, %311 : vector<16x64xf32>
    %314 = arith.maximumf %311, %313 : vector<16x64xf32>
    %c0_104 = arith.constant 0 : index
    %c0_105 = arith.constant 0 : index
    %c0_106 = arith.constant 0 : index
    %315 = vector.load %arg18[%c0_104, %c0_105, %c0_106] : memref<1x16x64xf32, #tpu.memory_space<vmem>>, vector<1x16x64xf32>
    %316 = vector.shape_cast %315 : vector<1x16x64xf32> to vector<16x64xf32>
    %317 = vector.shape_cast %314 : vector<16x64xf32> to vector<1x16x64xf32>
    tpu.vector_store %arg18[%c0_104, %c0_105, %c0_106], %317 {strides = array<i32>} : memref<1x16x64xf32, #tpu.memory_space<vmem>>, vector<1x16x64xf32>,
    %c0_107 = arith.constant 0 : index
    %c0_108 = arith.constant 0 : index
    %318 = vector.load %arg9[%c0_107, %c0_108] : memref<64x16xf32, #tpu.memory_space<vmem>>, vector<64x16xf32>
    %319 = vector.extract_strided_slice %314 {offsets = [0, 1], sizes = [16, 63], strides = [1, 1]} : vector<16x64xf32> to vector<16x63xf32>
    %320 = vector.extract_strided_slice %314 {offsets = [0, 0], sizes = [16, 1], strides = [1, 1]} : vector<16x64xf32> to vector<16x1xf32>
    %321 = tpu.concatenate %319, %320 in 1 : vector<16x63xf32>, vector<16x1xf32> -> vector<16x64xf32>
    %322 = arith.maximumf %314, %321 : vector<16x64xf32>
    %323 = vector.extract_strided_slice %322 {offsets = [0, 8], sizes = [16, 56], strides = [1, 1]} : vector<16x64xf32> to vector<16x56xf32>
    %324 = vector.extract_strided_slice %322 {offsets = [0, 0], sizes = [16, 8], strides = [1, 1]} : vector<16x64xf32> to vector<16x8xf32>
    %325 = tpu.concatenate %323, %324 in 1 : vector<16x56xf32>, vector<16x8xf32> -> vector<16x64xf32>
    %326 = arith.maximumf %322, %325 : vector<16x64xf32>
    %cst_109 = arith.constant dense<0.000000e+00> : vector<16x16xf32>
    %327 = tpu.matmul %326, %318, %cst_109 {dimension_numbers = #tpu.dot_dimension_numbers<[1], [0], [0], [1], [0, 0, 1, 1], [], []>} : vector<16x64xf32>, vector<64x16xf32>, vector<16x16xf32> -> vector<16x16xf32>
    %c0_110 = arith.constant 0 : index
    %c0_111 = arith.constant 0 : index
    %328 = vector.load %arg10[%c0_110, %c0_111] : memref<32x144xbf16, #tpu.memory_space<vmem>>, vector<32x144xbf16>
    %329 = vector.extract_strided_slice %327 {offsets = [0, 11], sizes = [16, 5], strides = [1, 1]} : vector<16x16xf32> to vector<16x5xf32>
    %330 = vector.extract_strided_slice %327 {offsets = [0, 0], sizes = [16, 11], strides = [1, 1]} : vector<16x16xf32> to vector<16x11xf32>
    %331 = tpu.concatenate %329, %330 in 1 : vector<16x5xf32>, vector<16x11xf32> -> vector<16x16xf32>
    %c0_112 = arith.constant 0 : index
    %c0_113 = arith.constant 0 : index
    %332 = vector.load %arg12[%c0_112, %c0_113] : memref<9x16xf32, #tpu.memory_space<vmem>>, vector<1x16xf32>
    %333 = vector.broadcast %332 : vector<1x16xf32> to vector<16x16xf32>
    %334 = arith.mulf %331, %333 : vector<16x16xf32>
    %335 = vector.extract_strided_slice %327 {offsets = [0, 12], sizes = [16, 4], strides = [1, 1]} : vector<16x16xf32> to vector<16x4xf32>
    %336 = vector.extract_strided_slice %327 {offsets = [0, 0], sizes = [16, 12], strides = [1, 1]} : vector<16x16xf32> to vector<16x12xf32>
    %337 = tpu.concatenate %335, %336 in 1 : vector<16x4xf32>, vector<16x12xf32> -> vector<16x16xf32>
    %c1_114 = arith.constant 1 : index
    %c0_115 = arith.constant 0 : index
    %338 = vector.load %arg12[%c1_114, %c0_115] : memref<9x16xf32, #tpu.memory_space<vmem>>, vector<1x16xf32>
    %339 = vector.broadcast %338 : vector<1x16xf32> to vector<16x16xf32>
    %340 = arith.mulf %337, %339 : vector<16x16xf32>
    %341 = vector.extract_strided_slice %327 {offsets = [0, 13], sizes = [16, 3], strides = [1, 1]} : vector<16x16xf32> to vector<16x3xf32>
    %342 = vector.extract_strided_slice %327 {offsets = [0, 0], sizes = [16, 13], strides = [1, 1]} : vector<16x16xf32> to vector<16x13xf32>
    %343 = tpu.concatenate %341, %342 in 1 : vector<16x3xf32>, vector<16x13xf32> -> vector<16x16xf32>
    %c2_116 = arith.constant 2 : index
    %c0_117 = arith.constant 0 : index
    %344 = vector.load %arg12[%c2_116, %c0_117] : memref<9x16xf32, #tpu.memory_space<vmem>>, vector<1x16xf32>
    %345 = vector.broadcast %344 : vector<1x16xf32> to vector<16x16xf32>
    %346 = arith.mulf %343, %345 : vector<16x16xf32>
    %347 = vector.extract_strided_slice %327 {offsets = [0, 15], sizes = [16, 1], strides = [1, 1]} : vector<16x16xf32> to vector<16x1xf32>
    %348 = vector.extract_strided_slice %327 {offsets = [0, 0], sizes = [16, 15], strides = [1, 1]} : vector<16x16xf32> to vector<16x15xf32>
    %349 = tpu.concatenate %347, %348 in 1 : vector<16x1xf32>, vector<16x15xf32> -> vector<16x16xf32>
    %c3_118 = arith.constant 3 : index
    %c0_119 = arith.constant 0 : index
    %350 = vector.load %arg12[%c3_118, %c0_119] : memref<9x16xf32, #tpu.memory_space<vmem>>, vector<1x16xf32>
    %351 = vector.broadcast %350 : vector<1x16xf32> to vector<16x16xf32>
    %352 = arith.mulf %349, %351 : vector<16x16xf32>
    %353 = vector.extract_strided_slice %327 {offsets = [0, 1], sizes = [16, 15], strides = [1, 1]} : vector<16x16xf32> to vector<16x15xf32>
    %354 = vector.extract_strided_slice %327 {offsets = [0, 0], sizes = [16, 1], strides = [1, 1]} : vector<16x16xf32> to vector<16x1xf32>
    %355 = tpu.concatenate %353, %354 in 1 : vector<16x15xf32>, vector<16x1xf32> -> vector<16x16xf32>
    %c5_120 = arith.constant 5 : index
    %c0_121 = arith.constant 0 : index
    %356 = vector.load %arg12[%c5_120, %c0_121] : memref<9x16xf32, #tpu.memory_space<vmem>>, vector<1x16xf32>
    %357 = vector.broadcast %356 : vector<1x16xf32> to vector<16x16xf32>
    %358 = arith.mulf %355, %357 : vector<16x16xf32>
    %359 = vector.extract_strided_slice %327 {offsets = [0, 3], sizes = [16, 13], strides = [1, 1]} : vector<16x16xf32> to vector<16x13xf32>
    %360 = vector.extract_strided_slice %327 {offsets = [0, 0], sizes = [16, 3], strides = [1, 1]} : vector<16x16xf32> to vector<16x3xf32>
    %361 = tpu.concatenate %359, %360 in 1 : vector<16x13xf32>, vector<16x3xf32> -> vector<16x16xf32>
    %c6_122 = arith.constant 6 : index
    %c0_123 = arith.constant 0 : index
    %362 = vector.load %arg12[%c6_122, %c0_123] : memref<9x16xf32, #tpu.memory_space<vmem>>, vector<1x16xf32>
    %363 = vector.broadcast %362 : vector<1x16xf32> to vector<16x16xf32>
    %364 = arith.mulf %361, %363 : vector<16x16xf32>
    %365 = vector.extract_strided_slice %327 {offsets = [0, 4], sizes = [16, 12], strides = [1, 1]} : vector<16x16xf32> to vector<16x12xf32>
    %366 = vector.extract_strided_slice %327 {offsets = [0, 0], sizes = [16, 4], strides = [1, 1]} : vector<16x16xf32> to vector<16x4xf32>
    %367 = tpu.concatenate %365, %366 in 1 : vector<16x12xf32>, vector<16x4xf32> -> vector<16x16xf32>
    %c7_124 = arith.constant 7 : index
    %c0_125 = arith.constant 0 : index
    %368 = vector.load %arg12[%c7_124, %c0_125] : memref<9x16xf32, #tpu.memory_space<vmem>>, vector<1x16xf32>
    %369 = vector.broadcast %368 : vector<1x16xf32> to vector<16x16xf32>
    %370 = arith.mulf %367, %369 : vector<16x16xf32>
    %371 = vector.extract_strided_slice %327 {offsets = [0, 5], sizes = [16, 11], strides = [1, 1]} : vector<16x16xf32> to vector<16x11xf32>
    %372 = vector.extract_strided_slice %327 {offsets = [0, 0], sizes = [16, 5], strides = [1, 1]} : vector<16x16xf32> to vector<16x5xf32>
    %373 = tpu.concatenate %371, %372 in 1 : vector<16x11xf32>, vector<16x5xf32> -> vector<16x16xf32>
    %c8_126 = arith.constant 8 : index
    %c0_127 = arith.constant 0 : index
    %374 = vector.load %arg12[%c8_126, %c0_127] : memref<9x16xf32, #tpu.memory_space<vmem>>, vector<1x16xf32>
    %375 = vector.broadcast %374 : vector<1x16xf32> to vector<16x16xf32>
    %376 = arith.mulf %373, %375 : vector<16x16xf32>
    %377 = tpu.concatenate %334, %340, %346, %352, %327, %358, %364, %370, %376 in 0 : vector<16x16xf32>, vector<16x16xf32>, vector<16x16xf32>, vector<16x16xf32>, vector<16x16xf32>, vector<16x16xf32>, vector<16x16xf32>, vector<16x16xf32>, vector<16x16xf32> -> vector<144x16xf32>
    %378 = arith.truncf %377 : vector<144x16xf32> to vector<144x16xbf16>
    %cst_128 = arith.constant dense<0.000000e+00> : vector<32x16xf32>
    %379 = tpu.matmul %328, %378, %cst_128 {dimension_numbers = #tpu.dot_dimension_numbers<[1], [0], [0], [1], [0, 0, 1, 1], [], []>} : vector<32x144xbf16>, vector<144x16xbf16>, vector<32x16xf32> -> vector<32x16xf32>
    %cst_129 = arith.constant dense<0.000000e+00> : vector<32xf32>
    %380 = vector.multi_reduction <add>, %379, %cst_129 [1] : vector<32x16xf32> to vector<32xf32>
    %381 = vector.shape_cast %380 : vector<32xf32> to vector<32x1xf32>
    %cst_130 = arith.constant 6.250000e-02 : f32
    %382 = vector.broadcast %cst_130 : f32 to vector<32x1xf32>
    %383 = arith.mulf %381, %382 : vector<32x1xf32>
    %384 = arith.mulf %379, %379 : vector<32x16xf32>
    %cst_131 = arith.constant dense<0.000000e+00> : vector<32xf32>
    %385 = vector.multi_reduction <add>, %384, %cst_131 [1] : vector<32x16xf32> to vector<32xf32>
    %386 = vector.shape_cast %385 : vector<32xf32> to vector<32x1xf32>
    %cst_132 = arith.constant 6.250000e-02 : f32
    %387 = vector.broadcast %cst_132 : f32 to vector<32x1xf32>
    %388 = arith.mulf %386, %387 : vector<32x1xf32>
    %389 = arith.mulf %383, %383 : vector<32x1xf32>
    %390 = arith.subf %388, %389 : vector<32x1xf32>
    %391 = vector.broadcast %383 : vector<32x1xf32> to vector<32x16xf32>
    %392 = arith.subf %379, %391 : vector<32x16xf32>
    %cst_133 = arith.constant 0.000000e+00 : f32
    %393 = vector.broadcast %cst_133 : f32 to vector<32x1xf32>
    %394 = arith.maximumf %390, %393 : vector<32x1xf32>
    %cst_134 = arith.constant 9.99999974E-6 : f32
    %395 = vector.broadcast %cst_134 : f32 to vector<32x1xf32>
    %396 = arith.addf %394, %395 : vector<32x1xf32>
    %397 = math.rsqrt %396 : vector<32x1xf32>
    %398 = vector.broadcast %397 : vector<32x1xf32> to vector<32x16xf32>
    %399 = arith.mulf %392, %398 : vector<32x16xf32>
    %cst_135 = arith.constant 0.00999999977 : f32
    %400 = vector.broadcast %cst_135 : f32 to vector<32x16xf32>
    %401 = arith.mulf %400, %399 : vector<32x16xf32>
    %402 = arith.maximumf %399, %401 : vector<32x16xf32>
    %c0_136 = arith.constant 0 : index
    %c0_137 = arith.constant 0 : index
    %403 = vector.load %arg11[%c0_136, %c0_137] : memref<32x288xbf16, #tpu.memory_space<vmem>>, vector<32x288xbf16>
    %404 = vector.extract_strided_slice %402 {offsets = [0, 11], sizes = [32, 5], strides = [1, 1]} : vector<32x16xf32> to vector<32x5xf32>
    %405 = vector.extract_strided_slice %402 {offsets = [0, 0], sizes = [32, 11], strides = [1, 1]} : vector<32x16xf32> to vector<32x11xf32>
    %406 = tpu.concatenate %404, %405 in 1 : vector<32x5xf32>, vector<32x11xf32> -> vector<32x16xf32>
    %c0_138 = arith.constant 0 : index
    %c0_139 = arith.constant 0 : index
    %407 = vector.load %arg12[%c0_138, %c0_139] : memref<9x16xf32, #tpu.memory_space<vmem>>, vector<1x16xf32>
    %408 = vector.broadcast %407 : vector<1x16xf32> to vector<32x16xf32>
    %409 = arith.mulf %406, %408 : vector<32x16xf32>
    %410 = vector.extract_strided_slice %402 {offsets = [0, 12], sizes = [32, 4], strides = [1, 1]} : vector<32x16xf32> to vector<32x4xf32>
    %411 = vector.extract_strided_slice %402 {offsets = [0, 0], sizes = [32, 12], strides = [1, 1]} : vector<32x16xf32> to vector<32x12xf32>
    %412 = tpu.concatenate %410, %411 in 1 : vector<32x4xf32>, vector<32x12xf32> -> vector<32x16xf32>
    %c1_140 = arith.constant 1 : index
    %c0_141 = arith.constant 0 : index
    %413 = vector.load %arg12[%c1_140, %c0_141] : memref<9x16xf32, #tpu.memory_space<vmem>>, vector<1x16xf32>
    %414 = vector.broadcast %413 : vector<1x16xf32> to vector<32x16xf32>
    %415 = arith.mulf %412, %414 : vector<32x16xf32>
    %416 = vector.extract_strided_slice %402 {offsets = [0, 13], sizes = [32, 3], strides = [1, 1]} : vector<32x16xf32> to vector<32x3xf32>
    %417 = vector.extract_strided_slice %402 {offsets = [0, 0], sizes = [32, 13], strides = [1, 1]} : vector<32x16xf32> to vector<32x13xf32>
    %418 = tpu.concatenate %416, %417 in 1 : vector<32x3xf32>, vector<32x13xf32> -> vector<32x16xf32>
    %c2_142 = arith.constant 2 : index
    %c0_143 = arith.constant 0 : index
    %419 = vector.load %arg12[%c2_142, %c0_143] : memref<9x16xf32, #tpu.memory_space<vmem>>, vector<1x16xf32>
    %420 = vector.broadcast %419 : vector<1x16xf32> to vector<32x16xf32>
    %421 = arith.mulf %418, %420 : vector<32x16xf32>
    %422 = vector.extract_strided_slice %402 {offsets = [0, 15], sizes = [32, 1], strides = [1, 1]} : vector<32x16xf32> to vector<32x1xf32>
    %423 = vector.extract_strided_slice %402 {offsets = [0, 0], sizes = [32, 15], strides = [1, 1]} : vector<32x16xf32> to vector<32x15xf32>
    %424 = tpu.concatenate %422, %423 in 1 : vector<32x1xf32>, vector<32x15xf32> -> vector<32x16xf32>
    %c3_144 = arith.constant 3 : index
    %c0_145 = arith.constant 0 : index
    %425 = vector.load %arg12[%c3_144, %c0_145] : memref<9x16xf32, #tpu.memory_space<vmem>>, vector<1x16xf32>
    %426 = vector.broadcast %425 : vector<1x16xf32> to vector<32x16xf32>
    %427 = arith.mulf %424, %426 : vector<32x16xf32>
    %428 = vector.extract_strided_slice %402 {offsets = [0, 1], sizes = [32, 15], strides = [1, 1]} : vector<32x16xf32> to vector<32x15xf32>
    %429 = vector.extract_strided_slice %402 {offsets = [0, 0], sizes = [32, 1], strides = [1, 1]} : vector<32x16xf32> to vector<32x1xf32>
    %430 = tpu.concatenate %428, %429 in 1 : vector<32x15xf32>, vector<32x1xf32> -> vector<32x16xf32>
    %c5_146 = arith.constant 5 : index
    %c0_147 = arith.constant 0 : index
    %431 = vector.load %arg12[%c5_146, %c0_147] : memref<9x16xf32, #tpu.memory_space<vmem>>, vector<1x16xf32>
    %432 = vector.broadcast %431 : vector<1x16xf32> to vector<32x16xf32>
    %433 = arith.mulf %430, %432 : vector<32x16xf32>
    %434 = vector.extract_strided_slice %402 {offsets = [0, 3], sizes = [32, 13], strides = [1, 1]} : vector<32x16xf32> to vector<32x13xf32>
    %435 = vector.extract_strided_slice %402 {offsets = [0, 0], sizes = [32, 3], strides = [1, 1]} : vector<32x16xf32> to vector<32x3xf32>
    %436 = tpu.concatenate %434, %435 in 1 : vector<32x13xf32>, vector<32x3xf32> -> vector<32x16xf32>
    %c6_148 = arith.constant 6 : index
    %c0_149 = arith.constant 0 : index
    %437 = vector.load %arg12[%c6_148, %c0_149] : memref<9x16xf32, #tpu.memory_space<vmem>>, vector<1x16xf32>
    %438 = vector.broadcast %437 : vector<1x16xf32> to vector<32x16xf32>
    %439 = arith.mulf %436, %438 : vector<32x16xf32>
    %440 = vector.extract_strided_slice %402 {offsets = [0, 4], sizes = [32, 12], strides = [1, 1]} : vector<32x16xf32> to vector<32x12xf32>
    %441 = vector.extract_strided_slice %402 {offsets = [0, 0], sizes = [32, 4], strides = [1, 1]} : vector<32x16xf32> to vector<32x4xf32>
    %442 = tpu.concatenate %440, %441 in 1 : vector<32x12xf32>, vector<32x4xf32> -> vector<32x16xf32>
    %c7_150 = arith.constant 7 : index
    %c0_151 = arith.constant 0 : index
    %443 = vector.load %arg12[%c7_150, %c0_151] : memref<9x16xf32, #tpu.memory_space<vmem>>, vector<1x16xf32>
    %444 = vector.broadcast %443 : vector<1x16xf32> to vector<32x16xf32>
    %445 = arith.mulf %442, %444 : vector<32x16xf32>
    %446 = vector.extract_strided_slice %402 {offsets = [0, 5], sizes = [32, 11], strides = [1, 1]} : vector<32x16xf32> to vector<32x11xf32>
    %447 = vector.extract_strided_slice %402 {offsets = [0, 0], sizes = [32, 5], strides = [1, 1]} : vector<32x16xf32> to vector<32x5xf32>
    %448 = tpu.concatenate %446, %447 in 1 : vector<32x11xf32>, vector<32x5xf32> -> vector<32x16xf32>
    %c8_152 = arith.constant 8 : index
    %c0_153 = arith.constant 0 : index
    %449 = vector.load %arg12[%c8_152, %c0_153] : memref<9x16xf32, #tpu.memory_space<vmem>>, vector<1x16xf32>
    %450 = vector.broadcast %449 : vector<1x16xf32> to vector<32x16xf32>
    %451 = arith.mulf %448, %450 : vector<32x16xf32>
    %452 = tpu.concatenate %409, %415, %421, %427, %402, %433, %439, %445, %451 in 0 : vector<32x16xf32>, vector<32x16xf32>, vector<32x16xf32>, vector<32x16xf32>, vector<32x16xf32>, vector<32x16xf32>, vector<32x16xf32>, vector<32x16xf32>, vector<32x16xf32> -> vector<288x16xf32>
    %453 = arith.truncf %452 : vector<288x16xf32> to vector<288x16xbf16>
    %cst_154 = arith.constant dense<0.000000e+00> : vector<32x16xf32>
    %454 = tpu.matmul %403, %453, %cst_154 {dimension_numbers = #tpu.dot_dimension_numbers<[1], [0], [0], [1], [0, 0, 1, 1], [], []>} : vector<32x288xbf16>, vector<288x16xbf16>, vector<32x16xf32> -> vector<32x16xf32>
    %cst_155 = arith.constant dense<0.000000e+00> : vector<32xf32>
    %455 = vector.multi_reduction <add>, %454, %cst_155 [1] : vector<32x16xf32> to vector<32xf32>
    %456 = vector.shape_cast %455 : vector<32xf32> to vector<32x1xf32>
    %cst_156 = arith.constant 6.250000e-02 : f32
    %457 = vector.broadcast %cst_156 : f32 to vector<32x1xf32>
    %458 = arith.mulf %456, %457 : vector<32x1xf32>
    %459 = arith.mulf %454, %454 : vector<32x16xf32>
    %cst_157 = arith.constant dense<0.000000e+00> : vector<32xf32>
    %460 = vector.multi_reduction <add>, %459, %cst_157 [1] : vector<32x16xf32> to vector<32xf32>
    %461 = vector.shape_cast %460 : vector<32xf32> to vector<32x1xf32>
    %cst_158 = arith.constant 6.250000e-02 : f32
    %462 = vector.broadcast %cst_158 : f32 to vector<32x1xf32>
    %463 = arith.mulf %461, %462 : vector<32x1xf32>
    %464 = arith.mulf %458, %458 : vector<32x1xf32>
    %465 = arith.subf %463, %464 : vector<32x1xf32>
    %466 = vector.broadcast %458 : vector<32x1xf32> to vector<32x16xf32>
    %467 = arith.subf %454, %466 : vector<32x16xf32>
    %cst_159 = arith.constant 0.000000e+00 : f32
    %468 = vector.broadcast %cst_159 : f32 to vector<32x1xf32>
    %469 = arith.maximumf %465, %468 : vector<32x1xf32>
    %cst_160 = arith.constant 9.99999974E-6 : f32
    %470 = vector.broadcast %cst_160 : f32 to vector<32x1xf32>
    %471 = arith.addf %469, %470 : vector<32x1xf32>
    %472 = math.rsqrt %471 : vector<32x1xf32>
    %473 = vector.broadcast %472 : vector<32x1xf32> to vector<32x16xf32>
    %474 = arith.mulf %467, %473 : vector<32x16xf32>
    %cst_161 = arith.constant 0.00999999977 : f32
    %475 = vector.broadcast %cst_161 : f32 to vector<32x16xf32>
    %476 = arith.mulf %475, %474 : vector<32x16xf32>
    %477 = arith.maximumf %474, %476 : vector<32x16xf32>
    %c0_162 = arith.constant 0 : index
    %c0_163 = arith.constant 0 : index
    %c0_164 = arith.constant 0 : index
    %478 = vector.load %arg19[%c0_162, %c0_163, %c0_164] : memref<1x32x16xf32, #tpu.memory_space<vmem>>, vector<1x32x16xf32>
    %479 = vector.shape_cast %478 : vector<1x32x16xf32> to vector<32x16xf32>
    %480 = vector.shape_cast %477 : vector<32x16xf32> to vector<1x32x16xf32>
    tpu.vector_store %arg19[%c0_162, %c0_163, %c0_164], %480 {strides = array<i32>} : memref<1x32x16xf32, #tpu.memory_space<vmem>>, vector<1x32x16xf32>,
    %c0_165 = arith.constant 0 : index
    %c0_166 = arith.constant 0 : index
    %481 = vector.load %arg13[%c0_165, %c0_166] : memref<16x4xf32, #tpu.memory_space<vmem>>, vector<16x4xf32>
    %482 = vector.extract_strided_slice %477 {offsets = [0, 1], sizes = [32, 15], strides = [1, 1]} : vector<32x16xf32> to vector<32x15xf32>
    %483 = vector.extract_strided_slice %477 {offsets = [0, 0], sizes = [32, 1], strides = [1, 1]} : vector<32x16xf32> to vector<32x1xf32>
    %484 = tpu.concatenate %482, %483 in 1 : vector<32x15xf32>, vector<32x1xf32> -> vector<32x16xf32>
    %485 = arith.maximumf %477, %484 : vector<32x16xf32>
    %486 = vector.extract_strided_slice %485 {offsets = [0, 4], sizes = [32, 12], strides = [1, 1]} : vector<32x16xf32> to vector<32x12xf32>
    %487 = vector.extract_strided_slice %485 {offsets = [0, 0], sizes = [32, 4], strides = [1, 1]} : vector<32x16xf32> to vector<32x4xf32>
    %488 = tpu.concatenate %486, %487 in 1 : vector<32x12xf32>, vector<32x4xf32> -> vector<32x16xf32>
    %489 = arith.maximumf %485, %488 : vector<32x16xf32>
    %cst_167 = arith.constant dense<0.000000e+00> : vector<32x4xf32>
    %490 = tpu.matmul %489, %481, %cst_167 {dimension_numbers = #tpu.dot_dimension_numbers<[1], [0], [0], [1], [0, 0, 1, 1], [], []>} : vector<32x16xf32>, vector<16x4xf32>, vector<32x4xf32> -> vector<32x4xf32>
    %c0_168 = arith.constant 0 : index
    %c0_169 = arith.constant 0 : index
    %491 = vector.load %arg14[%c0_168, %c0_169] : memref<64x288xbf16, #tpu.memory_space<vmem>>, vector<64x288xbf16>
    %492 = vector.extract_strided_slice %490 {offsets = [0, 1], sizes = [32, 3], strides = [1, 1]} : vector<32x4xf32> to vector<32x3xf32>
    %493 = vector.extract_strided_slice %490 {offsets = [0, 0], sizes = [32, 1], strides = [1, 1]} : vector<32x4xf32> to vector<32x1xf32>
    %494 = tpu.concatenate %492, %493 in 1 : vector<32x3xf32>, vector<32x1xf32> -> vector<32x4xf32>
    %c0_170 = arith.constant 0 : index
    %c0_171 = arith.constant 0 : index
    %495 = vector.load %arg16[%c0_170, %c0_171] : memref<9x4xf32, #tpu.memory_space<vmem>>, vector<1x4xf32>
    %496 = vector.broadcast %495 : vector<1x4xf32> to vector<32x4xf32>
    %497 = arith.mulf %494, %496 : vector<32x4xf32>
    %498 = vector.extract_strided_slice %490 {offsets = [0, 2], sizes = [32, 2], strides = [1, 1]} : vector<32x4xf32> to vector<32x2xf32>
    %499 = vector.extract_strided_slice %490 {offsets = [0, 0], sizes = [32, 2], strides = [1, 1]} : vector<32x4xf32> to vector<32x2xf32>
    %500 = tpu.concatenate %498, %499 in 1 : vector<32x2xf32>, vector<32x2xf32> -> vector<32x4xf32>
    %c1_172 = arith.constant 1 : index
    %c0_173 = arith.constant 0 : index
    %501 = vector.load %arg16[%c1_172, %c0_173] : memref<9x4xf32, #tpu.memory_space<vmem>>, vector<1x4xf32>
    %502 = vector.broadcast %501 : vector<1x4xf32> to vector<32x4xf32>
    %503 = arith.mulf %500, %502 : vector<32x4xf32>
    %504 = vector.extract_strided_slice %490 {offsets = [0, 3], sizes = [32, 1], strides = [1, 1]} : vector<32x4xf32> to vector<32x1xf32>
    %505 = vector.extract_strided_slice %490 {offsets = [0, 0], sizes = [32, 3], strides = [1, 1]} : vector<32x4xf32> to vector<32x3xf32>
    %506 = tpu.concatenate %504, %505 in 1 : vector<32x1xf32>, vector<32x3xf32> -> vector<32x4xf32>
    %c2_174 = arith.constant 2 : index
    %c0_175 = arith.constant 0 : index
    %507 = vector.load %arg16[%c2_174, %c0_175] : memref<9x4xf32, #tpu.memory_space<vmem>>, vector<1x4xf32>
    %508 = vector.broadcast %507 : vector<1x4xf32> to vector<32x4xf32>
    %509 = arith.mulf %506, %508 : vector<32x4xf32>
    %510 = vector.extract_strided_slice %490 {offsets = [0, 3], sizes = [32, 1], strides = [1, 1]} : vector<32x4xf32> to vector<32x1xf32>
    %511 = vector.extract_strided_slice %490 {offsets = [0, 0], sizes = [32, 3], strides = [1, 1]} : vector<32x4xf32> to vector<32x3xf32>
    %512 = tpu.concatenate %510, %511 in 1 : vector<32x1xf32>, vector<32x3xf32> -> vector<32x4xf32>
    %c3_176 = arith.constant 3 : index
    %c0_177 = arith.constant 0 : index
    %513 = vector.load %arg16[%c3_176, %c0_177] : memref<9x4xf32, #tpu.memory_space<vmem>>, vector<1x4xf32>
    %514 = vector.broadcast %513 : vector<1x4xf32> to vector<32x4xf32>
    %515 = arith.mulf %512, %514 : vector<32x4xf32>
    %516 = vector.extract_strided_slice %490 {offsets = [0, 1], sizes = [32, 3], strides = [1, 1]} : vector<32x4xf32> to vector<32x3xf32>
    %517 = vector.extract_strided_slice %490 {offsets = [0, 0], sizes = [32, 1], strides = [1, 1]} : vector<32x4xf32> to vector<32x1xf32>
    %518 = tpu.concatenate %516, %517 in 1 : vector<32x3xf32>, vector<32x1xf32> -> vector<32x4xf32>
    %c5_178 = arith.constant 5 : index
    %c0_179 = arith.constant 0 : index
    %519 = vector.load %arg16[%c5_178, %c0_179] : memref<9x4xf32, #tpu.memory_space<vmem>>, vector<1x4xf32>
    %520 = vector.broadcast %519 : vector<1x4xf32> to vector<32x4xf32>
    %521 = arith.mulf %518, %520 : vector<32x4xf32>
    %522 = vector.extract_strided_slice %490 {offsets = [0, 1], sizes = [32, 3], strides = [1, 1]} : vector<32x4xf32> to vector<32x3xf32>
    %523 = vector.extract_strided_slice %490 {offsets = [0, 0], sizes = [32, 1], strides = [1, 1]} : vector<32x4xf32> to vector<32x1xf32>
    %524 = tpu.concatenate %522, %523 in 1 : vector<32x3xf32>, vector<32x1xf32> -> vector<32x4xf32>
    %c6_180 = arith.constant 6 : index
    %c0_181 = arith.constant 0 : index
    %525 = vector.load %arg16[%c6_180, %c0_181] : memref<9x4xf32, #tpu.memory_space<vmem>>, vector<1x4xf32>
    %526 = vector.broadcast %525 : vector<1x4xf32> to vector<32x4xf32>
    %527 = arith.mulf %524, %526 : vector<32x4xf32>
    %528 = vector.extract_strided_slice %490 {offsets = [0, 2], sizes = [32, 2], strides = [1, 1]} : vector<32x4xf32> to vector<32x2xf32>
    %529 = vector.extract_strided_slice %490 {offsets = [0, 0], sizes = [32, 2], strides = [1, 1]} : vector<32x4xf32> to vector<32x2xf32>
    %530 = tpu.concatenate %528, %529 in 1 : vector<32x2xf32>, vector<32x2xf32> -> vector<32x4xf32>
    %c7_182 = arith.constant 7 : index
    %c0_183 = arith.constant 0 : index
    %531 = vector.load %arg16[%c7_182, %c0_183] : memref<9x4xf32, #tpu.memory_space<vmem>>, vector<1x4xf32>
    %532 = vector.broadcast %531 : vector<1x4xf32> to vector<32x4xf32>
    %533 = arith.mulf %530, %532 : vector<32x4xf32>
    %534 = vector.extract_strided_slice %490 {offsets = [0, 3], sizes = [32, 1], strides = [1, 1]} : vector<32x4xf32> to vector<32x1xf32>
    %535 = vector.extract_strided_slice %490 {offsets = [0, 0], sizes = [32, 3], strides = [1, 1]} : vector<32x4xf32> to vector<32x3xf32>
    %536 = tpu.concatenate %534, %535 in 1 : vector<32x1xf32>, vector<32x3xf32> -> vector<32x4xf32>
    %c8_184 = arith.constant 8 : index
    %c0_185 = arith.constant 0 : index
    %537 = vector.load %arg16[%c8_184, %c0_185] : memref<9x4xf32, #tpu.memory_space<vmem>>, vector<1x4xf32>
    %538 = vector.broadcast %537 : vector<1x4xf32> to vector<32x4xf32>
    %539 = arith.mulf %536, %538 : vector<32x4xf32>
    %540 = tpu.concatenate %497, %503, %509, %515, %490, %521, %527, %533, %539 in 0 : vector<32x4xf32>, vector<32x4xf32>, vector<32x4xf32>, vector<32x4xf32>, vector<32x4xf32>, vector<32x4xf32>, vector<32x4xf32>, vector<32x4xf32>, vector<32x4xf32> -> vector<288x4xf32>
    %541 = arith.truncf %540 : vector<288x4xf32> to vector<288x4xbf16>
    %cst_186 = arith.constant dense<0.000000e+00> : vector<64x4xf32>
    %542 = tpu.matmul %491, %541, %cst_186 {dimension_numbers = #tpu.dot_dimension_numbers<[1], [0], [0], [1], [0, 0, 1, 1], [], []>} : vector<64x288xbf16>, vector<288x4xbf16>, vector<64x4xf32> -> vector<64x4xf32>
    %cst_187 = arith.constant dense<0.000000e+00> : vector<64xf32>
    %543 = vector.multi_reduction <add>, %542, %cst_187 [1] : vector<64x4xf32> to vector<64xf32>
    %544 = vector.shape_cast %543 : vector<64xf32> to vector<64x1xf32>
    %cst_188 = arith.constant 2.500000e-01 : f32
    %545 = vector.broadcast %cst_188 : f32 to vector<64x1xf32>
    %546 = arith.mulf %544, %545 : vector<64x1xf32>
    %547 = arith.mulf %542, %542 : vector<64x4xf32>
    %cst_189 = arith.constant dense<0.000000e+00> : vector<64xf32>
    %548 = vector.multi_reduction <add>, %547, %cst_189 [1] : vector<64x4xf32> to vector<64xf32>
    %549 = vector.shape_cast %548 : vector<64xf32> to vector<64x1xf32>
    %cst_190 = arith.constant 2.500000e-01 : f32
    %550 = vector.broadcast %cst_190 : f32 to vector<64x1xf32>
    %551 = arith.mulf %549, %550 : vector<64x1xf32>
    %552 = arith.mulf %546, %546 : vector<64x1xf32>
    %553 = arith.subf %551, %552 : vector<64x1xf32>
    %554 = vector.broadcast %546 : vector<64x1xf32> to vector<64x4xf32>
    %555 = arith.subf %542, %554 : vector<64x4xf32>
    %cst_191 = arith.constant 0.000000e+00 : f32
    %556 = vector.broadcast %cst_191 : f32 to vector<64x1xf32>
    %557 = arith.maximumf %553, %556 : vector<64x1xf32>
    %cst_192 = arith.constant 9.99999974E-6 : f32
    %558 = vector.broadcast %cst_192 : f32 to vector<64x1xf32>
    %559 = arith.addf %557, %558 : vector<64x1xf32>
    %560 = math.rsqrt %559 : vector<64x1xf32>
    %561 = vector.broadcast %560 : vector<64x1xf32> to vector<64x4xf32>
    %562 = arith.mulf %555, %561 : vector<64x4xf32>
    %cst_193 = arith.constant 0.00999999977 : f32
    %563 = vector.broadcast %cst_193 : f32 to vector<64x4xf32>
    %564 = arith.mulf %563, %562 : vector<64x4xf32>
    %565 = arith.maximumf %562, %564 : vector<64x4xf32>
    %c0_194 = arith.constant 0 : index
    %c0_195 = arith.constant 0 : index
    %566 = vector.load %arg15[%c0_194, %c0_195] : memref<64x576xbf16, #tpu.memory_space<vmem>>, vector<64x576xbf16>
    %567 = vector.extract_strided_slice %565 {offsets = [0, 1], sizes = [64, 3], strides = [1, 1]} : vector<64x4xf32> to vector<64x3xf32>
    %568 = vector.extract_strided_slice %565 {offsets = [0, 0], sizes = [64, 1], strides = [1, 1]} : vector<64x4xf32> to vector<64x1xf32>
    %569 = tpu.concatenate %567, %568 in 1 : vector<64x3xf32>, vector<64x1xf32> -> vector<64x4xf32>
    %c0_196 = arith.constant 0 : index
    %c0_197 = arith.constant 0 : index
    %570 = vector.load %arg16[%c0_196, %c0_197] : memref<9x4xf32, #tpu.memory_space<vmem>>, vector<1x4xf32>
    %571 = vector.broadcast %570 : vector<1x4xf32> to vector<64x4xf32>
    %572 = arith.mulf %569, %571 : vector<64x4xf32>
    %573 = vector.extract_strided_slice %565 {offsets = [0, 2], sizes = [64, 2], strides = [1, 1]} : vector<64x4xf32> to vector<64x2xf32>
    %574 = vector.extract_strided_slice %565 {offsets = [0, 0], sizes = [64, 2], strides = [1, 1]} : vector<64x4xf32> to vector<64x2xf32>
    %575 = tpu.concatenate %573, %574 in 1 : vector<64x2xf32>, vector<64x2xf32> -> vector<64x4xf32>
    %c1_198 = arith.constant 1 : index
    %c0_199 = arith.constant 0 : index
    %576 = vector.load %arg16[%c1_198, %c0_199] : memref<9x4xf32, #tpu.memory_space<vmem>>, vector<1x4xf32>
    %577 = vector.broadcast %576 : vector<1x4xf32> to vector<64x4xf32>
    %578 = arith.mulf %575, %577 : vector<64x4xf32>
    %579 = vector.extract_strided_slice %565 {offsets = [0, 3], sizes = [64, 1], strides = [1, 1]} : vector<64x4xf32> to vector<64x1xf32>
    %580 = vector.extract_strided_slice %565 {offsets = [0, 0], sizes = [64, 3], strides = [1, 1]} : vector<64x4xf32> to vector<64x3xf32>
    %581 = tpu.concatenate %579, %580 in 1 : vector<64x1xf32>, vector<64x3xf32> -> vector<64x4xf32>
    %c2_200 = arith.constant 2 : index
    %c0_201 = arith.constant 0 : index
    %582 = vector.load %arg16[%c2_200, %c0_201] : memref<9x4xf32, #tpu.memory_space<vmem>>, vector<1x4xf32>
    %583 = vector.broadcast %582 : vector<1x4xf32> to vector<64x4xf32>
    %584 = arith.mulf %581, %583 : vector<64x4xf32>
    %585 = vector.extract_strided_slice %565 {offsets = [0, 3], sizes = [64, 1], strides = [1, 1]} : vector<64x4xf32> to vector<64x1xf32>
    %586 = vector.extract_strided_slice %565 {offsets = [0, 0], sizes = [64, 3], strides = [1, 1]} : vector<64x4xf32> to vector<64x3xf32>
    %587 = tpu.concatenate %585, %586 in 1 : vector<64x1xf32>, vector<64x3xf32> -> vector<64x4xf32>
    %c3_202 = arith.constant 3 : index
    %c0_203 = arith.constant 0 : index
    %588 = vector.load %arg16[%c3_202, %c0_203] : memref<9x4xf32, #tpu.memory_space<vmem>>, vector<1x4xf32>
    %589 = vector.broadcast %588 : vector<1x4xf32> to vector<64x4xf32>
    %590 = arith.mulf %587, %589 : vector<64x4xf32>
    %591 = vector.extract_strided_slice %565 {offsets = [0, 1], sizes = [64, 3], strides = [1, 1]} : vector<64x4xf32> to vector<64x3xf32>
    %592 = vector.extract_strided_slice %565 {offsets = [0, 0], sizes = [64, 1], strides = [1, 1]} : vector<64x4xf32> to vector<64x1xf32>
    %593 = tpu.concatenate %591, %592 in 1 : vector<64x3xf32>, vector<64x1xf32> -> vector<64x4xf32>
    %c5_204 = arith.constant 5 : index
    %c0_205 = arith.constant 0 : index
    %594 = vector.load %arg16[%c5_204, %c0_205] : memref<9x4xf32, #tpu.memory_space<vmem>>, vector<1x4xf32>
    %595 = vector.broadcast %594 : vector<1x4xf32> to vector<64x4xf32>
    %596 = arith.mulf %593, %595 : vector<64x4xf32>
    %597 = vector.extract_strided_slice %565 {offsets = [0, 1], sizes = [64, 3], strides = [1, 1]} : vector<64x4xf32> to vector<64x3xf32>
    %598 = vector.extract_strided_slice %565 {offsets = [0, 0], sizes = [64, 1], strides = [1, 1]} : vector<64x4xf32> to vector<64x1xf32>
    %599 = tpu.concatenate %597, %598 in 1 : vector<64x3xf32>, vector<64x1xf32> -> vector<64x4xf32>
    %c6_206 = arith.constant 6 : index
    %c0_207 = arith.constant 0 : index
    %600 = vector.load %arg16[%c6_206, %c0_207] : memref<9x4xf32, #tpu.memory_space<vmem>>, vector<1x4xf32>
    %601 = vector.broadcast %600 : vector<1x4xf32> to vector<64x4xf32>
    %602 = arith.mulf %599, %601 : vector<64x4xf32>
    %603 = vector.extract_strided_slice %565 {offsets = [0, 2], sizes = [64, 2], strides = [1, 1]} : vector<64x4xf32> to vector<64x2xf32>
    %604 = vector.extract_strided_slice %565 {offsets = [0, 0], sizes = [64, 2], strides = [1, 1]} : vector<64x4xf32> to vector<64x2xf32>
    %605 = tpu.concatenate %603, %604 in 1 : vector<64x2xf32>, vector<64x2xf32> -> vector<64x4xf32>
    %c7_208 = arith.constant 7 : index
    %c0_209 = arith.constant 0 : index
    %606 = vector.load %arg16[%c7_208, %c0_209] : memref<9x4xf32, #tpu.memory_space<vmem>>, vector<1x4xf32>
    %607 = vector.broadcast %606 : vector<1x4xf32> to vector<64x4xf32>
    %608 = arith.mulf %605, %607 : vector<64x4xf32>
    %609 = vector.extract_strided_slice %565 {offsets = [0, 3], sizes = [64, 1], strides = [1, 1]} : vector<64x4xf32> to vector<64x1xf32>
    %610 = vector.extract_strided_slice %565 {offsets = [0, 0], sizes = [64, 3], strides = [1, 1]} : vector<64x4xf32> to vector<64x3xf32>
    %611 = tpu.concatenate %609, %610 in 1 : vector<64x1xf32>, vector<64x3xf32> -> vector<64x4xf32>
    %c8_210 = arith.constant 8 : index
    %c0_211 = arith.constant 0 : index
    %612 = vector.load %arg16[%c8_210, %c0_211] : memref<9x4xf32, #tpu.memory_space<vmem>>, vector<1x4xf32>
    %613 = vector.broadcast %612 : vector<1x4xf32> to vector<64x4xf32>
    %614 = arith.mulf %611, %613 : vector<64x4xf32>
    %615 = tpu.concatenate %572, %578, %584, %590, %565, %596, %602, %608, %614 in 0 : vector<64x4xf32>, vector<64x4xf32>, vector<64x4xf32>, vector<64x4xf32>, vector<64x4xf32>, vector<64x4xf32>, vector<64x4xf32>, vector<64x4xf32>, vector<64x4xf32> -> vector<576x4xf32>
    %616 = arith.truncf %615 : vector<576x4xf32> to vector<576x4xbf16>
    %cst_212 = arith.constant dense<0.000000e+00> : vector<64x4xf32>
    %617 = tpu.matmul %566, %616, %cst_212 {dimension_numbers = #tpu.dot_dimension_numbers<[1], [0], [0], [1], [0, 0, 1, 1], [], []>} : vector<64x576xbf16>, vector<576x4xbf16>, vector<64x4xf32> -> vector<64x4xf32>
    %cst_213 = arith.constant dense<0.000000e+00> : vector<64xf32>
    %618 = vector.multi_reduction <add>, %617, %cst_213 [1] : vector<64x4xf32> to vector<64xf32>
    %619 = vector.shape_cast %618 : vector<64xf32> to vector<64x1xf32>
    %cst_214 = arith.constant 2.500000e-01 : f32
    %620 = vector.broadcast %cst_214 : f32 to vector<64x1xf32>
    %621 = arith.mulf %619, %620 : vector<64x1xf32>
    %622 = arith.mulf %617, %617 : vector<64x4xf32>
    %cst_215 = arith.constant dense<0.000000e+00> : vector<64xf32>
    %623 = vector.multi_reduction <add>, %622, %cst_215 [1] : vector<64x4xf32> to vector<64xf32>
    %624 = vector.shape_cast %623 : vector<64xf32> to vector<64x1xf32>
    %cst_216 = arith.constant 2.500000e-01 : f32
    %625 = vector.broadcast %cst_216 : f32 to vector<64x1xf32>
    %626 = arith.mulf %624, %625 : vector<64x1xf32>
    %627 = arith.mulf %621, %621 : vector<64x1xf32>
    %628 = arith.subf %626, %627 : vector<64x1xf32>
    %629 = vector.broadcast %621 : vector<64x1xf32> to vector<64x4xf32>
    %630 = arith.subf %617, %629 : vector<64x4xf32>
    %cst_217 = arith.constant 0.000000e+00 : f32
    %631 = vector.broadcast %cst_217 : f32 to vector<64x1xf32>
    %632 = arith.maximumf %628, %631 : vector<64x1xf32>
    %cst_218 = arith.constant 9.99999974E-6 : f32
    %633 = vector.broadcast %cst_218 : f32 to vector<64x1xf32>
    %634 = arith.addf %632, %633 : vector<64x1xf32>
    %635 = math.rsqrt %634 : vector<64x1xf32>
    %636 = vector.broadcast %635 : vector<64x1xf32> to vector<64x4xf32>
    %637 = arith.mulf %630, %636 : vector<64x4xf32>
    %cst_219 = arith.constant 0.00999999977 : f32
    %638 = vector.broadcast %cst_219 : f32 to vector<64x4xf32>
    %639 = arith.mulf %638, %637 : vector<64x4xf32>
    %640 = arith.maximumf %637, %639 : vector<64x4xf32>
    %c0_220 = arith.constant 0 : index
    %c0_221 = arith.constant 0 : index
    %c0_222 = arith.constant 0 : index
    %641 = vector.load %arg20[%c0_220, %c0_221, %c0_222] : memref<1x64x4xf32, #tpu.memory_space<vmem>>, vector<1x64x4xf32>
    %642 = vector.shape_cast %641 : vector<1x64x4xf32> to vector<64x4xf32>
    %643 = vector.shape_cast %640 : vector<64x4xf32> to vector<1x64x4xf32>
    tpu.vector_store %arg20[%c0_220, %c0_221, %c0_222], %643 {strides = array<i32>} : memref<1x64x4xf32, #tpu.memory_space<vmem>>, vector<1x64x4xf32>,
    return
  }
  func.func @transform_0(%arg0: i32) -> (i32, i32, i32) {
    %c0_i32 = arith.constant 0 : i32
    %c0_i32_0 = arith.constant 0 : i32
    %c0_i32_1 = arith.constant 0 : i32
    return %arg0, %c0_i32, %c0_i32_0 : i32, i32, i32
  }
  func.func @transform_1(%arg0: i32) -> (i32, i32) {
    %c0_i32 = arith.constant 0 : i32
    %c0_i32_0 = arith.constant 0 : i32
    %c0_i32_1 = arith.constant 0 : i32
    return %c0_i32, %c0_i32_0 : i32, i32
  }
  func.func @transform_2(%arg0: i32) -> (i32, i32) {
    %c0_i32 = arith.constant 0 : i32
    %c0_i32_0 = arith.constant 0 : i32
    %c0_i32_1 = arith.constant 0 : i32
    return %c0_i32, %c0_i32_0 : i32, i32
  }
  func.func @transform_3(%arg0: i32) -> (i32, i32) {
    %c0_i32 = arith.constant 0 : i32
    %c0_i32_0 = arith.constant 0 : i32
    %c0_i32_1 = arith.constant 0 : i32
    return %c0_i32, %c0_i32_0 : i32, i32
  }
  func.func @transform_4(%arg0: i32) -> (i32, i32) {
    %c0_i32 = arith.constant 0 : i32
    %c0_i32_0 = arith.constant 0 : i32
    %c0_i32_1 = arith.constant 0 : i32
    return %c0_i32, %c0_i32_0 : i32, i32
  }
  func.func @transform_5(%arg0: i32) -> (i32, i32) {
    %c0_i32 = arith.constant 0 : i32
    %c0_i32_0 = arith.constant 0 : i32
    %c0_i32_1 = arith.constant 0 : i32
    return %c0_i32, %c0_i32_0 : i32, i32
  }
  func.func @transform_6(%arg0: i32) -> (i32, i32) {
    %c0_i32 = arith.constant 0 : i32
    %c0_i32_0 = arith.constant 0 : i32
    %c0_i32_1 = arith.constant 0 : i32
    return %c0_i32, %c0_i32_0 : i32, i32
  }
  func.func @transform_7(%arg0: i32) -> (i32, i32) {
    %c0_i32 = arith.constant 0 : i32
    %c0_i32_0 = arith.constant 0 : i32
    %c0_i32_1 = arith.constant 0 : i32
    return %c0_i32, %c0_i32_0 : i32, i32
  }
  func.func @transform_8(%arg0: i32) -> (i32, i32) {
    %c0_i32 = arith.constant 0 : i32
    %c0_i32_0 = arith.constant 0 : i32
    %c0_i32_1 = arith.constant 0 : i32
    return %c0_i32, %c0_i32_0 : i32, i32
  }
  func.func @transform_9(%arg0: i32) -> (i32, i32) {
    %c0_i32 = arith.constant 0 : i32
    %c0_i32_0 = arith.constant 0 : i32
    %c0_i32_1 = arith.constant 0 : i32
    return %c0_i32, %c0_i32_0 : i32, i32
  }
  func.func @transform_10(%arg0: i32) -> (i32, i32) {
    %c0_i32 = arith.constant 0 : i32
    %c0_i32_0 = arith.constant 0 : i32
    %c0_i32_1 = arith.constant 0 : i32
    return %c0_i32, %c0_i32_0 : i32, i32
  }
  func.func @transform_11(%arg0: i32) -> (i32, i32) {
    %c0_i32 = arith.constant 0 : i32
    %c0_i32_0 = arith.constant 0 : i32
    %c0_i32_1 = arith.constant 0 : i32
    return %c0_i32, %c0_i32_0 : i32, i32
  }
  func.func @transform_12(%arg0: i32) -> (i32, i32) {
    %c0_i32 = arith.constant 0 : i32
    %c0_i32_0 = arith.constant 0 : i32
    %c0_i32_1 = arith.constant 0 : i32
    return %c0_i32, %c0_i32_0 : i32, i32
  }
  func.func @transform_13(%arg0: i32) -> (i32, i32) {
    %c0_i32 = arith.constant 0 : i32
    %c0_i32_0 = arith.constant 0 : i32
    %c0_i32_1 = arith.constant 0 : i32
    return %c0_i32, %c0_i32_0 : i32, i32
  }
  func.func @transform_14(%arg0: i32) -> (i32, i32) {
    %c0_i32 = arith.constant 0 : i32
    %c0_i32_0 = arith.constant 0 : i32
    %c0_i32_1 = arith.constant 0 : i32
    return %c0_i32, %c0_i32_0 : i32, i32
  }
  func.func @transform_15(%arg0: i32) -> (i32, i32) {
    %c0_i32 = arith.constant 0 : i32
    %c0_i32_0 = arith.constant 0 : i32
    %c0_i32_1 = arith.constant 0 : i32
    return %c0_i32, %c0_i32_0 : i32, i32
  }
  func.func @transform_16(%arg0: i32) -> (i32, i32, i32) {
    %c0_i32 = arith.constant 0 : i32
    %c0_i32_0 = arith.constant 0 : i32
    %c0_i32_1 = arith.constant 0 : i32
    return %arg0, %c0_i32, %c0_i32_0 : i32, i32, i32
  }
  func.func @transform_17(%arg0: i32) -> (i32, i32, i32) {
    %c0_i32 = arith.constant 0 : i32
    %c0_i32_0 = arith.constant 0 : i32
    %c0_i32_1 = arith.constant 0 : i32
    return %arg0, %c0_i32, %c0_i32_0 : i32, i32, i32
  }
  func.func @transform_18(%arg0: i32) -> (i32, i32, i32) {
    %c0_i32 = arith.constant 0 : i32
    %c0_i32_0 = arith.constant 0 : i32
    %c0_i32_1 = arith.constant 0 : i32
    return %arg0, %c0_i32, %c0_i32_0 : i32, i32, i32
  }
  func.func @transform_19(%arg0: i32) -> (i32, i32, i32) {
    %c0_i32 = arith.constant 0 : i32
    %c0_i32_0 = arith.constant 0 : i32
    %c0_i32_1 = arith.constant 0 : i32
    return %arg0, %c0_i32, %c0_i32_0 : i32, i32, i32
  }
}

</mosaic_0001>

<llo_original>
// kernel: unet_encoder_forward.1
$region0: #{unet_encoder_forward.1}
  #allocation0 [shape = 'u32[]', space=smem, size = 0x4, offset = 0x4, fixed_abs, tag = 'smem constant byte address 0x4 - core index']
  #allocation1 [shape = 'u32[144,128]{1,0:T(1,128)}', space=vmem, size = 0x12000, scoped, tag = 'internal scratch']
  %s0 = inlined_call_operand.vmem [shape: f32[2,8,256], index: 0, kind: input, shape index: {}]
  %s1 = inlined_call_operand.vmem [shape: bf16[8,72], index: 1, kind: input, shape index: {}]
  %s2 = inlined_call_operand.vmem [shape: bf16[8,72], index: 2, kind: input, shape index: {}]
  %s3 = inlined_call_operand.vmem [shape: f32[9,256], index: 3, kind: input, shape index: {}]
  %s4 = inlined_call_operand.vmem [shape: f32[256,64], index: 4, kind: input, shape index: {}]
  %s5 = inlined_call_operand.vmem [shape: bf16[16,72], index: 5, kind: input, shape index: {}]
  %s6 = inlined_call_operand.vmem [shape: bf16[16,144], index: 6, kind: input, shape index: {}]
  %s7 = inlined_call_operand.vmem [shape: f32[9,64], index: 7, kind: input, shape index: {}]
  %s8 = inlined_call_operand.vmem [shape: f32[64,16], index: 8, kind: input, shape index: {}]
  %s9 = inlined_call_operand.vmem [shape: bf16[32,144], index: 9, kind: input, shape index: {}]
  %s10 = inlined_call_operand.vmem [shape: bf16[32,288], index: 10, kind: input, shape index: {}]
  %s11 = inlined_call_operand.vmem [shape: f32[9,16], index: 11, kind: input, shape index: {}]
  %s12 = inlined_call_operand.vmem [shape: f32[16,4], index: 12, kind: input, shape index: {}]
  %s13 = inlined_call_operand.vmem [shape: bf16[64,288], index: 13, kind: input, shape index: {}]
  %s14 = inlined_call_operand.vmem [shape: bf16[64,576], index: 14, kind: input, shape index: {}]
  %s15 = inlined_call_operand.vmem [shape: f32[9,4], index: 15, kind: input, shape index: {}]
  %s16 = inlined_call_operand.vmem [shape: f32[2,8,256], index: 16, kind: output, shape index: {0}]
  %s17 = inlined_call_operand.vmem [shape: f32[2,16,64], index: 17, kind: output, shape index: {1}]
  %s18 = inlined_call_operand.vmem [shape: f32[2,32,16], index: 18, kind: output, shape index: {2}]
  %s19 = inlined_call_operand.vmem [shape: f32[2,64,4], index: 19, kind: output, shape index: {3}]
  %20 = xla_tuple %s16, %s17, %s18, %s19
  %s21 = sld [smem:[#allocation0]]
  $region121: #{unet_encoder_forward.1} parent=0
    _
  %s23 = ssub.s32 1, %s21
  %s24 = scalar_select 0, %s23, %s21
  loop: start=0, step=1, limit=4
  $region2: #{unet_encoder_forward.1} parent=0 // loop_pre_header
    _
  $region3: #{unet_encoder_forward.1} parent=0 // loop_header
    %s26 = sphi 0, %s30
    %p27 = scmp.ge.s32.totalorder %s26, 4
    %s36 = sphi 0, %s38
    %s39 = sphi 0, %s36
    %s40 = sphi 0, %s39
    %s56 = sphi 0, %s40
    %s60 = sphi 0, %s60
    %s62 = sphi 0, %s60
    %s63 = sphi 0, %s62
    %s77 = sphi 0, %s63
    %s81 = sphi 0, %s81
    %s83 = sphi 0, %s81
    %s84 = sphi 0, %s83
    %s98 = sphi 0, %s84
    %s102 = sphi 0, %s102
    %s104 = sphi 0, %s102
    %s105 = sphi 0, %s104
    %s119 = sphi 0, %s105
    %s123 = sphi 0, %s123
    %s125 = sphi 0, %s123
    %s126 = sphi 0, %s125
    %s140 = sphi 0, %s126
    %s144 = sphi 0, %s144
    %s146 = sphi 0, %s144
    %s147 = sphi 0, %s146
    %s161 = sphi 0, %s147
    %s165 = sphi 0, %s165
    %s167 = sphi 0, %s165
    %s168 = sphi 0, %s167
    %s182 = sphi 0, %s168
    %s186 = sphi 0, %s186
    %s188 = sphi 0, %s186
    %s189 = sphi 0, %s188
    %s203 = sphi 0, %s189
    %s207 = sphi 0, %s207
    %s209 = sphi 0, %s207
    %s210 = sphi 0, %s209
    %s224 = sphi 0, %s210
    %s228 = sphi 0, %s228
    %s230 = sphi 0, %s228
    %s231 = sphi 0, %s230
    %s245 = sphi 0, %s231
    %s249 = sphi 0, %s249
    %s251 = sphi 0, %s249
    %s252 = sphi 0, %s251
    %s266 = sphi 0, %s252
    %s270 = sphi 0, %s270
    %s272 = sphi 0, %s270
    %s273 = sphi 0, %s272
    %s287 = sphi 0, %s273
    %s291 = sphi 0, %s291
    %s293 = sphi 0, %s291
    %s294 = sphi 0, %s293
    %s308 = sphi 0, %s294
    %s312 = sphi 0, %s312
    %s314 = sphi 0, %s312
    %s315 = sphi 0, %s314
    %s329 = sphi 0, %s315
    %s333 = sphi 0, %s333
    %s335 = sphi 0, %s333
    %s336 = sphi 0, %s335
    %s350 = sphi 0, %s336
    %s354 = sphi 0, %s354
    %s356 = sphi 0, %s354
    %s357 = sphi 0, %s356
    %s371 = sphi 0, %s357
    %s377 = sphi 0, %s379
    %s380 = sphi 0, %s377
    %s381 = sphi 0, %s380
    %s397 = sphi 0, %s381
    %s403 = sphi 0, %s405
    %s406 = sphi 0, %s403
    %s407 = sphi 0, %s406
    %s423 = sphi 0, %s407
    %s429 = sphi 0, %s431
    %s432 = sphi 0, %s429
    %s433 = sphi 0, %s432
    %s449 = sphi 0, %s433
    %s455 = sphi 0, %s457
    %s458 = sphi 0, %s455
    %s459 = sphi 0, %s458
    %s475 = sphi 0, %s459
  $region4: #{unet_encoder_forward.1} parent=0 // loop_header_branch
    %29 = sbr.rel (%p27) target = $region8
  $region5: #{unet_encoder_forward.1} parent=0 // loop_body
    %s31 = ssub.s32 %s26, 1
    %s32 = ssub.s32 %s26, 2
    %s33 = sadd.s32 %s26, 1
    %s34 = ssub.s32 %s26, %s33
    %p35 = scmp.eq.s32.totalorder %s34, 0
    %s37 = sadd.s32 %s36, 1
    %s38 = scalar_select %p35, %s36, %s37
    %p41 = pneg %p35
    %p42 = scmp.eq.s32.totalorder %s26, 1
    %p43 = por %p41, %p42
    %p44 = scmp.ne.s32.totalorder %s36, %s39
    %p45 = scmp.eq.s32.totalorder %s26, 0
    %p46 = por %p44, %p45
    %p47 = scmp.ne.s32.totalorder %s36, %s39
    %p48 = scmp.eq.s32.totalorder %s31, 1
    %p49 = por %p47, %p48
    %p50 = scmp.ne.s32.totalorder %s39, %s40
    %p51 = scmp.eq.s32.totalorder %s31, 0
    %p52 = por %p50, %p51
    %p53 = scmp.ne.s32.totalorder %s39, %s40
    %p54 = scmp.eq.s32.totalorder %s32, 1
    %p55 = por %p53, %p54
    %p57 = scmp.ne.s32.totalorder %s40, %s56
    %p58 = scmp.eq.s32.totalorder %s32, 0
    %p59 = por %p57, %p58
    %s61 = sadd.s32 %s60, 1
    %p64 = scmp.eq.s32.totalorder %s26, 1
    %p65 = scmp.ne.s32.totalorder %s60, %s62
    %p66 = scmp.eq.s32.totalorder %s26, 0
    %p67 = por %p65, %p66
    %p68 = scmp.ne.s32.totalorder %s60, %s62
    %p69 = scmp.eq.s32.totalorder %s31, 1
    %p70 = por %p68, %p69
    %p71 = scmp.ne.s32.totalorder %s62, %s63
    %p72 = scmp.eq.s32.totalorder %s31, 0
    %p73 = por %p71, %p72
    %p74 = scmp.ne.s32.totalorder %s62, %s63
    %p75 = scmp.eq.s32.totalorder %s32, 1
    %p76 = por %p74, %p75
    %p78 = scmp.ne.s32.totalorder %s63, %s77
    %p79 = scmp.eq.s32.totalorder %s32, 0
    %p80 = por %p78, %p79
    %s82 = sadd.s32 %s81, 1
    %p85 = scmp.eq.s32.totalorder %s26, 1
    %p86 = scmp.ne.s32.totalorder %s81, %s83
    %p87 = scmp.eq.s32.totalorder %s26, 0
    %p88 = por %p86, %p87
    %p89 = scmp.ne.s32.totalorder %s81, %s83
    %p90 = scmp.eq.s32.totalorder %s31, 1
    %p91 = por %p89, %p90
    %p92 = scmp.ne.s32.totalorder %s83, %s84
    %p93 = scmp.eq.s32.totalorder %s31, 0
    %p94 = por %p92, %p93
    %p95 = scmp.ne.s32.totalorder %s83, %s84
    %p96 = scmp.eq.s32.totalorder %s32, 1
    %p97 = por %p95, %p96
    %p99 = scmp.ne.s32.totalorder %s84, %s98
    %p100 = scmp.eq.s32.totalorder %s32, 0
    %p101 = por %p99, %p100
    %s103 = sadd.s32 %s102, 1
    %p106 = scmp.eq.s32.totalorder %s26, 1
    %p107 = scmp.ne.s32.totalorder %s102, %s104
    %p108 = scmp.eq.s32.totalorder %s26, 0
    %p109 = por %p107, %p108
    %p110 = scmp.ne.s32.totalorder %s102, %s104
    %p111 = scmp.eq.s32.totalorder %s31, 1
    %p112 = por %p110, %p111
    %p113 = scmp.ne.s32.totalorder %s104, %s105
    %p114 = scmp.eq.s32.totalorder %s31, 0
    %p115 = por %p113, %p114
    %p116 = scmp.ne.s32.totalorder %s104, %s105
    %p117 = scmp.eq.s32.totalorder %s32, 1
    %p118 = por %p116, %p117
    %p120 = scmp.ne.s32.totalorder %s105, %s119
    %p121 = scmp.eq.s32.totalorder %s32, 0
    %p122 = por %p120, %p121
    %s124 = sadd.s32 %s123, 1
    %p127 = scmp.eq.s32.totalorder %s26, 1
    %p128 = scmp.ne.s32.totalorder %s123, %s125
    %p129 = scmp.eq.s32.totalorder %s26, 0
    %p130 = por %p128, %p129
    %p131 = scmp.ne.s32.totalorder %s123, %s125
    %p132 = scmp.eq.s32.totalorder %s31, 1
    %p133 = por %p131, %p132
    %p134 = scmp.ne.s32.totalorder %s125, %s126
    %p135 = scmp.eq.s32.totalorder %s31, 0
    %p136 = por %p134, %p135
    %p137 = scmp.ne.s32.totalorder %s125, %s126
    %p138 = scmp.eq.s32.totalorder %s32, 1
    %p139 = por %p137, %p138
    %p141 = scmp.ne.s32.totalorder %s126, %s140
    %p142 = scmp.eq.s32.totalorder %s32, 0
    %p143 = por %p141, %p142
    %s145 = sadd.s32 %s144, 1
    %p148 = scmp.eq.s32.totalorder %s26, 1
    %p149 = scmp.ne.s32.totalorder %s144, %s146
    %p150 = scmp.eq.s32.totalorder %s26, 0
    %p151 = por %p149, %p150
    %p152 = scmp.ne.s32.totalorder %s144, %s146
    %p153 = scmp.eq.s32.totalorder %s31, 1
    %p154 = por %p152, %p153
    %p155 = scmp.ne.s32.totalorder %s146, %s147
    %p156 = scmp.eq.s32.totalorder %s31, 0
    %p157 = por %p155, %p156
    %p158 = scmp.ne.s32.totalorder %s146, %s147
    %p159 = scmp.eq.s32.totalorder %s32, 1
    %p160 = por %p158, %p159
    %p162 = scmp.ne.s32.totalorder %s147, %s161
    %p163 = scmp.eq.s32.totalorder %s32, 0
    %p164 = por %p162, %p163
    %s166 = sadd.s32 %s165, 1
    %p169 = scmp.eq.s32.totalorder %s26, 1
    %p170 = scmp.ne.s32.totalorder %s165, %s167
    %p171 = scmp.eq.s32.totalorder %s26, 0
    %p172 = por %p170, %p171
    %p173 = scmp.ne.s32.totalorder %s165, %s167
    %p174 = scmp.eq.s32.totalorder %s31, 1
    %p175 = por %p173, %p174
    %p176 = scmp.ne.s32.totalorder %s167, %s168
    %p177 = scmp.eq.s32.totalorder %s31, 0
    %p178 = por %p176, %p177
    %p179 = scmp.ne.s32.totalorder %s167, %s168
    %p180 = scmp.eq.s32.totalorder %s32, 1
    %p181 = por %p179, %p180
    %p183 = scmp.ne.s32.totalorder %s168, %s182
    %p184 = scmp.eq.s32.totalorder %s32, 0
    %p185 = por %p183, %p184
    %s187 = sadd.s32 %s186, 1
    %p190 = scmp.eq.s32.totalorder %s26, 1
    %p191 = scmp.ne.s32.totalorder %s186, %s188
    %p192 = scmp.eq.s32.totalorder %s26, 0
    %p193 = por %p191, %p192
    %p194 = scmp.ne.s32.totalorder %s186, %s188
    %p195 = scmp.eq.s32.totalorder %s31, 1
    %p196 = por %p194, %p195
    %p197 = scmp.ne.s32.totalorder %s188, %s189
    %p198 = scmp.eq.s32.totalorder %s31, 0
    %p199 = por %p197, %p198
    %p200 = scmp.ne.s32.totalorder %s188, %s189
    %p201 = scmp.eq.s32.totalorder %s32, 1
    %p202 = por %p200, %p201
    %p204 = scmp.ne.s32.totalorder %s189, %s203
    %p205 = scmp.eq.s32.totalorder %s32, 0
    %p206 = por %p204, %p205
    %s208 = sadd.s32 %s207, 1
    %p211 = scmp.eq.s32.totalorder %s26, 1
    %p212 = scmp.ne.s32.totalorder %s207, %s209
    %p213 = scmp.eq.s32.totalorder %s26, 0
    %p214 = por %p212, %p213
    %p215 = scmp.ne.s32.totalorder %s207, %s209
    %p216 = scmp.eq.s32.totalorder %s31, 1
    %p217 = por %p215, %p216
    %p218 = scmp.ne.s32.totalorder %s209, %s210
    %p219 = scmp.eq.s32.totalorder %s31, 0
    %p220 = por %p218, %p219
    %p221 = scmp.ne.s32.totalorder %s209, %s210
    %p222 = scmp.eq.s32.totalorder %s32, 1
    %p223 = por %p221, %p222
    %p225 = scmp.ne.s32.totalorder %s210, %s224
    %p226 = scmp.eq.s32.totalorder %s32, 0
    %p227 = por %p225, %p226
    %s229 = sadd.s32 %s228, 1
    %p232 = scmp.eq.s32.totalorder %s26, 1
    %p233 = scmp.ne.s32.totalorder %s228, %s230
    %p234 = scmp.eq.s32.totalorder %s26, 0
    %p235 = por %p233, %p234
    %p236 = scmp.ne.s32.totalorder %s228, %s230
    %p237 = scmp.eq.s32.totalorder %s31, 1
    %p238 = por %p236, %p237
    %p239 = scmp.ne.s32.totalorder %s230, %s231
    %p240 = scmp.eq.s32.totalorder %s31, 0
    %p241 = por %p239, %p240
    %p242 = scmp.ne.s32.totalorder %s230, %s231
    %p243 = scmp.eq.s32.totalorder %s32, 1
    %p244 = por %p242, %p243
    %p246 = scmp.ne.s32.totalorder %s231, %s245
    %p247 = scmp.eq.s32.totalorder %s32, 0
    %p248 = por %p246, %p247
    %s250 = sadd.s32 %s249, 1
    %p253 = scmp.eq.s32.totalorder %s26, 1
    %p254 = scmp.ne.s32.totalorder %s249, %s251
    %p255 = scmp.eq.s32.totalorder %s26, 0
    %p256 = por %p254, %p255
    %p257 = scmp.ne.s32.totalorder %s249, %s251
    %p258 = scmp.eq.s32.totalorder %s31, 1
    %p259 = por %p257, %p258
    %p260 = scmp.ne.s32.totalorder %s251, %s252
    %p261 = scmp.eq.s32.totalorder %s31, 0
    %p262 = por %p260, %p261
    %p263 = scmp.ne.s32.totalorder %s251, %s252
    %p264 = scmp.eq.s32.totalorder %s32, 1
    %p265 = por %p263, %p264
    %p267 = scmp.ne.s32.totalorder %s252, %s266
    %p268 = scmp.eq.s32.totalorder %s32, 0
    %p269 = por %p267, %p268
    %s271 = sadd.s32 %s270, 1
    %p274 = scmp.eq.s32.totalorder %s26, 1
    %p275 = scmp.ne.s32.totalorder %s270, %s272
    %p276 = scmp.eq.s32.totalorder %s26, 0
    %p277 = por %p275, %p276
    %p278 = scmp.ne.s32.totalorder %s270, %s272
    %p279 = scmp.eq.s32.totalorder %s31, 1
    %p280 = por %p278, %p279
    %p281 = scmp.ne.s32.totalorder %s272, %s273
    %p282 = scmp.eq.s32.totalorder %s31, 0
    %p283 = por %p281, %p282
    %p284 = scmp.ne.s32.totalorder %s272, %s273
    %p285 = scmp.eq.s32.totalorder %s32, 1
    %p286 = por %p284, %p285
    %p288 = scmp.ne.s32.totalorder %s273, %s287
    %p289 = scmp.eq.s32.totalorder %s32, 0
    %p290 = por %p288, %p289
    %s292 = sadd.s32 %s291, 1
    %p295 = scmp.eq.s32.totalorder %s26, 1
    %p296 = scmp.ne.s32.totalorder %s291, %s293
    %p297 = scmp.eq.s32.totalorder %s26, 0
    %p298 = por %p296, %p297
    %p299 = scmp.ne.s32.totalorder %s291, %s293
    %p300 = scmp.eq.s32.totalorder %s31, 1
    %p301 = por %p299, %p300
    %p302 = scmp.ne.s32.totalorder %s293, %s294
    %p303 = scmp.eq.s32.totalorder %s31, 0
    %p304 = por %p302, %p303
    %p305 = scmp.ne.s32.totalorder %s293, %s294
    %p306 = scmp.eq.s32.totalorder %s32, 1
    %p307 = por %p305, %p306
    %p309 = scmp.ne.s32.totalorder %s294, %s308
    %p310 = scmp.eq.s32.totalorder %s32, 0
    %p311 = por %p309, %p310
    %s313 = sadd.s32 %s312, 1
    %p316 = scmp.eq.s32.totalorder %s26, 1
    %p317 = scmp.ne.s32.totalorder %s312, %s314
    %p318 = scmp.eq.s32.totalorder %s26, 0
    %p319 = por %p317, %p318
    %p320 = scmp.ne.s32.totalorder %s312, %s314
    %p321 = scmp.eq.s32.totalorder %s31, 1
    %p322 = por %p320, %p321
    %p323 = scmp.ne.s32.totalorder %s314, %s315
    %p324 = scmp.eq.s32.totalorder %s31, 0
    %p325 = por %p323, %p324
    %p326 = scmp.ne.s32.totalorder %s314, %s315
    %p327 = scmp.eq.s32.totalorder %s32, 1
    %p328 = por %p326, %p327
    %p330 = scmp.ne.s32.totalorder %s315, %s329
    %p331 = scmp.eq.s32.totalorder %s32, 0
    %p332 = por %p330, %p331
    %s334 = sadd.s32 %s333, 1
    %p337 = scmp.eq.s32.totalorder %s26, 1
    %p338 = scmp.ne.s32.totalorder %s333, %s335
    %p339 = scmp.eq.s32.totalorder %s26, 0
    %p340 = por %p338, %p339
    %p341 = scmp.ne.s32.totalorder %s333, %s335
    %p342 = scmp.eq.s32.totalorder %s31, 1
    %p343 = por %p341, %p342
    %p344 = scmp.ne.s32.totalorder %s335, %s336
    %p345 = scmp.eq.s32.totalorder %s31, 0
    %p346 = por %p344, %p345
    %p347 = scmp.ne.s32.totalorder %s335, %s336
    %p348 = scmp.eq.s32.totalorder %s32, 1
    %p349 = por %p347, %p348
    %p351 = scmp.ne.s32.totalorder %s336, %s350
    %p352 = scmp.eq.s32.totalorder %s32, 0
    %p353 = por %p351, %p352
    %s355 = sadd.s32 %s354, 1
    %p358 = scmp.eq.s32.totalorder %s26, 1
    %p359 = scmp.ne.s32.totalorder %s354, %s356
    %p360 = scmp.eq.s32.totalorder %s26, 0
    %p361 = por %p359, %p360
    %p362 = scmp.ne.s32.totalorder %s354, %s356
    %p363 = scmp.eq.s32.totalorder %s31, 1
    %p364 = por %p362, %p363
    %p365 = scmp.ne.s32.totalorder %s356, %s357
    %p366 = scmp.eq.s32.totalorder %s31, 0
    %p367 = por %p365, %p366
    %p368 = scmp.ne.s32.totalorder %s356, %s357
    %p369 = scmp.eq.s32.totalorder %s32, 1
    %p370 = por %p368, %p369
    %p372 = scmp.ne.s32.totalorder %s357, %s371
    %p373 = scmp.eq.s32.totalorder %s32, 0
    %p374 = por %p372, %p373
    %s375 = ssub.s32 %s26, %s33
    %p376 = scmp.eq.s32.totalorder %s375, 0
    %s378 = sadd.s32 %s377, 1
    %s379 = scalar_select %p376, %s377, %s378
    %p382 = pneg %p376
    %p383 = scmp.eq.s32.totalorder %s26, 1
    %p384 = por %p382, %p383
    %p385 = scmp.ne.s32.totalorder %s377, %s380
    %p386 = scmp.eq.s32.totalorder %s26, 0
    %p387 = por %p385, %p386
    %p388 = scmp.ne.s32.totalorder %s377, %s380
    %p389 = scmp.eq.s32.totalorder %s31, 1
    %p390 = por %p388, %p389
    %p391 = scmp.ne.s32.totalorder %s380, %s381
    %p392 = scmp.eq.s32.totalorder %s31, 0
    %p393 = por %p391, %p392
    %p394 = scmp.ne.s32.totalorder %s380, %s381
    %p395 = scmp.eq.s32.totalorder %s32, 1
    %p396 = por %p394, %p395
    %p398 = scmp.ne.s32.totalorder %s381, %s397
    %p399 = scmp.eq.s32.totalorder %s32, 0
    %p400 = por %p398, %p399
    %s401 = ssub.s32 %s26, %s33
    %p402 = scmp.eq.s32.totalorder %s401, 0
    %s404 = sadd.s32 %s403, 1
    %s405 = scalar_select %p402, %s403, %s404
    %p408 = pneg %p402
    %p409 = scmp.eq.s32.totalorder %s26, 1
    %p410 = por %p408, %p409
    %p411 = scmp.ne.s32.totalorder %s403, %s406
    %p412 = scmp.eq.s32.totalorder %s26, 0
    %p413 = por %p411, %p412
    %p414 = scmp.ne.s32.totalorder %s403, %s406
    %p415 = scmp.eq.s32.totalorder %s31, 1
    %p416 = por %p414, %p415
    %p417 = scmp.ne.s32.totalorder %s406, %s407
    %p418 = scmp.eq.s32.totalorder %s31, 0
    %p419 = por %p417, %p418
    %p420 = scmp.ne.s32.totalorder %s406, %s407
    %p421 = scmp.eq.s32.totalorder %s32, 1
    %p422 = por %p420, %p421
    %p424 = scmp.ne.s32.totalorder %s407, %s423
    %p425 = scmp.eq.s32.totalorder %s32, 0
    %p426 = por %p424, %p425
    %s427 = ssub.s32 %s26, %s33
    %p428 = scmp.eq.s32.totalorder %s427, 0
    %s430 = sadd.s32 %s429, 1
    %s431 = scalar_select %p428, %s429, %s430
    %p434 = pneg %p428
    %p435 = scmp.eq.s32.totalorder %s26, 1
    %p436 = por %p434, %p435
    %p437 = scmp.ne.s32.totalorder %s429, %s432
    %p438 = scmp.eq.s32.totalorder %s26, 0
    %p439 = por %p437, %p438
    %p440 = scmp.ne.s32.totalorder %s429, %s432
    %p441 = scmp.eq.s32.totalorder %s31, 1
    %p442 = por %p440, %p441
    %p443 = scmp.ne.s32.totalorder %s432, %s433
    %p444 = scmp.eq.s32.totalorder %s31, 0
    %p445 = por %p443, %p444
    %p446 = scmp.ne.s32.totalorder %s432, %s433
    %p447 = scmp.eq.s32.totalorder %s32, 1
    %p448 = por %p446, %p447
    %p450 = scmp.ne.s32.totalorder %s433, %s449
    %p451 = scmp.eq.s32.totalorder %s32, 0
    %p452 = por %p450, %p451
    %s453 = ssub.s32 %s26, %s33
    %p454 = scmp.eq.s32.totalorder %s453, 0
    %s456 = sadd.s32 %s455, 1
    %s457 = scalar_select %p454, %s455, %s456
    %p460 = pneg %p454
    %p461 = scmp.eq.s32.totalorder %s26, 1
    %p462 = por %p460, %p461
    %p463 = scmp.ne.s32.totalorder %s455, %s458
    %p464 = scmp.eq.s32.totalorder %s26, 0
    %p465 = por %p463, %p464
    %p466 = scmp.ne.s32.totalorder %s455, %s458
    %p467 = scmp.eq.s32.totalorder %s31, 1
    %p468 = por %p466, %p467
    %p469 = scmp.ne.s32.totalorder %s458, %s459
    %p470 = scmp.eq.s32.totalorder %s31, 0
    %p471 = por %p469, %p470
    %p472 = scmp.ne.s32.totalorder %s458, %s459
    %p473 = scmp.eq.s32.totalorder %s32, 1
    %p474 = por %p472, %p473
    %p476 = scmp.ne.s32.totalorder %s459, %s475
    %p477 = scmp.eq.s32.totalorder %s32, 0
    %p478 = por %p476, %p477
    %p479 = scmp.le.s32.totalorder 1, %s26
    %p480 = scmp.lt.s32.totalorder %s26, 3
    %p481 = pnand %p479, %p480
    %p482 = pneg %p481
    // Predicated region
    $region9: #{unet_encoder_forward.1} parent=5 // pred_check
      _
    $region10: #{unet_encoder_forward.1} parent=5 // pred_check_branch
      %484 = sbr.rel (%p481) target = $region12
    $region11: #{unet_encoder_forward.1} parent=5 // pred_region
      %s485 = ssub.s32 %s26, 1
      // Predicated region
      $region13: #{unet_encoder_forward.1} parent=11 // pred_check
        %p486 = pneg %p73
      $region14: #{unet_encoder_forward.1} parent=11 // pred_check_branch
        %488 = sbr.rel (%p486) target = $region16
      $region15: #{unet_encoder_forward.1} parent=11 // pred_region
        _
      $region16: #{unet_encoder_forward.1} parent=11 // pred_fallthru
        _
      // Predicated region
      $region17: #{unet_encoder_forward.1} parent=11 // pred_check
        %p489 = pneg %p94
      $region18: #{unet_encoder_forward.1} parent=11 // pred_check_branch
        %491 = sbr.rel (%p489) target = $region20
      $region19: #{unet_encoder_forward.1} parent=11 // pred_region
        _
      $region20: #{unet_encoder_forward.1} parent=11 // pred_fallthru
        _
      // Predicated region
      $region21: #{unet_encoder_forward.1} parent=11 // pred_check
        %p492 = pneg %p115
      $region22: #{unet_encoder_forward.1} parent=11 // pred_check_branch
        %494 = sbr.rel (%p492) target = $region24
      $region23: #{unet_encoder_forward.1} parent=11 // pred_region
        _
      $region24: #{unet_encoder_forward.1} parent=11 // pred_fallthru
        _
      // Predicated region
      $region25: #{unet_encoder_forward.1} parent=11 // pred_check
        %p495 = pneg %p136
      $region26: #{unet_encoder_forward.1} parent=11 // pred_check_branch
        %497 = sbr.rel (%p495) target = $region28
      $region27: #{unet_encoder_forward.1} parent=11 // pred_region
        _
      $region28: #{unet_encoder_forward.1} parent=11 // pred_fallthru
        _
      // Predicated region
      $region29: #{unet_encoder_forward.1} parent=11 // pred_check
        %p498 = pneg %p157
      $region30: #{unet_encoder_forward.1} parent=11 // pred_check_branch
        %500 = sbr.rel (%p498) target = $region32
      $region31: #{unet_encoder_forward.1} parent=11 // pred_region
        _
      $region32: #{unet_encoder_forward.1} parent=11 // pred_fallthru
        _
      // Predicated region
      $region33: #{unet_encoder_forward.1} parent=11 // pred_check
        %p501 = pneg %p178
      $region34: #{unet_encoder_forward.1} parent=11 // pred_check_branch
        %503 = sbr.rel (%p501) target = $region36
      $region35: #{unet_encoder_forward.1} parent=11 // pred_region
        _
      $region36: #{unet_encoder_forward.1} parent=11 // pred_fallthru
        _
      // Predicated region
      $region37: #{unet_encoder_forward.1} parent=11 // pred_check
        %p504 = pneg %p199
      $region38: #{unet_encoder_forward.1} parent=11 // pred_check_branch
        %506 = sbr.rel (%p504) target = $region40
      $region39: #{unet_encoder_forward.1} parent=11 // pred_region
        _
      $region40: #{unet_encoder_forward.1} parent=11 // pred_fallthru
        _
      // Predicated region
      $region41: #{unet_encoder_forward.1} parent=11 // pred_check
        %p507 = pneg %p220
      $region42: #{unet_encoder_forward.1} parent=11 // pred_check_branch
        %509 = sbr.rel (%p507) target = $region44
      $region43: #{unet_encoder_forward.1} parent=11 // pred_region
        _
      $region44: #{unet_encoder_forward.1} parent=11 // pred_fallthru
        _
      // Predicated region
      $region45: #{unet_encoder_forward.1} parent=11 // pred_check
        %p510 = pneg %p241
      $region46: #{unet_encoder_forward.1} parent=11 // pred_check_branch
        %512 = sbr.rel (%p510) target = $region48
      $region47: #{unet_encoder_forward.1} parent=11 // pred_region
        _
      $region48: #{unet_encoder_forward.1} parent=11 // pred_fallthru
        _
      // Predicated region
      $region49: #{unet_encoder_forward.1} parent=11 // pred_check
        %p513 = pneg %p262
      $region50: #{unet_encoder_forward.1} parent=11 // pred_check_branch
        %515 = sbr.rel (%p513) target = $region52
      $region51: #{unet_encoder_forward.1} parent=11 // pred_region
        _
      $region52: #{unet_encoder_forward.1} parent=11 // pred_fallthru
        _
      // Predicated region
      $region53: #{unet_encoder_forward.1} parent=11 // pred_check
        %p516 = pneg %p283
      $region54: #{unet_encoder_forward.1} parent=11 // pred_check_branch
        %518 = sbr.rel (%p516) target = $region56
      $region55: #{unet_encoder_forward.1} parent=11 // pred_region
        _
      $region56: #{unet_encoder_forward.1} parent=11 // pred_fallthru
        _
      // Predicated region
      $region57: #{unet_encoder_forward.1} parent=11 // pred_check
        %p519 = pneg %p304
      $region58: #{unet_encoder_forward.1} parent=11 // pred_check_branch
        %521 = sbr.rel (%p519) target = $region60
      $region59: #{unet_encoder_forward.1} parent=11 // pred_region
        _
      $region60: #{unet_encoder_forward.1} parent=11 // pred_fallthru
        _
      // Predicated region
      $region61: #{unet_encoder_forward.1} parent=11 // pred_check
        %p522 = pneg %p325
      $region62: #{unet_encoder_forward.1} parent=11 // pred_check_branch
        %524 = sbr.rel (%p522) target = $region64
      $region63: #{unet_encoder_forward.1} parent=11 // pred_region
        _
      $region64: #{unet_encoder_forward.1} parent=11 // pred_fallthru
        _
      // Predicated region
      $region65: #{unet_encoder_forward.1} parent=11 // pred_check
        %p525 = pneg %p346
      $region66: #{unet_encoder_forward.1} parent=11 // pred_check_branch
        %527 = sbr.rel (%p525) target = $region68
      $region67: #{unet_encoder_forward.1} parent=11 // pred_region
        _
      $region68: #{unet_encoder_forward.1} parent=11 // pred_fallthru
        _
      // Predicated region
      $region69: #{unet_encoder_forward.1} parent=11 // pred_check
        %p528 = pneg %p367
      $region70: #{unet_encoder_forward.1} parent=11 // pred_check_branch
        %530 = sbr.rel (%p528) target = $region72
      $region71: #{unet_encoder_forward.1} parent=11 // pred_region
        _
      $region72: #{unet_encoder_forward.1} parent=11 // pred_fallthru
        _
    $region12: #{unet_encoder_forward.1} parent=5 // pred_fallthru
      _
    %p531 = scmp.lt.s32.totalorder %s26, 2
    // Predicated region
    $region73: #{unet_encoder_forward.1} parent=5 // pred_check
      %p532 = pneg %p531
    $region74: #{unet_encoder_forward.1} parent=5 // pred_check_branch
      %534 = sbr.rel (%p532) target = $region76
    $region75: #{unet_encoder_forward.1} parent=5 // pred_region
      // Predicated region
      $region77: #{unet_encoder_forward.1} parent=75 // pred_check
        %p535 = pneg %p46
      $region78: #{unet_encoder_forward.1} parent=75 // pred_check_branch
        %537 = sbr.rel (%p535) target = $region80
      $region79: #{unet_encoder_forward.1} parent=75 // pred_region
        %p538 = scmp.lt.s32.totalorder %s26, 1
        %s539 = scalar_select %p538, %s26, 1
        %s540 = smul.addr %s539, 2
        %s541 = smul.addr %s540, 8
        %s542 = scalar_lea.vmem %s0, %s541
      $region80: #{unet_encoder_forward.1} parent=75 // pred_fallthru
        _
    $region76: #{unet_encoder_forward.1} parent=5 // pred_fallthru
      _
    %p543 = scmp.le.s32.totalorder 1, %s26
    %p544 = scmp.lt.s32.totalorder %s26, 3
    %p545 = pnand %p543, %p544
    %p546 = pneg %p545
    // Predicated region
    $region81: #{unet_encoder_forward.1} parent=5 // pred_check
      _
    $region82: #{unet_encoder_forward.1} parent=5 // pred_check_branch
      %548 = sbr.rel (%p545) target = $region84
    $region83: #{unet_encoder_forward.1} parent=5 // pred_region
      %s549 = ssub.s32 %s26, 1
      %p550 = scmp.lt.s32.totalorder %s31, 1
      %s551 = scalar_select %p550, %s31, 1
      %s552 = smul.addr %s551, 2
      %s553 = smul.addr %s552, 8
      %s554 = scalar_lea.vmem %s0, %s553
      %p555 = pneg %p52
      %p556 = pneg %p49
      %p557 = pneg %p73
      %p558 = pneg %p70
      %p559 = pneg %p94
      %p560 = pneg %p91
      %p561 = pneg %p115
      %p562 = pneg %p112
      %p563 = pneg %p136
      %p564 = pneg %p133
      %p565 = pneg %p157
      %p566 = pneg %p154
      %p567 = pneg %p178
      %p568 = pneg %p175
      %p569 = pneg %p199
      %p570 = pneg %p196
      %p571 = pneg %p220
      %p572 = pneg %p217
      %p573 = pneg %p241
      %p574 = pneg %p238
      %p575 = pneg %p262
      %p576 = pneg %p259
      %p577 = pneg %p283
      %p578 = pneg %p280
      %p579 = pneg %p304
      %p580 = pneg %p301
      %p581 = pneg %p325
      %p582 = pneg %p322
      %p583 = pneg %p346
      %p584 = pneg %p343
      %p585 = pneg %p367
      %p586 = pneg %p364
      %p587 = pneg %p393
      %p588 = pneg %p390
      %p589 = scmp.lt.s32.totalorder %s31, 1
      %s590 = scalar_select %p589, %s31, 1
      %s591 = smul.addr %s590, 2
      %s592 = smul.addr %s591, 8
      %s593 = scalar_lea.vmem %s16, %s592
      %p594 = pneg %p419
      %p595 = pneg %p416
      %p596 = scmp.lt.s32.totalorder %s31, 1
      %s597 = scalar_select %p596, %s31, 1
      %s598 = smul.addr %s597, 2
      %s599 = smul.addr %s598, 8
      %s600 = scalar_lea.vmem %s17, %s599
      %p601 = pneg %p445
      %p602 = pneg %p442
      %p603 = scmp.lt.s32.totalorder %s31, 1
      %s604 = scalar_select %p603, %s31, 1
      %s605 = smul.addr %s604, 4
      %s606 = smul.addr %s605, 8
      %s607 = scalar_lea.vmem %s18, %s606
      %p608 = pneg %p471
      %p609 = pneg %p468
      %p610 = scmp.lt.s32.totalorder %s31, 1
      %s611 = scalar_select %p610, %s31, 1
      %s612 = smul.addr %s611, 8
      %s613 = smul.addr %s612, 8
      %s614 = scalar_lea.vmem %s19, %s613
      %p615 = scmp.lt.s32.totalorder %s31, 1
      %s616 = scalar_select %p615, %s31, 1
      %s617 = smul.addr %s616, 2
      %s618 = smul.addr %s617, 8
      %s619 = scalar_lea.vmem %s0, %s618
      %p620 = scmp.lt.s32.totalorder %s31, 1
      %s621 = scalar_select %p620, %s31, 1
      %s622 = smul.addr %s621, 2
      %s623 = smul.addr %s622, 8
      %s624 = scalar_lea.vmem %s16, %s623
      %p625 = scmp.lt.s32.totalorder %s31, 1
      %s626 = scalar_select %p625, %s31, 1
      %s627 = smul.addr %s626, 2
      %s628 = smul.addr %s627, 8
      %s629 = scalar_lea.vmem %s17, %s628
      %p630 = scmp.lt.s32.totalorder %s31, 1
      %s631 = scalar_select %p630, %s31, 1
      %s632 = smul.addr %s631, 4
      %s633 = smul.addr %s632, 8
      %s634 = scalar_lea.vmem %s18, %s633
      %p635 = scmp.lt.s32.totalorder %s31, 1
      %s636 = scalar_select %p635, %s31, 1
      %s637 = smul.addr %s636, 8
      %s638 = smul.addr %s637, 8
      %s639 = scalar_lea.vmem %s19, %s638
      %v641 = vld [vmem:[%s619] sm:$0xff]
      %v642 = vld [vmem:[%s619 + $0x8] sm:$0xff]
      %v643 = vld [vmem:[%s1] sm:$0xf]
      %645 = vrot.lane.b32.xlu0 %v642, 17
      %v646 = vpop.permute.xlu0 %645
      %649 = vrot.lane.b32.xlu0 %v641, 17
      %v650 = vpop.permute.xlu0 %649
      %vm651 = vcmask 138240
      %v652 = vsel %vm651, %v650, %v646
      %v655 = vsel %vm651, %v646, %v650
      %v656 = vld [vmem:[%s3] ss:$8 sm:$0x3]
      %v658 = vlaneseq
      %v659 = vshrl.u32 %v658, 7
      %v660 = vsub.s32 0, %v659
      %v661 = vrot.slane %v656, %v660
      %v662 = vlaneseq
      %v663 = vshrl.u32 %v662, 7
      %v664 = vsub.s32 1, %v663
      %v665 = vrot.slane %v656, %v664
      %v668 = vmul.f32 %v655, %v661
      %v669 = vmul.f32 %v652, %v665
      %670 = vrot.lane.b32.xlu0 %v642, 16
      %v671 = vpop.permute.xlu0 %670
      %673 = vrot.lane.b32.xlu0 %v641, 16
      %v674 = vpop.permute.xlu0 %673
      %vm675 = vcmask 130048
      %v676 = vsel %vm675, %v674, %v671
      %v679 = vsel %vm675, %v671, %v674
      %s680 = scalar_lea.vmem %s3, 1
      %v681 = vld [vmem:[%s680] ss:$8 sm:$0x3]
      %v683 = vlaneseq
      %v684 = vshrl.u32 %v683, 7
      %v685 = vsub.s32 0, %v684
      %v686 = vrot.slane %v681, %v685
      %v687 = vlaneseq
      %v688 = vshrl.u32 %v687, 7
      %v689 = vsub.s32 1, %v688
      %v690 = vrot.slane %v681, %v689
      %v693 = vmul.f32 %v679, %v686
      %v694 = vmul.f32 %v676, %v690
      %695 = vrot.lane.b32.xlu0 %v642, 15
      %v696 = vpop.permute.xlu0 %695
      %698 = vrot.lane.b32.xlu0 %v641, 15
      %v699 = vpop.permute.xlu0 %698
      %vm700 = vcmask 121856
      %v701 = vsel %vm700, %v699, %v696
      %v704 = vsel %vm700, %v696, %v699
      %s705 = scalar_lea.vmem %s3, 2
      %v706 = vld [vmem:[%s705] ss:$8 sm:$0x3]
      %v708 = vlaneseq
      %v709 = vshrl.u32 %v708, 7
      %v710 = vsub.s32 0, %v709
      %v711 = vrot.slane %v706, %v710
      %v712 = vlaneseq
      %v713 = vshrl.u32 %v712, 7
      %v714 = vsub.s32 1, %v713
      %v715 = vrot.slane %v706, %v714
      %v718 = vmul.f32 %v704, %v711
      %v719 = vmul.f32 %v701, %v715
      %720 = vrot.lane.b32.xlu0 %v642, 1
      %v721 = vpop.permute.xlu0 %720
      %723 = vrot.lane.b32.xlu0 %v641, 1
      %v724 = vpop.permute.xlu0 %723
      %vm725 = vcmask 7168
      %v726 = vsel %vm725, %v724, %v721
      %v729 = vsel %vm725, %v721, %v724
      %s730 = scalar_lea.vmem %s3, 3
      %v731 = vld [vmem:[%s730] ss:$8 sm:$0x3]
      %v733 = vlaneseq
      %v734 = vshrl.u32 %v733, 7
      %v735 = vsub.s32 0, %v734
      %v736 = vrot.slane %v731, %v735
      %v737 = vlaneseq
      %v738 = vshrl.u32 %v737, 7
      %v739 = vsub.s32 1, %v738
      %v740 = vrot.slane %v731, %v739
      %v743 = vmul.f32 %v729, %v736
      %v744 = vmul.f32 %v726, %v740
      %745 = vrot.lane.b32.xlu0 %v641, 127
      %v746 = vpop.permute.xlu0 %745
      %747 = vrot.lane.b32.xlu0 %v642, 127
      %v748 = vpop.permute.xlu0 %747
      %vm749 = vcmask 1039360
      %v750 = vsel %vm749, %v746, %v748
      %v754 = vsel %vm749, %v748, %v746
      %s755 = scalar_lea.vmem %s3, 5
      %v756 = vld [vmem:[%s755] ss:$8 sm:$0x3]
      %v758 = vlaneseq
      %v759 = vshrl.u32 %v758, 7
      %v760 = vsub.s32 0, %v759
      %v761 = vrot.slane %v756, %v760
      %v762 = vlaneseq
      %v763 = vshrl.u32 %v762, 7
      %v764 = vsub.s32 1, %v763
      %v765 = vrot.slane %v756, %v764
      %v768 = vmul.f32 %v750, %v761
      %v769 = vmul.f32 %v754, %v765
      %770 = vrot.lane.b32.xlu0 %v641, 113
      %v771 = vpop.permute.xlu0 %770
      %772 = vrot.lane.b32.xlu0 %v642, 113
      %v773 = vpop.permute.xlu0 %772
      %vm774 = vcmask 924672
      %v775 = vsel %vm774, %v771, %v773
      %v779 = vsel %vm774, %v773, %v771
      %s780 = scalar_lea.vmem %s3, 6
      %v781 = vld [vmem:[%s780] ss:$8 sm:$0x3]
      %v783 = vlaneseq
      %v784 = vshrl.u32 %v783, 7
      %v785 = vsub.s32 0, %v784
      %v786 = vrot.slane %v781, %v785
      %v787 = vlaneseq
      %v788 = vshrl.u32 %v787, 7
      %v789 = vsub.s32 1, %v788
      %v790 = vrot.slane %v781, %v789
      %v793 = vmul.f32 %v775, %v786
      %v794 = vmul.f32 %v779, %v790
      %795 = vrot.lane.b32.xlu0 %v641, 112
      %v796 = vpop.permute.xlu0 %795
      %797 = vrot.lane.b32.xlu0 %v642, 112
      %v798 = vpop.permute.xlu0 %797
      %vm799 = vcmask 916480
      %v800 = vsel %vm799, %v796, %v798
      %v804 = vsel %vm799, %v798, %v796
      %s805 = scalar_lea.vmem %s3, 7
      %v806 = vld [vmem:[%s805] ss:$8 sm:$0x3]
      %v808 = vlaneseq
      %v809 = vshrl.u32 %v808, 7
      %v810 = vsub.s32 0, %v809
      %v811 = vrot.slane %v806, %v810
      %v812 = vlaneseq
      %v813 = vshrl.u32 %v812, 7
      %v814 = vsub.s32 1, %v813
      %v815 = vrot.slane %v806, %v814
      %v818 = vmul.f32 %v800, %v811
      %v819 = vmul.f32 %v804, %v815
      %820 = vrot.lane.b32.xlu0 %v641, 111
      %v821 = vpop.permute.xlu0 %820
      %822 = vrot.lane.b32.xlu0 %v642, 111
      %v823 = vpop.permute.xlu0 %822
      %vm824 = vcmask 908288
      %v825 = vsel %vm824, %v821, %v823
      %v829 = vsel %vm824, %v823, %v821
      %s830 = scalar_lea.vmem %s3, 16
      %v831 = vld [vmem:[%s830] ss:$8 sm:$0x3]
      %v833 = vlaneseq
      %v834 = vshrl.u32 %v833, 7
      %v835 = vsub.s32 0, %v834
      %v836 = vrot.slane %v831, %v835
      %v837 = vlaneseq
      %v838 = vshrl.u32 %v837, 7
      %v839 = vsub.s32 1, %v838
      %v840 = vrot.slane %v831, %v839
      %v843 = vmul.f32 %v825, %v836
      %v844 = vmul.f32 %v829, %v840
      %v845 = vpack.c.bf16 %v693, %v668
      %v846 = vpack.c.bf16 %v694, %v669
      %v847 = vpack.c.bf16 %v743, %v718
      %v848 = vpack.c.bf16 %v744, %v719
      %v849 = vpack.c.bf16 %v768, %v641
      %v850 = vpack.c.bf16 %v769, %v642
      %v851 = vpack.c.bf16 %v818, %v793
      %v852 = vpack.c.bf16 %v819, %v794
      %v853 = vpack.c.bf16 %v843, %v843
      %v854 = vpack.c.bf16 %v844, %v844
      %vm855 = vcmask 588800
      %v857 = vsel %vm855, %v643, 0
      %vm859 = vcmask 1043456
      %v861 = vsel %vm859, %v853, 0
      %v864 = vsel %vm859, %v854, 0
      %866 = vmatprep.subr.bf16.mxu0 %v846
      %867 = vmatpush1.bf16.msra.mxu0 %v845
      %868 = vmatprep.subr.bf16.mxu0 %v848
      %869 = vmatpush1.bf16.msra.mxu0 %v847
      %870 = vmatprep.subr.bf16.mxu0 %v850
      %871 = vmatpush1.bf16.msra.mxu0 %v849
      %872 = vmatprep.subr.bf16.mxu0 %v852
      %873 = vmatpush1.bf16.msra.mxu0 %v851
      %874 = vmatprep.subr.bf16.mxu0 %v864
      %875 = vmatpush1.bf16.msra.mxu0 %v861
      %876 = vmatprep.subr.bf16.mxu0 0
      %877 = vmatpush1.bf16.msra.mxu0 0
      %878 = vmatprep.subr.bf16.mxu0 0
      %879 = vmatpush1.bf16.msra.mxu0 0
      %880 = vmatprep.subr.bf16.mxu0 0
      %881 = vmatpush1.bf16.msra.mxu0 0
      %882 = vmatprep.subr.bf16.mxu0 0
      %883 = vmatpush1.bf16.msra.mxu0 0
      %884 = vmatprep.subr.bf16.mxu0 0
      %885 = vmatpush1.bf16.msra.mxu0 0
      %886 = vmatprep.subr.bf16.mxu0 0
      %887 = vmatpush1.bf16.msra.mxu0 0
      %888 = vmatprep.subr.bf16.mxu0 0
      %889 = vmatpush1.bf16.msra.mxu0 0
      %890 = vmatprep.subr.bf16.mxu0 0
      %891 = vmatpush1.bf16.msra.mxu0 0
      %892 = vmatprep.subr.bf16.mxu0 0
      %893 = vmatpush1.bf16.msra.mxu0 0
      %894 = vmatprep.subr.bf16.mxu0 0
      %895 = vmatpush1.bf16.msra.mxu0 0
      %896 = vmatprep.subr.bf16.mxu0 0
      %897 = vmatpush1.bf16.msra.mxu0 0
      %898 = vmatprep.mubr.bf16.mxu0 0
      %899 = vmatmul.mubr.bf16.gmra.mrb[0].mxu0 %v857
      %v900 = vpop.f32.mrb[0].mxu0
      %v901 = vadd.f32 0.0, %v900
      %v902 = vpop.f32.mrb[0].mxu0
      %v903 = vadd.f32 0.0, %v902
      %v904 = vpop.f32.mrb[0].mxu0
      %v905 = vpop.f32.mrb[0].mxu0
      %906 = vdwg.mxu0
      %v907 = vadd.f32 %v901, %v903
      %908 = vadd.xlane.f32.xlu0 %v907
      %v909 = vpop.xlane.xlu0 %908
      %v910 = vmul.f32 %v909, 0.00390625
      %v911 = vmul.f32 %v901, %v901
      %v912 = vmul.f32 %v903, %v903
      %v913 = vadd.f32 %v911, %v912
      %914 = vadd.xlane.f32.xlu0 %v913
      %v915 = vpop.xlane.xlu0 %914
      %v916 = vmul.f32 %v915, 0.00390625
      %v917 = vmul.f32 %v910, %v910
      %v918 = vsub.f32 %v916, %v917
      %v919 = vsub.f32 %v901, %v910
      %v920 = vsub.f32 %v903, %v910
      %v921 = vmax.f32 %v918, 0.0
      %v922 = vadd.f32 %v921, 1e-05
      %v923 = vrsqrt.pop %v922
      %v924 = vmul.f32 %v919, %v923
      %v925 = vmul.f32 %v920, %v923
      %v926 = vmul.f32 %v924, 0.01
      %v927 = vmul.f32 %v925, 0.01
      %v928 = vmax.f32 %v924, %v926
      %v929 = vmax.f32 %v925, %v927
      %v930 = vld [vmem:[%s2] sm:$0xf]
      %932 = vrot.lane.b32.xlu0 %v929, 17
      %v933 = vpop.permute.xlu0 %932
      %936 = vrot.lane.b32.xlu0 %v928, 17
      %v937 = vpop.permute.xlu0 %936
      %v938 = vsel %vm651, %v937, %v933
      %v941 = vsel %vm651, %v933, %v937
      %v942 = vmul.f32 %v941, %v661
      %v943 = vmul.f32 %v938, %v665
      %944 = vrot.lane.b32.xlu0 %v929, 16
      %v945 = vpop.permute.xlu0 %944
      %947 = vrot.lane.b32.xlu0 %v928, 16
      %v948 = vpop.permute.xlu0 %947
      %v949 = vsel %vm675, %v948, %v945
      %v952 = vsel %vm675, %v945, %v948
      %v953 = vmul.f32 %v952, %v686
      %v954 = vmul.f32 %v949, %v690
      %955 = vrot.lane.b32.xlu0 %v929, 15
      %v956 = vpop.permute.xlu0 %955
      %958 = vrot.lane.b32.xlu0 %v928, 15
      %v959 = vpop.permute.xlu0 %958
      %v960 = vsel %vm700, %v959, %v956
      %v963 = vsel %vm700, %v956, %v959
      %v964 = vmul.f32 %v963, %v711
      %v965 = vmul.f32 %v960, %v715
      %966 = vrot.lane.b32.xlu0 %v929, 1
      %v967 = vpop.permute.xlu0 %966
      %969 = vrot.lane.b32.xlu0 %v928, 1
      %v970 = vpop.permute.xlu0 %969
      %v971 = vsel %vm725, %v970, %v967
      %v974 = vsel %vm725, %v967, %v970
      %v975 = vmul.f32 %v974, %v736
      %v976 = vmul.f32 %v971, %v740
      %977 = vrot.lane.b32.xlu0 %v928, 127
      %v978 = vpop.permute.xlu0 %977
      %979 = vrot.lane.b32.xlu0 %v929, 127
      %v980 = vpop.permute.xlu0 %979
      %v981 = vsel %vm749, %v978, %v980
      %v985 = vsel %vm749, %v980, %v978
      %v986 = vmul.f32 %v981, %v761
      %v987 = vmul.f32 %v985, %v765
      %988 = vrot.lane.b32.xlu0 %v928, 113
      %v989 = vpop.permute.xlu0 %988
      %990 = vrot.lane.b32.xlu0 %v929, 113
      %v991 = vpop.permute.xlu0 %990
      %v992 = vsel %vm774, %v989, %v991
      %v996 = vsel %vm774, %v991, %v989
      %v997 = vmul.f32 %v992, %v786
      %v998 = vmul.f32 %v996, %v790
      %999 = vrot.lane.b32.xlu0 %v928, 112
      %v1000 = vpop.permute.xlu0 %999
      %1001 = vrot.lane.b32.xlu0 %v929, 112
      %v1002 = vpop.permute.xlu0 %1001
      %v1003 = vsel %vm799, %v1000, %v1002
      %v1007 = vsel %vm799, %v1002, %v1000
      %v1008 = vmul.f32 %v1003, %v811
      %v1009 = vmul.f32 %v1007, %v815
      %1010 = vrot.lane.b32.xlu0 %v928, 111
      %v1011 = vpop.permute.xlu0 %1010
      %1012 = vrot.lane.b32.xlu0 %v929, 111
      %v1013 = vpop.permute.xlu0 %1012
      %v1014 = vsel %vm824, %v1011, %v1013
      %v1018 = vsel %vm824, %v1013, %v1011
      %v1019 = vmul.f32 %v1014, %v836
      %v1020 = vmul.f32 %v1018, %v840
      %v1021 = vpack.c.bf16 %v953, %v942
      %v1022 = vpack.c.bf16 %v954, %v943
      %v1023 = vpack.c.bf16 %v975, %v964
      %v1024 = vpack.c.bf16 %v976, %v965
      %v1025 = vpack.c.bf16 %v986, %v928
      %v1026 = vpack.c.bf16 %v987, %v929
      %v1027 = vpack.c.bf16 %v1008, %v997
      %v1028 = vpack.c.bf16 %v1009, %v998
      %v1029 = vpack.c.bf16 %v1019, %v1019
      %v1030 = vpack.c.bf16 %v1020, %v1020
      %v1032 = vsel %vm855, %v930, 0
      %v1035 = vsel %vm859, %v1029, 0
      %v1038 = vsel %vm859, %v1030, 0
      %1040 = vmatprep.subr.bf16.mxu0 %v1022
      %1041 = vmatpush1.bf16.msra.mxu0 %v1021
      %1042 = vmatprep.subr.bf16.mxu0 %v1024
      %1043 = vmatpush1.bf16.msra.mxu0 %v1023
      %1044 = vmatprep.subr.bf16.mxu0 %v1026
      %1045 = vmatpush1.bf16.msra.mxu0 %v1025
      %1046 = vmatprep.subr.bf16.mxu0 %v1028
      %1047 = vmatpush1.bf16.msra.mxu0 %v1027
      %1048 = vmatprep.subr.bf16.mxu0 %v1038
      %1049 = vmatpush1.bf16.msra.mxu0 %v1035
      %1050 = vmatprep.subr.bf16.mxu0 0
      %1051 = vmatpush1.bf16.msra.mxu0 0
      %1052 = vmatprep.subr.bf16.mxu0 0
      %1053 = vmatpush1.bf16.msra.mxu0 0
      %1054 = vmatprep.subr.bf16.mxu0 0
      %1055 = vmatpush1.bf16.msra.mxu0 0
      %1056 = vmatprep.subr.bf16.mxu0 0
      %1057 = vmatpush1.bf16.msra.mxu0 0
      %1058 = vmatprep.subr.bf16.mxu0 0
      %1059 = vmatpush1.bf16.msra.mxu0 0
      %1060 = vmatprep.subr.bf16.mxu0 0
      %1061 = vmatpush1.bf16.msra.mxu0 0
      %1062 = vmatprep.subr.bf16.mxu0 0
      %1063 = vmatpush1.bf16.msra.mxu0 0
      %1064 = vmatprep.subr.bf16.mxu0 0
      %1065 = vmatpush1.bf16.msra.mxu0 0
      %1066 = vmatprep.subr.bf16.mxu0 0
      %1067 = vmatpush1.bf16.msra.mxu0 0
      %1068 = vmatprep.subr.bf16.mxu0 0
      %1069 = vmatpush1.bf16.msra.mxu0 0
      %1070 = vmatprep.subr.bf16.mxu0 0
      %1071 = vmatpush1.bf16.msra.mxu0 0
      %1072 = vmatprep.mubr.bf16.mxu0 0
      %1073 = vmatmul.mubr.bf16.gmra.mrb[0].mxu0 %v1032
      %v1074 = vpop.f32.mrb[0].mxu0
      %v1075 = vadd.f32 0.0, %v1074
      %v1076 = vpop.f32.mrb[0].mxu0
      %v1077 = vadd.f32 0.0, %v1076
      %v1078 = vpop.f32.mrb[0].mxu0
      %v1079 = vpop.f32.mrb[0].mxu0
      %1080 = vdwg.mxu0
      %v1081 = vadd.f32 %v1075, %v1077
      %1082 = vadd.xlane.f32.xlu0 %v1081
      %v1083 = vpop.xlane.xlu0 %1082
      %v1084 = vmul.f32 %v1083, 0.00390625
      %v1085 = vmul.f32 %v1075, %v1075
      %v1086 = vmul.f32 %v1077, %v1077
      %v1087 = vadd.f32 %v1085, %v1086
      %1088 = vadd.xlane.f32.xlu0 %v1087
      %v1089 = vpop.xlane.xlu0 %1088
      %v1090 = vmul.f32 %v1089, 0.00390625
      %v1091 = vmul.f32 %v1084, %v1084
      %v1092 = vsub.f32 %v1090, %v1091
      %v1093 = vsub.f32 %v1075, %v1084
      %v1094 = vsub.f32 %v1077, %v1084
      %v1095 = vmax.f32 %v1092, 0.0
      %v1096 = vadd.f32 %v1095, 1e-05
      %v1097 = vrsqrt.pop %v1096
      %v1098 = vmul.f32 %v1093, %v1097
      %v1099 = vmul.f32 %v1094, %v1097
      %v1100 = vmul.f32 %v1098, 0.01
      %v1101 = vmul.f32 %v1099, 0.01
      %v1102 = vmax.f32 %v1098, %v1100
      %v1103 = vmax.f32 %v1099, %v1101
      %1104 = vst [vmem:[%s624] sm:$0xff] %v1102
      %1105 = vst [vmem:[%s624 + $0x8] sm:$0xff] %v1103
      %v1106 = vld [vmem:[%s4] sm:$0xff]
      %v1107 = vld [vmem:[%s4 + $0x8] sm:$0xff]
      %v1108 = vld [vmem:[%s4 + $0x10] sm:$0xff]
      %v1109 = vld [vmem:[%s4 + $0x18] sm:$0xff]
      %v1110 = vld [vmem:[%s4 + $0x20] sm:$0xff]
      %v1111 = vld [vmem:[%s4 + $0x28] sm:$0xff]
      %v1112 = vld [vmem:[%s4 + $0x30] sm:$0xff]
      %v1113 = vld [vmem:[%s4 + $0x38] sm:$0xff]
      %v1114 = vld [vmem:[%s4 + $0x40] sm:$0xff]
      %v1115 = vld [vmem:[%s4 + $0x48] sm:$0xff]
      %v1116 = vld [vmem:[%s4 + $0x50] sm:$0xff]
      %v1117 = vld [vmem:[%s4 + $0x58] sm:$0xff]
      %v1118 = vld [vmem:[%s4 + $0x60] sm:$0xff]
      %v1119 = vld [vmem:[%s4 + $0x68] sm:$0xff]
      %v1120 = vld [vmem:[%s4 + $0x70] sm:$0xff]
      %v1121 = vld [vmem:[%s4 + $0x78] sm:$0xff]
      %v1122 = vld [vmem:[%s4 + $0x80] sm:$0xff]
      %v1123 = vld [vmem:[%s4 + $0x88] sm:$0xff]
      %v1124 = vld [vmem:[%s4 + $0x90] sm:$0xff]
      %v1125 = vld [vmem:[%s4 + $0x98] sm:$0xff]
      %v1126 = vld [vmem:[%s4 + $0xa0] sm:$0xff]
      %v1127 = vld [vmem:[%s4 + $0xa8] sm:$0xff]
      %v1128 = vld [vmem:[%s4 + $0xb0] sm:$0xff]
      %v1129 = vld [vmem:[%s4 + $0xb8] sm:$0xff]
      %v1130 = vld [vmem:[%s4 + $0xc0] sm:$0xff]
      %v1131 = vld [vmem:[%s4 + $0xc8] sm:$0xff]
      %v1132 = vld [vmem:[%s4 + $0xd0] sm:$0xff]
      %v1133 = vld [vmem:[%s4 + $0xd8] sm:$0xff]
      %v1134 = vld [vmem:[%s4 + $0xe0] sm:$0xff]
      %v1135 = vld [vmem:[%s4 + $0xe8] sm:$0xff]
      %v1136 = vld [vmem:[%s4 + $0xf0] sm:$0xff]
      %v1137 = vld [vmem:[%s4 + $0xf8] sm:$0xff]
      %1140 = vrot.lane.b32.xlu0 %v1102, 127
      %v1141 = vpop.permute.xlu0 %1140
      %1142 = vrot.lane.b32.xlu0 %v1103, 127
      %v1143 = vpop.permute.xlu0 %1142
      %v1144 = vsel %vm749, %v1141, %v1143
      %v1148 = vsel %vm749, %v1143, %v1141
      %v1149 = vmax.f32 %v1102, %v1144
      %v1150 = vmax.f32 %v1103, %v1148
      %1153 = vrot.lane.b32.xlu0 %v1149, 112
      %v1154 = vpop.permute.xlu0 %1153
      %1155 = vrot.lane.b32.xlu0 %v1150, 112
      %v1156 = vpop.permute.xlu0 %1155
      %v1157 = vsel %vm799, %v1154, %v1156
      %v1161 = vsel %vm799, %v1156, %v1154
      %v1162 = vmax.f32 %v1149, %v1157
      %v1163 = vmax.f32 %v1150, %v1161
      %1164 = vmatprep.subr.mxu0 0.0
      %1165 = vmatpush1.msra.mxu0 %v1106
      %1166 = vmatprep.subr.mxu0 0.0
      %1167 = vmatpush1.msra.mxu0 %v1107
      %1168 = vmatprep.subr.mxu0 0.0
      %1169 = vmatpush1.msra.mxu0 %v1108
      %1170 = vmatprep.subr.mxu0 0.0
      %1171 = vmatpush1.msra.mxu0 %v1109
      %1172 = vmatprep.subr.mxu0 0.0
      %1173 = vmatpush1.msra.mxu0 %v1110
      %1174 = vmatprep.subr.mxu0 0.0
      %1175 = vmatpush1.msra.mxu0 %v1111
      %1176 = vmatprep.subr.mxu0 0.0
      %1177 = vmatpush1.msra.mxu0 %v1112
      %1178 = vmatprep.subr.mxu0 0.0
      %1179 = vmatpush1.msra.mxu0 %v1113
      %1180 = vmatprep.subr.mxu0 0.0
      %1181 = vmatpush1.msra.mxu0 %v1114
      %1182 = vmatprep.subr.mxu0 0.0
      %1183 = vmatpush1.msra.mxu0 %v1115
      %1184 = vmatprep.subr.mxu0 0.0
      %1185 = vmatpush1.msra.mxu0 %v1116
      %1186 = vmatprep.subr.mxu0 0.0
      %1187 = vmatpush1.msra.mxu0 %v1117
      %1188 = vmatprep.subr.mxu0 0.0
      %1189 = vmatpush1.msra.mxu0 %v1118
      %1190 = vmatprep.subr.mxu0 0.0
      %1191 = vmatpush1.msra.mxu0 %v1119
      %1192 = vmatprep.subr.mxu0 0.0
      %1193 = vmatpush1.msra.mxu0 %v1120
      %1194 = vmatprep.subr.mxu0 0.0
      %1195 = vmatpush1.msra.mxu0 %v1121
      %1196 = vmatprep.subr.mxu0 0.0
      %1197 = vmatpush1.msra.mxu0 %v1122
      %1198 = vmatprep.subr.mxu0 0.0
      %1199 = vmatpush1.msra.mxu0 %v1123
      %1200 = vmatprep.subr.mxu0 0.0
      %1201 = vmatpush1.msra.mxu0 %v1124
      %1202 = vmatprep.subr.mxu0 0.0
      %1203 = vmatpush1.msra.mxu0 %v1125
      %1204 = vmatprep.subr.mxu0 0.0
      %1205 = vmatpush1.msra.mxu0 %v1126
      %1206 = vmatprep.subr.mxu0 0.0
      %1207 = vmatpush1.msra.mxu0 %v1127
      %1208 = vmatprep.subr.mxu0 0.0
      %1209 = vmatpush1.msra.mxu0 %v1128
      %1210 = vmatprep.subr.mxu0 0.0
      %1211 = vmatpush1.msra.mxu0 %v1129
      %1212 = vmatprep.subr.mxu0 0.0
      %1213 = vmatpush1.msra.mxu0 %v1130
      %1214 = vmatprep.subr.mxu0 0.0
      %1215 = vmatpush1.msra.mxu0 %v1131
      %1216 = vmatprep.subr.mxu0 0.0
      %1217 = vmatpush1.msra.mxu0 %v1132
      %1218 = vmatprep.subr.mxu0 0.0
      %1219 = vmatpush1.msra.mxu0 %v1133
      %1220 = vmatprep.subr.mxu0 0.0
      %1221 = vmatpush1.msra.mxu0 %v1134
      %1222 = vmatprep.subr.mxu0 0.0
      %1223 = vmatpush1.msra.mxu0 %v1135
      %1224 = vmatprep.subr.mxu0 0.0
      %1225 = vmatpush1.msra.mxu0 %v1136
      %1226 = vmatprep.subr.mxu0 0.0
      %1227 = vmatpush1.msra.mxu0 %v1137
      %1228 = vmatprep.mubr.f32.mxu0 %v1163
      %1229 = vmatmul.mubr.f32.gmra.mrb[0].mxu0 %v1162
      %v1230 = vpop.f32.mrb[0].mxu0
      %v1231 = vadd.f32 0.0, %v1230
      %v1232 = vpop.f32.mrb[0].mxu0
      %1233 = vdwg.mxu0
      %v1234 = vld [vmem:[%s5] sm:$0xf]
      %v1235 = vld [vmem:[%s5 + $0x4] sm:$0xf]
      %1237 = vrot.lane.b32.xlu0 %v1231, 73
      %v1238 = vpop.permute.xlu0 %1237
      %1240 = vrot.lane.b32.xlu0 %v1231, 9
      %v1241 = vpop.permute.xlu0 %1240
      %vm1243 = vcmask 72704
      %v1244 = vsel %vm1243, %v1238, %v1241
      %v1245 = vld [vmem:[%s7] sm:$0x1]
      %v1246 = vlaneseq
      %v1247 = vshrl.u32 %v1246, 7
      %v1248 = vsub.s32 0, %v1247
      %v1249 = vrot.slane %v1245, %v1248
      %v1250 = vmul.f32 %v1244, %v1249
      %1251 = vrot.lane.b32.xlu0 %v1231, 72
      %v1252 = vpop.permute.xlu0 %1251
      %1254 = vrot.lane.b32.xlu0 %v1231, 8
      %v1255 = vpop.permute.xlu0 %1254
      %vm1257 = vcmask 64512
      %v1258 = vsel %vm1257, %v1252, %v1255
      %v1259 = vld [vmem:[%s7 + $0x1] sm:$0x1]
      %v1260 = vlaneseq
      %v1261 = vshrl.u32 %v1260, 7
      %v1262 = vsub.s32 0, %v1261
      %v1263 = vrot.slane %v1259, %v1262
      %v1264 = vmul.f32 %v1258, %v1263
      %1265 = vrot.lane.b32.xlu0 %v1231, 71
      %v1266 = vpop.permute.xlu0 %1265
      %1268 = vrot.lane.b32.xlu0 %v1231, 7
      %v1269 = vpop.permute.xlu0 %1268
      %vm1271 = vcmask 56320
      %v1272 = vsel %vm1271, %v1266, %v1269
      %v1273 = vld [vmem:[%s7 + $0x2] sm:$0x1]
      %v1274 = vlaneseq
      %v1275 = vshrl.u32 %v1274, 7
      %v1276 = vsub.s32 0, %v1275
      %v1277 = vrot.slane %v1273, %v1276
      %v1278 = vmul.f32 %v1272, %v1277
      %1279 = vrot.lane.b32.xlu0 %v1231, 65
      %v1280 = vpop.permute.xlu0 %1279
      %1282 = vrot.lane.b32.xlu0 %v1231, 1
      %v1283 = vpop.permute.xlu0 %1282
      %v1285 = vsel %vm725, %v1280, %v1283
      %v1286 = vld [vmem:[%s7 + $0x3] sm:$0x1]
      %v1287 = vlaneseq
      %v1288 = vshrl.u32 %v1287, 7
      %v1289 = vsub.s32 0, %v1288
      %v1290 = vrot.slane %v1286, %v1289
      %v1291 = vmul.f32 %v1285, %v1290
      %1292 = vrot.lane.b32.xlu0 %v1231, 127
      %v1293 = vpop.permute.xlu0 %1292
      %1295 = vrot.lane.b32.xlu0 %v1231, 63
      %v1296 = vpop.permute.xlu0 %1295
      %vm1298 = vcmask 515072
      %v1299 = vsel %vm1298, %v1293, %v1296
      %v1300 = vld [vmem:[%s7 + $0x5] sm:$0x1]
      %v1301 = vlaneseq
      %v1302 = vshrl.u32 %v1301, 7
      %v1303 = vsub.s32 0, %v1302
      %v1304 = vrot.slane %v1300, %v1303
      %v1305 = vmul.f32 %v1299, %v1304
      %1306 = vrot.lane.b32.xlu0 %v1231, 121
      %v1307 = vpop.permute.xlu0 %1306
      %1309 = vrot.lane.b32.xlu0 %v1231, 57
      %v1310 = vpop.permute.xlu0 %1309
      %vm1312 = vcmask 465920
      %v1313 = vsel %vm1312, %v1307, %v1310
      %v1314 = vld [vmem:[%s7 + $0x6] sm:$0x1]
      %v1315 = vlaneseq
      %v1316 = vshrl.u32 %v1315, 7
      %v1317 = vsub.s32 0, %v1316
      %v1318 = vrot.slane %v1314, %v1317
      %v1319 = vmul.f32 %v1313, %v1318
      %1320 = vrot.lane.b32.xlu0 %v1231, 120
      %v1321 = vpop.permute.xlu0 %1320
      %1323 = vrot.lane.b32.xlu0 %v1231, 56
      %v1324 = vpop.permute.xlu0 %1323
      %vm1326 = vcmask 457728
      %v1327 = vsel %vm1326, %v1321, %v1324
      %v1328 = vld [vmem:[%s7 + $0x7] sm:$0x1]
      %v1329 = vlaneseq
      %v1330 = vshrl.u32 %v1329, 7
      %v1331 = vsub.s32 0, %v1330
      %v1332 = vrot.slane %v1328, %v1331
      %v1333 = vmul.f32 %v1327, %v1332
      %1334 = vrot.lane.b32.xlu0 %v1231, 119
      %v1335 = vpop.permute.xlu0 %1334
      %1337 = vrot.lane.b32.xlu0 %v1231, 55
      %v1338 = vpop.permute.xlu0 %1337
      %vm1340 = vcmask 449536
      %v1341 = vsel %vm1340, %v1335, %v1338
      %v1342 = vld [vmem:[%s7 + $0x8] sm:$0x1]
      %v1343 = vlaneseq
      %v1344 = vshrl.u32 %v1343, 7
      %v1345 = vsub.s32 0, %v1344
      %v1346 = vrot.slane %v1342, %v1345
      %v1347 = vmul.f32 %v1341, %v1346
      %v1348 = vpack.c.bf16 %v1264, %v1250
      %v1349 = vpack.c.bf16 %v1291, %v1278
      %v1350 = vpack.c.bf16 %v1305, %v1231
      %v1351 = vpack.c.bf16 %v1333, %v1319
      %v1352 = vpack.c.bf16 %v1347, %v1347
      %v1355 = vunpack.c.l.b16 %v1234
      %v1356 = vunpack.c.l.b16 %v1235
      %v1357 = vpack.c.b16 %v1356, %v1355
      %v1359 = vsel %vm855, %v1357, 0
      %v1362 = vsel %vm859, %v1352, 0
      %1364 = vmatprep.subr.bf16.mxu0 0
      %1365 = vmatpush1.bf16.msra.mxu0 %v1348
      %1366 = vmatprep.subr.bf16.mxu0 0
      %1367 = vmatpush1.bf16.msra.mxu0 %v1349
      %1368 = vmatprep.subr.bf16.mxu0 0
      %1369 = vmatpush1.bf16.msra.mxu0 %v1350
      %1370 = vmatprep.subr.bf16.mxu0 0
      %1371 = vmatpush1.bf16.msra.mxu0 %v1351
      %1372 = vmatprep.subr.bf16.mxu0 0
      %1373 = vmatpush1.bf16.msra.mxu0 %v1362
      %1374 = vmatprep.subr.bf16.mxu0 0
      %1375 = vmatpush1.bf16.msra.mxu0 0
      %1376 = vmatprep.subr.bf16.mxu0 0
      %1377 = vmatpush1.bf16.msra.mxu0 0
      %1378 = vmatprep.subr.bf16.mxu0 0
      %1379 = vmatpush1.bf16.msra.mxu0 0
      %1380 = vmatprep.subr.bf16.mxu0 0
      %1381 = vmatpush1.bf16.msra.mxu0 0
      %1382 = vmatprep.subr.bf16.mxu0 0
      %1383 = vmatpush1.bf16.msra.mxu0 0
      %1384 = vmatprep.subr.bf16.mxu0 0
      %1385 = vmatpush1.bf16.msra.mxu0 0
      %1386 = vmatprep.subr.bf16.mxu0 0
      %1387 = vmatpush1.bf16.msra.mxu0 0
      %1388 = vmatprep.subr.bf16.mxu0 0
      %1389 = vmatpush1.bf16.msra.mxu0 0
      %1390 = vmatprep.subr.bf16.mxu0 0
      %1391 = vmatpush1.bf16.msra.mxu0 0
      %1392 = vmatprep.subr.bf16.mxu0 0
      %1393 = vmatpush1.bf16.msra.mxu0 0
      %1394 = vmatprep.subr.bf16.mxu0 0
      %1395 = vmatpush1.bf16.msra.mxu0 0
      %1396 = vmatprep.mubr.bf16.mxu0 0
      %1397 = vmatmul.mubr.bf16.gmra.mrb[0].mxu0 %v1359
      %v1398 = vpop.f32.mrb[0].mxu0
      %v1399 = vadd.f32 0.0, %v1398
      %v1400 = vpop.f32.mrb[0].mxu0
      %v1401 = vpop.f32.mrb[0].mxu0
      %v1402 = vadd.f32 0.0, %v1401
      %v1403 = vpop.f32.mrb[0].mxu0
      %1404 = vdwg.mxu0
      %vm1405 = vcmask 523264
      %v1406 = vsel %vm1405, %v1399, 0.0
      %1407 = vadd.xlane.f32.xlu0 %v1406
      %v1408 = vpop.xlane.xlu0 %1407
      %v1409 = vsel %vm1405, %v1402, 0.0
      %1410 = vadd.xlane.f32.xlu0 %v1409
      %v1411 = vpop.xlane.xlu0 %1410
      %v1412 = vmul.f32 %v1408, 0.015625
      %v1413 = vmul.f32 %v1411, 0.015625
      %v1414 = vmul.f32 %v1399, %v1399
      %v1415 = vmul.f32 %v1402, %v1402
      %v1416 = vsel %vm1405, %v1414, 0.0
      %1417 = vadd.xlane.f32.xlu0 %v1416
      %v1418 = vpop.xlane.xlu0 %1417
      %v1419 = vsel %vm1405, %v1415, 0.0
      %1420 = vadd.xlane.f32.xlu0 %v1419
      %v1421 = vpop.xlane.xlu0 %1420
      %v1422 = vmul.f32 %v1418, 0.015625
      %v1423 = vmul.f32 %v1421, 0.015625
      %v1424 = vmul.f32 %v1412, %v1412
      %v1425 = vmul.f32 %v1413, %v1413
      %v1426 = vsub.f32 %v1422, %v1424
      %v1427 = vsub.f32 %v1423, %v1425
      %v1428 = vsub.f32 %v1399, %v1412
      %v1429 = vsub.f32 %v1402, %v1413
      %v1430 = vmax.f32 %v1426, 0.0
      %v1431 = vmax.f32 %v1427, 0.0
      %v1432 = vadd.f32 %v1430, 1e-05
      %v1433 = vadd.f32 %v1431, 1e-05
      %v1434 = vrsqrt.pop %v1432
      %v1435 = vrsqrt.pop %v1433
      %v1436 = vmul.f32 %v1428, %v1434
      %v1437 = vmul.f32 %v1429, %v1435
      %v1438 = vmul.f32 %v1436, 0.01
      %v1439 = vmul.f32 %v1437, 0.01
      %v1440 = vmax.f32 %v1436, %v1438
      %v1441 = vmax.f32 %v1437, %v1439
      %v1442 = vld [vmem:[%s6] sm:$0xff]
      %v1443 = vld [vmem:[%s6 + $0x8] sm:$0xff]
      %1446 = vrot.lane.b32.xlu0 %v1440, 73
      %v1447 = vpop.permute.xlu0 %1446
      %1448 = vrot.lane.b32.xlu0 %v1441, 73
      %v1449 = vpop.permute.xlu0 %1448
      %1452 = vrot.lane.b32.xlu0 %v1440, 9
      %v1453 = vpop.permute.xlu0 %1452
      %1454 = vrot.lane.b32.xlu0 %v1441, 9
      %v1455 = vpop.permute.xlu0 %1454
      %v1458 = vsel %vm1243, %v1447, %v1453
      %v1459 = vsel %vm1243, %v1449, %v1455
      %v1460 = vmul.f32 %v1458, %v1249
      %v1461 = vmul.f32 %v1459, %v1249
      %1462 = vrot.lane.b32.xlu0 %v1440, 72
      %v1463 = vpop.permute.xlu0 %1462
      %1464 = vrot.lane.b32.xlu0 %v1441, 72
      %v1465 = vpop.permute.xlu0 %1464
      %1468 = vrot.lane.b32.xlu0 %v1440, 8
      %v1469 = vpop.permute.xlu0 %1468
      %1470 = vrot.lane.b32.xlu0 %v1441, 8
      %v1471 = vpop.permute.xlu0 %1470
      %v1474 = vsel %vm1257, %v1463, %v1469
      %v1475 = vsel %vm1257, %v1465, %v1471
      %v1476 = vmul.f32 %v1474, %v1263
      %v1477 = vmul.f32 %v1475, %v1263
      %1478 = vrot.lane.b32.xlu0 %v1440, 71
      %v1479 = vpop.permute.xlu0 %1478
      %1480 = vrot.lane.b32.xlu0 %v1441, 71
      %v1481 = vpop.permute.xlu0 %1480
      %1484 = vrot.lane.b32.xlu0 %v1440, 7
      %v1485 = vpop.permute.xlu0 %1484
      %1486 = vrot.lane.b32.xlu0 %v1441, 7
      %v1487 = vpop.permute.xlu0 %1486
      %v1490 = vsel %vm1271, %v1479, %v1485
      %v1491 = vsel %vm1271, %v1481, %v1487
      %v1492 = vmul.f32 %v1490, %v1277
      %v1493 = vmul.f32 %v1491, %v1277
      %1494 = vrot.lane.b32.xlu0 %v1440, 65
      %v1495 = vpop.permute.xlu0 %1494
      %1496 = vrot.lane.b32.xlu0 %v1441, 65
      %v1497 = vpop.permute.xlu0 %1496
      %1500 = vrot.lane.b32.xlu0 %v1440, 1
      %v1501 = vpop.permute.xlu0 %1500
      %1502 = vrot.lane.b32.xlu0 %v1441, 1
      %v1503 = vpop.permute.xlu0 %1502
      %v1506 = vsel %vm725, %v1495, %v1501
      %v1507 = vsel %vm725, %v1497, %v1503
      %v1508 = vmul.f32 %v1506, %v1290
      %v1509 = vmul.f32 %v1507, %v1290
      %1510 = vrot.lane.b32.xlu0 %v1440, 127
      %v1511 = vpop.permute.xlu0 %1510
      %1512 = vrot.lane.b32.xlu0 %v1441, 127
      %v1513 = vpop.permute.xlu0 %1512
      %1516 = vrot.lane.b32.xlu0 %v1440, 63
      %v1517 = vpop.permute.xlu0 %1516
      %1518 = vrot.lane.b32.xlu0 %v1441, 63
      %v1519 = vpop.permute.xlu0 %1518
      %v1522 = vsel %vm1298, %v1511, %v1517
      %v1523 = vsel %vm1298, %v1513, %v1519
      %v1524 = vmul.f32 %v1522, %v1304
      %v1525 = vmul.f32 %v1523, %v1304
      %1526 = vrot.lane.b32.xlu0 %v1440, 121
      %v1527 = vpop.permute.xlu0 %1526
      %1528 = vrot.lane.b32.xlu0 %v1441, 121
      %v1529 = vpop.permute.xlu0 %1528
      %1532 = vrot.lane.b32.xlu0 %v1440, 57
      %v1533 = vpop.permute.xlu0 %1532
      %1534 = vrot.lane.b32.xlu0 %v1441, 57
      %v1535 = vpop.permute.xlu0 %1534
      %v1538 = vsel %vm1312, %v1527, %v1533
      %v1539 = vsel %vm1312, %v1529, %v1535
      %v1540 = vmul.f32 %v1538, %v1318
      %v1541 = vmul.f32 %v1539, %v1318
      %1542 = vrot.lane.b32.xlu0 %v1440, 120
      %v1543 = vpop.permute.xlu0 %1542
      %1544 = vrot.lane.b32.xlu0 %v1441, 120
      %v1545 = vpop.permute.xlu0 %1544
      %1548 = vrot.lane.b32.xlu0 %v1440, 56
      %v1549 = vpop.permute.xlu0 %1548
      %1550 = vrot.lane.b32.xlu0 %v1441, 56
      %v1551 = vpop.permute.xlu0 %1550
      %v1554 = vsel %vm1326, %v1543, %v1549
      %v1555 = vsel %vm1326, %v1545, %v1551
      %v1556 = vmul.f32 %v1554, %v1332
      %v1557 = vmul.f32 %v1555, %v1332
      %1558 = vrot.lane.b32.xlu0 %v1440, 119
      %v1559 = vpop.permute.xlu0 %1558
      %1560 = vrot.lane.b32.xlu0 %v1441, 119
      %v1561 = vpop.permute.xlu0 %1560
      %1564 = vrot.lane.b32.xlu0 %v1440, 55
      %v1565 = vpop.permute.xlu0 %1564
      %1566 = vrot.lane.b32.xlu0 %v1441, 55
      %v1567 = vpop.permute.xlu0 %1566
      %v1570 = vsel %vm1340, %v1559, %v1565
      %v1571 = vsel %vm1340, %v1561, %v1567
      %v1572 = vmul.f32 %v1570, %v1346
      %v1573 = vmul.f32 %v1571, %v1346
      %v1574 = vpack.c.bf16 %v1461, %v1460
      %v1575 = vpack.c.bf16 %v1477, %v1476
      %v1576 = vpack.c.bf16 %v1493, %v1492
      %v1577 = vpack.c.bf16 %v1509, %v1508
      %v1578 = vpack.c.bf16 %v1441, %v1440
      %v1579 = vpack.c.bf16 %v1525, %v1524
      %v1580 = vpack.c.bf16 %v1541, %v1540
      %v1581 = vpack.c.bf16 %v1557, %v1556
      %v1582 = vpack.c.bf16 %v1573, %v1572
      %v1585 = vunpack.c.l.b16 %v1442
      %v1586 = vunpack.c.h.b16 %v1442
      %v1587 = vunpack.c.l.b16 %v1443
      %v1588 = vunpack.c.h.b16 %v1443
      %v1589 = vpack.c.b16 %v1587, %v1585
      %v1590 = vpack.c.b16 %v1588, %v1586
      %v1593 = vsel %vm675, %v1590, 0
      %1595 = vmatprep.subr.bf16.mxu0 0
      %1596 = vmatpush1.bf16.msra.mxu0 %v1574
      %1597 = vmatprep.subr.bf16.mxu0 0
      %1598 = vmatpush1.bf16.msra.mxu0 %v1575
      %1599 = vmatprep.subr.bf16.mxu0 0
      %1600 = vmatpush1.bf16.msra.mxu0 %v1576
      %1601 = vmatprep.subr.bf16.mxu0 0
      %1602 = vmatpush1.bf16.msra.mxu0 %v1577
      %1603 = vmatprep.subr.bf16.mxu0 0
      %1604 = vmatpush1.bf16.msra.mxu0 %v1578
      %1605 = vmatprep.subr.bf16.mxu0 0
      %1606 = vmatpush1.bf16.msra.mxu0 %v1579
      %1607 = vmatprep.subr.bf16.mxu0 0
      %1608 = vmatpush1.bf16.msra.mxu0 %v1580
      %1609 = vmatprep.subr.bf16.mxu0 0
      %1610 = vmatpush1.bf16.msra.mxu0 %v1581
      %1611 = vmatprep.subr.bf16.mxu0 0
      %1612 = vmatpush1.bf16.msra.mxu0 %v1582
      %1613 = vmatprep.subr.bf16.mxu0 0
      %1614 = vmatpush1.bf16.msra.mxu0 0
      %1615 = vmatprep.subr.bf16.mxu0 0
      %1616 = vmatpush1.bf16.msra.mxu0 0
      %1617 = vmatprep.subr.bf16.mxu0 0
      %1618 = vmatpush1.bf16.msra.mxu0 0
      %1619 = vmatprep.subr.bf16.mxu0 0
      %1620 = vmatpush1.bf16.msra.mxu0 0
      %1621 = vmatprep.subr.bf16.mxu0 0
      %1622 = vmatpush1.bf16.msra.mxu0 0
      %1623 = vmatprep.subr.bf16.mxu0 0
      %1624 = vmatpush1.bf16.msra.mxu0 0
      %1625 = vmatprep.subr.bf16.mxu0 0
      %1626 = vmatpush1.bf16.msra.mxu0 0
      %1627 = vmatprep.mubr.bf16.mxu0 %v1593
      %1628 = vmatmul.mubr.bf16.gmra.mrb[0].mxu0 %v1589
      %v1629 = vpop.f32.mrb[0].mxu0
      %v1630 = vadd.f32 0.0, %v1629
      %v1631 = vpop.f32.mrb[0].mxu0
      %v1632 = vpop.f32.mrb[0].mxu0
      %v1633 = vadd.f32 0.0, %v1632
      %v1634 = vpop.f32.mrb[0].mxu0
      %1635 = vdwg.mxu0
      %v1636 = vsel %vm1405, %v1630, 0.0
      %1637 = vadd.xlane.f32.xlu0 %v1636
      %v1638 = vpop.xlane.xlu0 %1637
      %v1639 = vsel %vm1405, %v1633, 0.0
      %1640 = vadd.xlane.f32.xlu0 %v1639
      %v1641 = vpop.xlane.xlu0 %1640
      %v1642 = vmul.f32 %v1638, 0.015625
      %v1643 = vmul.f32 %v1641, 0.015625
      %v1644 = vmul.f32 %v1630, %v1630
      %v1645 = vmul.f32 %v1633, %v1633
      %v1646 = vsel %vm1405, %v1644, 0.0
      %1647 = vadd.xlane.f32.xlu0 %v1646
      %v1648 = vpop.xlane.xlu0 %1647
      %v1649 = vsel %vm1405, %v1645, 0.0
      %1650 = vadd.xlane.f32.xlu0 %v1649
      %v1651 = vpop.xlane.xlu0 %1650
      %v1652 = vmul.f32 %v1648, 0.015625
      %v1653 = vmul.f32 %v1651, 0.015625
      %v1654 = vmul.f32 %v1642, %v1642
      %v1655 = vmul.f32 %v1643, %v1643
      %v1656 = vsub.f32 %v1652, %v1654
      %v1657 = vsub.f32 %v1653, %v1655
      %v1658 = vsub.f32 %v1630, %v1642
      %v1659 = vsub.f32 %v1633, %v1643
      %v1660 = vmax.f32 %v1656, 0.0
      %v1661 = vmax.f32 %v1657, 0.0
      %v1662 = vadd.f32 %v1660, 1e-05
      %v1663 = vadd.f32 %v1661, 1e-05
      %v1664 = vrsqrt.pop %v1662
      %v1665 = vrsqrt.pop %v1663
      %v1666 = vmul.f32 %v1658, %v1664
      %v1667 = vmul.f32 %v1659, %v1665
      %v1668 = vmul.f32 %v1666, 0.01
      %v1669 = vmul.f32 %v1667, 0.01
      %v1670 = vmax.f32 %v1666, %v1668
      %v1671 = vmax.f32 %v1667, %v1669
      %1672 = vst.msk [vmem:[%s629] sm:$0xff] %vm1405, %v1670
      %1673 = vst.msk [vmem:[%s629 + $0x8] sm:$0xff] %vm1405, %v1671
      %v1674 = vld [vmem:[%s8] sm:$0xff]
      %v1675 = vld [vmem:[%s8 + $0x8] sm:$0xff]
      %v1676 = vld [vmem:[%s8 + $0x10] sm:$0xff]
      %v1677 = vld [vmem:[%s8 + $0x18] sm:$0xff]
      %v1678 = vld [vmem:[%s8 + $0x20] sm:$0xff]
      %v1679 = vld [vmem:[%s8 + $0x28] sm:$0xff]
      %v1680 = vld [vmem:[%s8 + $0x30] sm:$0xff]
      %v1681 = vld [vmem:[%s8 + $0x38] sm:$0xff]
      %1684 = vrot.lane.b32.xlu0 %v1670, 127
      %v1685 = vpop.permute.xlu0 %1684
      %1686 = vrot.lane.b32.xlu0 %v1671, 127
      %v1687 = vpop.permute.xlu0 %1686
      %1690 = vrot.lane.b32.xlu0 %v1670, 63
      %v1691 = vpop.permute.xlu0 %1690
      %1692 = vrot.lane.b32.xlu0 %v1671, 63
      %v1693 = vpop.permute.xlu0 %1692
      %v1696 = vsel %vm1298, %v1685, %v1691
      %v1697 = vsel %vm1298, %v1687, %v1693
      %v1698 = vmax.f32 %v1670, %v1696
      %v1699 = vmax.f32 %v1671, %v1697
      %1702 = vrot.lane.b32.xlu0 %v1698, 120
      %v1703 = vpop.permute.xlu0 %1702
      %1704 = vrot.lane.b32.xlu0 %v1699, 120
      %v1705 = vpop.permute.xlu0 %1704
      %1708 = vrot.lane.b32.xlu0 %v1698, 56
      %v1709 = vpop.permute.xlu0 %1708
      %1710 = vrot.lane.b32.xlu0 %v1699, 56
      %v1711 = vpop.permute.xlu0 %1710
      %v1714 = vsel %vm1326, %v1703, %v1709
      %v1715 = vsel %vm1326, %v1705, %v1711
      %v1716 = vmax.f32 %v1698, %v1714
      %v1717 = vmax.f32 %v1699, %v1715
      %v1719 = vsel %vm1405, %v1716, 0
      %v1722 = vsel %vm1405, %v1717, 0
      %1724 = vmatprep.subr.mxu0 0.0
      %1725 = vmatpush1.msra.mxu0 %v1674
      %1726 = vmatprep.subr.mxu0 0.0
      %1727 = vmatpush1.msra.mxu0 %v1675
      %1728 = vmatprep.subr.mxu0 0.0
      %1729 = vmatpush1.msra.mxu0 %v1676
      %1730 = vmatprep.subr.mxu0 0.0
      %1731 = vmatpush1.msra.mxu0 %v1677
      %1732 = vmatprep.subr.mxu0 0.0
      %1733 = vmatpush1.msra.mxu0 %v1678
      %1734 = vmatprep.subr.mxu0 0.0
      %1735 = vmatpush1.msra.mxu0 %v1679
      %1736 = vmatprep.subr.mxu0 0.0
      %1737 = vmatpush1.msra.mxu0 %v1680
      %1738 = vmatprep.subr.mxu0 0.0
      %1739 = vmatpush1.msra.mxu0 %v1681
      %1740 = vmatprep.subr.mxu0 0.0
      %1741 = vmatpush1.msra.mxu0 0.0
      %1742 = vmatprep.subr.mxu0 0.0
      %1743 = vmatpush1.msra.mxu0 0.0
      %1744 = vmatprep.subr.mxu0 0.0
      %1745 = vmatpush1.msra.mxu0 0.0
      %1746 = vmatprep.subr.mxu0 0.0
      %1747 = vmatpush1.msra.mxu0 0.0
      %1748 = vmatprep.subr.mxu0 0.0
      %1749 = vmatpush1.msra.mxu0 0.0
      %1750 = vmatprep.subr.mxu0 0.0
      %1751 = vmatpush1.msra.mxu0 0.0
      %1752 = vmatprep.subr.mxu0 0.0
      %1753 = vmatpush1.msra.mxu0 0.0
      %1754 = vmatprep.subr.mxu0 0.0
      %1755 = vmatpush1.msra.mxu0 0.0
      %1756 = vmatprep.subr.mxu0 0.0
      %1757 = vmatpush1.msra.mxu0 0.0
      %1758 = vmatprep.subr.mxu0 0.0
      %1759 = vmatpush1.msra.mxu0 0.0
      %1760 = vmatprep.subr.mxu0 0.0
      %1761 = vmatpush1.msra.mxu0 0.0
      %1762 = vmatprep.subr.mxu0 0.0
      %1763 = vmatpush1.msra.mxu0 0.0
      %1764 = vmatprep.subr.mxu0 0.0
      %1765 = vmatpush1.msra.mxu0 0.0
      %1766 = vmatprep.subr.mxu0 0.0
      %1767 = vmatpush1.msra.mxu0 0.0
      %1768 = vmatprep.subr.mxu0 0.0
      %1769 = vmatpush1.msra.mxu0 0.0
      %1770 = vmatprep.subr.mxu0 0.0
      %1771 = vmatpush1.msra.mxu0 0.0
      %1772 = vmatprep.subr.mxu0 0.0
      %1773 = vmatpush1.msra.mxu0 0.0
      %1774 = vmatprep.subr.mxu0 0.0
      %1775 = vmatpush1.msra.mxu0 0.0
      %1776 = vmatprep.subr.mxu0 0.0
      %1777 = vmatpush1.msra.mxu0 0.0
      %1778 = vmatprep.subr.mxu0 0.0
      %1779 = vmatpush1.msra.mxu0 0.0
      %1780 = vmatprep.subr.mxu0 0.0
      %1781 = vmatpush1.msra.mxu0 0.0
      %1782 = vmatprep.subr.mxu0 0.0
      %1783 = vmatpush1.msra.mxu0 0.0
      %1784 = vmatprep.subr.mxu0 0.0
      %1785 = vmatpush1.msra.mxu0 0.0
      %1786 = vmatprep.subr.mxu0 0.0
      %1787 = vmatpush1.msra.mxu0 0.0
      %1788 = vmatprep.mubr.f32.mxu0 0.0
      %1789 = vmatmul.mubr.f32.gmra.mrb[0].mxu0 %v1719
      %v1790 = vpop.f32.mrb[0].mxu0
      %v1791 = vadd.f32 0.0, %v1790
      %v1792 = vpop.f32.mrb[0].mxu0
      %1793 = vmatprep.mubr.f32.mxu0 0.0
      %1794 = vmatmul.mubr.f32.gmra.mrb[0].mxu0 %v1722
      %v1795 = vpop.f32.mrb[0].mxu0
      %v1796 = vadd.f32 0.0, %v1795
      %v1797 = vpop.f32.mrb[0].mxu0
      %1798 = vdwg.mxu0
      %v1799 = vld [vmem:[%s9] sm:$0xff]
      %v1800 = vld [vmem:[%s9 + $0x8] sm:$0xff]
      %v1801 = vld [vmem:[%s9 + $0x10] sm:$0xff]
      %v1802 = vld [vmem:[%s9 + $0x18] sm:$0xff]
      %1805 = vrot.lane.b32.xlu0 %v1791, 117
      %v1806 = vpop.permute.xlu0 %1805
      %1807 = vrot.lane.b32.xlu0 %v1796, 117
      %v1808 = vpop.permute.xlu0 %1807
      %1811 = vrot.lane.b32.xlu0 %v1791, 5
      %v1812 = vpop.permute.xlu0 %1811
      %1813 = vrot.lane.b32.xlu0 %v1796, 5
      %v1814 = vpop.permute.xlu0 %1813
      %vm1817 = vcmask 39936
      %v1818 = vsel %vm1817, %v1806, %v1812
      %v1819 = vsel %vm1817, %v1808, %v1814
      %v1820 = vld [vmem:[%s11] sm:$0x1]
      %v1821 = vlaneseq
      %v1822 = vshrl.u32 %v1821, 7
      %v1823 = vsub.s32 0, %v1822
      %v1824 = vrot.slane %v1820, %v1823
      %v1825 = vmul.f32 %v1818, %v1824
      %v1826 = vmul.f32 %v1819, %v1824
      %1827 = vrot.lane.b32.xlu0 %v1791, 116
      %v1828 = vpop.permute.xlu0 %1827
      %1829 = vrot.lane.b32.xlu0 %v1796, 116
      %v1830 = vpop.permute.xlu0 %1829
      %1833 = vrot.lane.b32.xlu0 %v1791, 4
      %v1834 = vpop.permute.xlu0 %1833
      %1835 = vrot.lane.b32.xlu0 %v1796, 4
      %v1836 = vpop.permute.xlu0 %1835
      %vm1839 = vcmask 31744
      %v1840 = vsel %vm1839, %v1828, %v1834
      %v1841 = vsel %vm1839, %v1830, %v1836
      %v1842 = vld [vmem:[%s11 + $0x1] sm:$0x1]
      %v1843 = vlaneseq
      %v1844 = vshrl.u32 %v1843, 7
      %v1845 = vsub.s32 0, %v1844
      %v1846 = vrot.slane %v1842, %v1845
      %v1847 = vmul.f32 %v1840, %v1846
      %v1848 = vmul.f32 %v1841, %v1846
      %1849 = vrot.lane.b32.xlu0 %v1791, 115
      %v1850 = vpop.permute.xlu0 %1849
      %1851 = vrot.lane.b32.xlu0 %v1796, 115
      %v1852 = vpop.permute.xlu0 %1851
      %1855 = vrot.lane.b32.xlu0 %v1791, 3
      %v1856 = vpop.permute.xlu0 %1855
      %1857 = vrot.lane.b32.xlu0 %v1796, 3
      %v1858 = vpop.permute.xlu0 %1857
      %vm1861 = vcmask 23552
      %v1862 = vsel %vm1861, %v1850, %v1856
      %v1863 = vsel %vm1861, %v1852, %v1858
      %v1864 = vld [vmem:[%s11 + $0x2] sm:$0x1]
      %v1865 = vlaneseq
      %v1866 = vshrl.u32 %v1865, 7
      %v1867 = vsub.s32 0, %v1866
      %v1868 = vrot.slane %v1864, %v1867
      %v1869 = vmul.f32 %v1862, %v1868
      %v1870 = vmul.f32 %v1863, %v1868
      %1871 = vrot.lane.b32.xlu0 %v1791, 113
      %v1872 = vpop.permute.xlu0 %1871
      %1873 = vrot.lane.b32.xlu0 %v1796, 113
      %v1874 = vpop.permute.xlu0 %1873
      %1877 = vrot.lane.b32.xlu0 %v1791, 1
      %v1878 = vpop.permute.xlu0 %1877
      %1879 = vrot.lane.b32.xlu0 %v1796, 1
      %v1880 = vpop.permute.xlu0 %1879
      %v1883 = vsel %vm725, %v1872, %v1878
      %v1884 = vsel %vm725, %v1874, %v1880
      %v1885 = vld [vmem:[%s11 + $0x3] sm:$0x1]
      %v1886 = vlaneseq
      %v1887 = vshrl.u32 %v1886, 7
      %v1888 = vsub.s32 0, %v1887
      %v1889 = vrot.slane %v1885, %v1888
      %v1890 = vmul.f32 %v1883, %v1889
      %v1891 = vmul.f32 %v1884, %v1889
      %1892 = vrot.lane.b32.xlu0 %v1791, 127
      %v1893 = vpop.permute.xlu0 %1892
      %1894 = vrot.lane.b32.xlu0 %v1796, 127
      %v1895 = vpop.permute.xlu0 %1894
      %1898 = vrot.lane.b32.xlu0 %v1791, 15
      %v1899 = vpop.permute.xlu0 %1898
      %1900 = vrot.lane.b32.xlu0 %v1796, 15
      %v1901 = vpop.permute.xlu0 %1900
      %v1904 = vsel %vm700, %v1893, %v1899
      %v1905 = vsel %vm700, %v1895, %v1901
      %v1906 = vld [vmem:[%s11 + $0x5] sm:$0x1]
      %v1907 = vlaneseq
      %v1908 = vshrl.u32 %v1907, 7
      %v1909 = vsub.s32 0, %v1908
      %v1910 = vrot.slane %v1906, %v1909
      %v1911 = vmul.f32 %v1904, %v1910
      %v1912 = vmul.f32 %v1905, %v1910
      %1913 = vrot.lane.b32.xlu0 %v1791, 125
      %v1914 = vpop.permute.xlu0 %1913
      %1915 = vrot.lane.b32.xlu0 %v1796, 125
      %v1916 = vpop.permute.xlu0 %1915
      %1919 = vrot.lane.b32.xlu0 %v1791, 13
      %v1920 = vpop.permute.xlu0 %1919
      %1921 = vrot.lane.b32.xlu0 %v1796, 13
      %v1922 = vpop.permute.xlu0 %1921
      %vm1925 = vcmask 105472
      %v1926 = vsel %vm1925, %v1914, %v1920
      %v1927 = vsel %vm1925, %v1916, %v1922
      %v1928 = vld [vmem:[%s11 + $0x6] sm:$0x1]
      %v1929 = vlaneseq
      %v1930 = vshrl.u32 %v1929, 7
      %v1931 = vsub.s32 0, %v1930
      %v1932 = vrot.slane %v1928, %v1931
      %v1933 = vmul.f32 %v1926, %v1932
      %v1934 = vmul.f32 %v1927, %v1932
      %1935 = vrot.lane.b32.xlu0 %v1791, 124
      %v1936 = vpop.permute.xlu0 %1935
      %1937 = vrot.lane.b32.xlu0 %v1796, 124
      %v1938 = vpop.permute.xlu0 %1937
      %1941 = vrot.lane.b32.xlu0 %v1791, 12
      %v1942 = vpop.permute.xlu0 %1941
      %1943 = vrot.lane.b32.xlu0 %v1796, 12
      %v1944 = vpop.permute.xlu0 %1943
      %vm1947 = vcmask 97280
      %v1948 = vsel %vm1947, %v1936, %v1942
      %v1949 = vsel %vm1947, %v1938, %v1944
      %v1950 = vld [vmem:[%s11 + $0x7] sm:$0x1]
      %v1951 = vlaneseq
      %v1952 = vshrl.u32 %v1951, 7
      %v1953 = vsub.s32 0, %v1952
      %v1954 = vrot.slane %v1950, %v1953
      %v1955 = vmul.f32 %v1948, %v1954
      %v1956 = vmul.f32 %v1949, %v1954
      %1957 = vrot.lane.b32.xlu0 %v1791, 123
      %v1958 = vpop.permute.xlu0 %1957
      %1959 = vrot.lane.b32.xlu0 %v1796, 123
      %v1960 = vpop.permute.xlu0 %1959
      %1963 = vrot.lane.b32.xlu0 %v1791, 11
      %v1964 = vpop.permute.xlu0 %1963
      %1965 = vrot.lane.b32.xlu0 %v1796, 11
      %v1966 = vpop.permute.xlu0 %1965
      %vm1969 = vcmask 89088
      %v1970 = vsel %vm1969, %v1958, %v1964
      %v1971 = vsel %vm1969, %v1960, %v1966
      %v1972 = vld [vmem:[%s11 + $0x8] sm:$0x1]
      %v1973 = vlaneseq
      %v1974 = vshrl.u32 %v1973, 7
      %v1975 = vsub.s32 0, %v1974
      %v1976 = vrot.slane %v1972, %v1975
      %v1977 = vmul.f32 %v1970, %v1976
      %v1978 = vmul.f32 %v1971, %v1976
      %v1979 = vpack.c.bf16 %v1826, %v1825
      %v1980 = vpack.c.bf16 %v1848, %v1847
      %v1981 = vpack.c.bf16 %v1870, %v1869
      %v1982 = vpack.c.bf16 %v1891, %v1890
      %v1983 = vpack.c.bf16 %v1796, %v1791
      %v1984 = vpack.c.bf16 %v1912, %v1911
      %v1985 = vpack.c.bf16 %v1934, %v1933
      %v1986 = vpack.c.bf16 %v1956, %v1955
      %v1987 = vpack.c.bf16 %v1978, %v1977
      %v1992 = vunpack.c.l.b16 %v1799
      %v1993 = vunpack.c.h.b16 %v1799
      %v1994 = vunpack.c.l.b16 %v1800
      %v1995 = vunpack.c.h.b16 %v1800
      %v1996 = vunpack.c.l.b16 %v1801
      %v1997 = vunpack.c.h.b16 %v1801
      %v1998 = vunpack.c.l.b16 %v1802
      %v1999 = vunpack.c.h.b16 %v1802
      %v2000 = vpack.c.b16 %v1994, %v1992
      %v2001 = vpack.c.b16 %v1995, %v1993
      %v2002 = vpack.c.b16 %v1998, %v1996
      %v2003 = vpack.c.b16 %v1999, %v1997
      %v2007 = vsel %vm675, %v2001, 0
      %v2010 = vsel %vm675, %v2003, 0
      %2012 = vmatprep.subr.bf16.mxu0 0
      %2013 = vmatpush1.bf16.msra.mxu0 %v1979
      %2014 = vmatprep.subr.bf16.mxu0 0
      %2015 = vmatpush1.bf16.msra.mxu0 %v1980
      %2016 = vmatprep.subr.bf16.mxu0 0
      %2017 = vmatpush1.bf16.msra.mxu0 %v1981
      %2018 = vmatprep.subr.bf16.mxu0 0
      %2019 = vmatpush1.bf16.msra.mxu0 %v1982
      %2020 = vmatprep.subr.bf16.mxu0 0
      %2021 = vmatpush1.bf16.msra.mxu0 %v1983
      %2022 = vmatprep.subr.bf16.mxu0 0
      %2023 = vmatpush1.bf16.msra.mxu0 %v1984
      %2024 = vmatprep.subr.bf16.mxu0 0
      %2025 = vmatpush1.bf16.msra.mxu0 %v1985
      %2026 = vmatprep.subr.bf16.mxu0 0
      %2027 = vmatpush1.bf16.msra.mxu0 %v1986
      %2028 = vmatprep.subr.bf16.mxu0 0
      %2029 = vmatpush1.bf16.msra.mxu0 %v1987
      %2030 = vmatprep.subr.bf16.mxu0 0
      %2031 = vmatpush1.bf16.msra.mxu0 0
      %2032 = vmatprep.subr.bf16.mxu0 0
      %2033 = vmatpush1.bf16.msra.mxu0 0
      %2034 = vmatprep.subr.bf16.mxu0 0
      %2035 = vmatpush1.bf16.msra.mxu0 0
      %2036 = vmatprep.subr.bf16.mxu0 0
      %2037 = vmatpush1.bf16.msra.mxu0 0
      %2038 = vmatprep.subr.bf16.mxu0 0
      %2039 = vmatpush1.bf16.msra.mxu0 0
      %2040 = vmatprep.subr.bf16.mxu0 0
      %2041 = vmatpush1.bf16.msra.mxu0 0
      %2042 = vmatprep.subr.bf16.mxu0 0
      %2043 = vmatpush1.bf16.msra.mxu0 0
      %2044 = vmatprep.mubr.bf16.mxu0 %v2007
      %2045 = vmatmul.mubr.bf16.gmra.mrb[0].mxu0 %v2000
      %v2046 = vpop.f32.mrb[0].mxu0
      %v2047 = vadd.f32 0.0, %v2046
      %v2048 = vpop.f32.mrb[0].mxu0
      %v2049 = vpop.f32.mrb[0].mxu0
      %v2050 = vadd.f32 0.0, %v2049
      %v2051 = vpop.f32.mrb[0].mxu0
      %2052 = vmatprep.mubr.bf16.mxu0 %v2010
      %2053 = vmatmul.mubr.bf16.gmra.mrb[0].mxu0 %v2002
      %v2054 = vpop.f32.mrb[0].mxu0
      %v2055 = vadd.f32 0.0, %v2054
      %v2056 = vpop.f32.mrb[0].mxu0
      %v2057 = vpop.f32.mrb[0].mxu0
      %v2058 = vadd.f32 0.0, %v2057
      %v2059 = vpop.f32.mrb[0].mxu0
      %2060 = vdwg.mxu0
      %v2061 = vsel %vm675, %v2047, 0.0
      %2062 = vadd.xlane.f32.xlu0 %v2061
      %v2063 = vpop.xlane.xlu0 %2062
      %v2064 = vsel %vm675, %v2050, 0.0
      %2065 = vadd.xlane.f32.xlu0 %v2064
      %v2066 = vpop.xlane.xlu0 %2065
      %v2067 = vsel %vm675, %v2055, 0.0
      %2068 = vadd.xlane.f32.xlu0 %v2067
      %v2069 = vpop.xlane.xlu0 %2068
      %v2070 = vsel %vm675, %v2058, 0.0
      %2071 = vadd.xlane.f32.xlu0 %v2070
      %v2072 = vpop.xlane.xlu0 %2071
      %v2073 = vmul.f32 %v2063, 0.0625
      %v2074 = vmul.f32 %v2066, 0.0625
      %v2075 = vmul.f32 %v2069, 0.0625
      %v2076 = vmul.f32 %v2072, 0.0625
      %v2077 = vmul.f32 %v2047, %v2047
      %v2078 = vmul.f32 %v2050, %v2050
      %v2079 = vmul.f32 %v2055, %v2055
      %v2080 = vmul.f32 %v2058, %v2058
      %v2081 = vsel %vm675, %v2077, 0.0
      %2082 = vadd.xlane.f32.xlu0 %v2081
      %v2083 = vpop.xlane.xlu0 %2082
      %v2084 = vsel %vm675, %v2078, 0.0
      %2085 = vadd.xlane.f32.xlu0 %v2084
      %v2086 = vpop.xlane.xlu0 %2085
      %v2087 = vsel %vm675, %v2079, 0.0
      %2088 = vadd.xlane.f32.xlu0 %v2087
      %v2089 = vpop.xlane.xlu0 %2088
      %v2090 = vsel %vm675, %v2080, 0.0
      %2091 = vadd.xlane.f32.xlu0 %v2090
      %v2092 = vpop.xlane.xlu0 %2091
      %v2093 = vmul.f32 %v2083, 0.0625
      %v2094 = vmul.f32 %v2086, 0.0625
      %v2095 = vmul.f32 %v2089, 0.0625
      %v2096 = vmul.f32 %v2092, 0.0625
      %v2097 = vmul.f32 %v2073, %v2073
      %v2098 = vmul.f32 %v2074, %v2074
      %v2099 = vmul.f32 %v2075, %v2075
      %v2100 = vmul.f32 %v2076, %v2076
      %v2101 = vsub.f32 %v2093, %v2097
      %v2102 = vsub.f32 %v2094, %v2098
      %v2103 = vsub.f32 %v2095, %v2099
      %v2104 = vsub.f32 %v2096, %v2100
      %v2105 = vsub.f32 %v2047, %v2073
      %v2106 = vsub.f32 %v2050, %v2074
      %v2107 = vsub.f32 %v2055, %v2075
      %v2108 = vsub.f32 %v2058, %v2076
      %v2109 = vmax.f32 %v2101, 0.0
      %v2110 = vmax.f32 %v2102, 0.0
      %v2111 = vmax.f32 %v2103, 0.0
      %v2112 = vmax.f32 %v2104, 0.0
      %v2113 = vadd.f32 %v2109, 1e-05
      %v2114 = vadd.f32 %v2110, 1e-05
      %v2115 = vadd.f32 %v2111, 1e-05
      %v2116 = vadd.f32 %v2112, 1e-05
      %v2117 = vrsqrt.pop %v2113
      %v2118 = vrsqrt.pop %v2114
      %v2119 = vrsqrt.pop %v2115
      %v2120 = vrsqrt.pop %v2116
      %v2121 = vmul.f32 %v2105, %v2117
      %v2122 = vmul.f32 %v2106, %v2118
      %v2123 = vmul.f32 %v2107, %v2119
      %v2124 = vmul.f32 %v2108, %v2120
      %v2125 = vmul.f32 %v2121, 0.01
      %v2126 = vmul.f32 %v2122, 0.01
      %v2127 = vmul.f32 %v2123, 0.01
      %v2128 = vmul.f32 %v2124, 0.01
      %v2129 = vmax.f32 %v2121, %v2125
      %v2130 = vmax.f32 %v2122, %v2126
      %v2131 = vmax.f32 %v2123, %v2127
      %v2132 = vmax.f32 %v2124, %v2128
      %v2133 = vld [vmem:[%s10] sm:$0xff]
      %v2134 = vld [vmem:[%s10 + $0x8] sm:$0xf]
      %v2135 = vld [vmem:[%s10 + $0xc] sm:$0xff]
      %v2136 = vld [vmem:[%s10 + $0x14] sm:$0xf]
      %v2137 = vld [vmem:[%s10 + $0x18] sm:$0xff]
      %v2138 = vld [vmem:[%s10 + $0x20] sm:$0xf]
      %v2139 = vld [vmem:[%s10 + $0x24] sm:$0xff]
      %v2140 = vld [vmem:[%s10 + $0x2c] sm:$0xf]
      %2145 = vrot.lane.b32.xlu0 %v2129, 117
      %v2146 = vpop.permute.xlu0 %2145
      %2147 = vrot.lane.b32.xlu0 %v2130, 117
      %v2148 = vpop.permute.xlu0 %2147
      %2149 = vrot.lane.b32.xlu0 %v2131, 117
      %v2150 = vpop.permute.xlu0 %2149
      %2151 = vrot.lane.b32.xlu0 %v2132, 117
      %v2152 = vpop.permute.xlu0 %2151
      %2157 = vrot.lane.b32.xlu0 %v2129, 5
      %v2158 = vpop.permute.xlu0 %2157
      %2159 = vrot.lane.b32.xlu0 %v2130, 5
      %v2160 = vpop.permute.xlu0 %2159
      %2161 = vrot.lane.b32.xlu0 %v2131, 5
      %v2162 = vpop.permute.xlu0 %2161
      %2163 = vrot.lane.b32.xlu0 %v2132, 5
      %v2164 = vpop.permute.xlu0 %2163
      %v2169 = vsel %vm1817, %v2146, %v2158
      %v2170 = vsel %vm1817, %v2148, %v2160
      %v2171 = vsel %vm1817, %v2150, %v2162
      %v2172 = vsel %vm1817, %v2152, %v2164
      %v2173 = vmul.f32 %v2169, %v1824
      %v2174 = vmul.f32 %v2170, %v1824
      %v2175 = vmul.f32 %v2171, %v1824
      %v2176 = vmul.f32 %v2172, %v1824
      %2177 = vrot.lane.b32.xlu0 %v2129, 116
      %v2178 = vpop.permute.xlu0 %2177
      %2179 = vrot.lane.b32.xlu0 %v2130, 116
      %v2180 = vpop.permute.xlu0 %2179
      %2181 = vrot.lane.b32.xlu0 %v2131, 116
      %v2182 = vpop.permute.xlu0 %2181
      %2183 = vrot.lane.b32.xlu0 %v2132, 116
      %v2184 = vpop.permute.xlu0 %2183
      %2189 = vrot.lane.b32.xlu0 %v2129, 4
      %v2190 = vpop.permute.xlu0 %2189
      %2191 = vrot.lane.b32.xlu0 %v2130, 4
      %v2192 = vpop.permute.xlu0 %2191
      %2193 = vrot.lane.b32.xlu0 %v2131, 4
      %v2194 = vpop.permute.xlu0 %2193
      %2195 = vrot.lane.b32.xlu0 %v2132, 4
      %v2196 = vpop.permute.xlu0 %2195
      %v2201 = vsel %vm1839, %v2178, %v2190
      %v2202 = vsel %vm1839, %v2180, %v2192
      %v2203 = vsel %vm1839, %v2182, %v2194
      %v2204 = vsel %vm1839, %v2184, %v2196
      %v2205 = vmul.f32 %v2201, %v1846
      %v2206 = vmul.f32 %v2202, %v1846
      %v2207 = vmul.f32 %v2203, %v1846
      %v2208 = vmul.f32 %v2204, %v1846
      %2209 = vrot.lane.b32.xlu0 %v2129, 115
      %v2210 = vpop.permute.xlu0 %2209
      %2211 = vrot.lane.b32.xlu0 %v2130, 115
      %v2212 = vpop.permute.xlu0 %2211
      %2213 = vrot.lane.b32.xlu0 %v2131, 115
      %v2214 = vpop.permute.xlu0 %2213
      %2215 = vrot.lane.b32.xlu0 %v2132, 115
      %v2216 = vpop.permute.xlu0 %2215
      %2221 = vrot.lane.b32.xlu0 %v2129, 3
      %v2222 = vpop.permute.xlu0 %2221
      %2223 = vrot.lane.b32.xlu0 %v2130, 3
      %v2224 = vpop.permute.xlu0 %2223
      %2225 = vrot.lane.b32.xlu0 %v2131, 3
      %v2226 = vpop.permute.xlu0 %2225
      %2227 = vrot.lane.b32.xlu0 %v2132, 3
      %v2228 = vpop.permute.xlu0 %2227
      %v2233 = vsel %vm1861, %v2210, %v2222
      %v2234 = vsel %vm1861, %v2212, %v2224
      %v2235 = vsel %vm1861, %v2214, %v2226
      %v2236 = vsel %vm1861, %v2216, %v2228
      %v2237 = vmul.f32 %v2233, %v1868
      %v2238 = vmul.f32 %v2234, %v1868
      %v2239 = vmul.f32 %v2235, %v1868
      %v2240 = vmul.f32 %v2236, %v1868
      %2241 = vrot.lane.b32.xlu0 %v2129, 113
      %v2242 = vpop.permute.xlu0 %2241
      %2243 = vrot.lane.b32.xlu0 %v2130, 113
      %v2244 = vpop.permute.xlu0 %2243
      %2245 = vrot.lane.b32.xlu0 %v2131, 113
      %v2246 = vpop.permute.xlu0 %2245
      %2247 = vrot.lane.b32.xlu0 %v2132, 113
      %v2248 = vpop.permute.xlu0 %2247
      %2253 = vrot.lane.b32.xlu0 %v2129, 1
      %v2254 = vpop.permute.xlu0 %2253
      %2255 = vrot.lane.b32.xlu0 %v2130, 1
      %v2256 = vpop.permute.xlu0 %2255
      %2257 = vrot.lane.b32.xlu0 %v2131, 1
      %v2258 = vpop.permute.xlu0 %2257
      %2259 = vrot.lane.b32.xlu0 %v2132, 1
      %v2260 = vpop.permute.xlu0 %2259
      %v2265 = vsel %vm725, %v2242, %v2254
      %v2266 = vsel %vm725, %v2244, %v2256
      %v2267 = vsel %vm725, %v2246, %v2258
      %v2268 = vsel %vm725, %v2248, %v2260
      %v2269 = vmul.f32 %v2265, %v1889
      %v2270 = vmul.f32 %v2266, %v1889
      %v2271 = vmul.f32 %v2267, %v1889
      %v2272 = vmul.f32 %v2268, %v1889
      %2273 = vrot.lane.b32.xlu0 %v2129, 127
      %v2274 = vpop.permute.xlu0 %2273
      %2275 = vrot.lane.b32.xlu0 %v2130, 127
      %v2276 = vpop.permute.xlu0 %2275
      %2277 = vrot.lane.b32.xlu0 %v2131, 127
      %v2278 = vpop.permute.xlu0 %2277
      %2279 = vrot.lane.b32.xlu0 %v2132, 127
      %v2280 = vpop.permute.xlu0 %2279
      %2285 = vrot.lane.b32.xlu0 %v2129, 15
      %v2286 = vpop.permute.xlu0 %2285
      %2287 = vrot.lane.b32.xlu0 %v2130, 15
      %v2288 = vpop.permute.xlu0 %2287
      %2289 = vrot.lane.b32.xlu0 %v2131, 15
      %v2290 = vpop.permute.xlu0 %2289
      %2291 = vrot.lane.b32.xlu0 %v2132, 15
      %v2292 = vpop.permute.xlu0 %2291
      %v2297 = vsel %vm700, %v2274, %v2286
      %v2298 = vsel %vm700, %v2276, %v2288
      %v2299 = vsel %vm700, %v2278, %v2290
      %v2300 = vsel %vm700, %v2280, %v2292
      %v2301 = vmul.f32 %v2297, %v1910
      %v2302 = vmul.f32 %v2298, %v1910
      %v2303 = vmul.f32 %v2299, %v1910
      %v2304 = vmul.f32 %v2300, %v1910
      %2305 = vrot.lane.b32.xlu0 %v2129, 125
      %v2306 = vpop.permute.xlu0 %2305
      %2307 = vrot.lane.b32.xlu0 %v2130, 125
      %v2308 = vpop.permute.xlu0 %2307
      %2309 = vrot.lane.b32.xlu0 %v2131, 125
      %v2310 = vpop.permute.xlu0 %2309
      %2311 = vrot.lane.b32.xlu0 %v2132, 125
      %v2312 = vpop.permute.xlu0 %2311
      %2317 = vrot.lane.b32.xlu0 %v2129, 13
      %v2318 = vpop.permute.xlu0 %2317
      %2319 = vrot.lane.b32.xlu0 %v2130, 13
      %v2320 = vpop.permute.xlu0 %2319
      %2321 = vrot.lane.b32.xlu0 %v2131, 13
      %v2322 = vpop.permute.xlu0 %2321
      %2323 = vrot.lane.b32.xlu0 %v2132, 13
      %v2324 = vpop.permute.xlu0 %2323
      %v2329 = vsel %vm1925, %v2306, %v2318
      %v2330 = vsel %vm1925, %v2308, %v2320
      %v2331 = vsel %vm1925, %v2310, %v2322
      %v2332 = vsel %vm1925, %v2312, %v2324
      %v2333 = vmul.f32 %v2329, %v1932
      %v2334 = vmul.f32 %v2330, %v1932
      %v2335 = vmul.f32 %v2331, %v1932
      %v2336 = vmul.f32 %v2332, %v1932
      %2337 = vrot.lane.b32.xlu0 %v2129, 124
      %v2338 = vpop.permute.xlu0 %2337
      %2339 = vrot.lane.b32.xlu0 %v2130, 124
      %v2340 = vpop.permute.xlu0 %2339
      %2341 = vrot.lane.b32.xlu0 %v2131, 124
      %v2342 = vpop.permute.xlu0 %2341
      %2343 = vrot.lane.b32.xlu0 %v2132, 124
      %v2344 = vpop.permute.xlu0 %2343
      %2349 = vrot.lane.b32.xlu0 %v2129, 12
      %v2350 = vpop.permute.xlu0 %2349
      %2351 = vrot.lane.b32.xlu0 %v2130, 12
      %v2352 = vpop.permute.xlu0 %2351
      %2353 = vrot.lane.b32.xlu0 %v2131, 12
      %v2354 = vpop.permute.xlu0 %2353
      %2355 = vrot.lane.b32.xlu0 %v2132, 12
      %v2356 = vpop.permute.xlu0 %2355
      %v2361 = vsel %vm1947, %v2338, %v2350
      %v2362 = vsel %vm1947, %v2340, %v2352
      %v2363 = vsel %vm1947, %v2342, %v2354
      %v2364 = vsel %vm1947, %v2344, %v2356
      %v2365 = vmul.f32 %v2361, %v1954
      %v2366 = vmul.f32 %v2362, %v1954
      %v2367 = vmul.f32 %v2363, %v1954
      %v2368 = vmul.f32 %v2364, %v1954
      %2369 = vrot.lane.b32.xlu0 %v2129, 123
      %v2370 = vpop.permute.xlu0 %2369
      %2371 = vrot.lane.b32.xlu0 %v2130, 123
      %v2372 = vpop.permute.xlu0 %2371
      %2373 = vrot.lane.b32.xlu0 %v2131, 123
      %v2374 = vpop.permute.xlu0 %2373
      %2375 = vrot.lane.b32.xlu0 %v2132, 123
      %v2376 = vpop.permute.xlu0 %2375
      %2381 = vrot.lane.b32.xlu0 %v2129, 11
      %v2382 = vpop.permute.xlu0 %2381
      %2383 = vrot.lane.b32.xlu0 %v2130, 11
      %v2384 = vpop.permute.xlu0 %2383
      %2385 = vrot.lane.b32.xlu0 %v2131, 11
      %v2386 = vpop.permute.xlu0 %2385
      %2387 = vrot.lane.b32.xlu0 %v2132, 11
      %v2388 = vpop.permute.xlu0 %2387
      %v2393 = vsel %vm1969, %v2370, %v2382
      %v2394 = vsel %vm1969, %v2372, %v2384
      %v2395 = vsel %vm1969, %v2374, %v2386
      %v2396 = vsel %vm1969, %v2376, %v2388
      %v2397 = vmul.f32 %v2393, %v1976
      %v2398 = vmul.f32 %v2394, %v1976
      %v2399 = vmul.f32 %v2395, %v1976
      %v2400 = vmul.f32 %v2396, %v1976
      %v2401 = vpack.c.bf16 %v2174, %v2173
      %v2402 = vpack.c.bf16 %v2176, %v2175
      %v2403 = vpack.c.bf16 %v2206, %v2205
      %v2404 = vpack.c.bf16 %v2208, %v2207
      %v2405 = vpack.c.bf16 %v2238, %v2237
      %v2406 = vpack.c.bf16 %v2240, %v2239
      %v2407 = vpack.c.bf16 %v2270, %v2269
      %v2408 = vpack.c.bf16 %v2272, %v2271
      %v2409 = vpack.c.bf16 %v2130, %v2129
      %v2410 = vpack.c.bf16 %v2132, %v2131
      %v2411 = vpack.c.bf16 %v2302, %v2301
      %v2412 = vpack.c.bf16 %v2304, %v2303
      %v2413 = vpack.c.bf16 %v2334, %v2333
      %v2414 = vpack.c.bf16 %v2336, %v2335
      %v2415 = vpack.c.bf16 %v2366, %v2365
      %v2416 = vpack.c.bf16 %v2368, %v2367
      %v2417 = vpack.c.bf16 %v2398, %v2397
      %v2418 = vpack.c.bf16 %v2400, %v2399
      %v2427 = vunpack.c.l.b16 %v2133
      %v2428 = vunpack.c.h.b16 %v2133
      %v2429 = vunpack.c.l.b16 %v2134
      %v2430 = vunpack.c.l.b16 %v2135
      %v2431 = vunpack.c.h.b16 %v2135
      %v2432 = vunpack.c.l.b16 %v2136
      %v2433 = vunpack.c.l.b16 %v2137
      %v2434 = vunpack.c.h.b16 %v2137
      %v2435 = vunpack.c.l.b16 %v2138
      %v2436 = vunpack.c.l.b16 %v2139
      %v2437 = vunpack.c.h.b16 %v2139
      %v2438 = vunpack.c.l.b16 %v2140
      %v2439 = vpack.c.b16 %v2430, %v2427
      %v2440 = vpack.c.b16 %v2431, %v2428
      %v2441 = vpack.c.b16 %v2432, %v2429
      %v2442 = vpack.c.b16 %v2436, %v2433
      %v2443 = vpack.c.b16 %v2437, %v2434
      %v2444 = vpack.c.b16 %v2438, %v2435
      %vm2449 = vcmask 261120
      %v2451 = vsel %vm2449, %v2441, 0
      %v2454 = vsel %vm2449, %v2444, 0
      %2456 = vmatprep.subr.bf16.mxu0 0
      %2457 = vmatpush1.bf16.msra.mxu0 %v2401
      %2458 = vmatprep.subr.bf16.mxu0 0
      %2459 = vmatpush1.bf16.msra.mxu0 %v2402
      %2460 = vmatprep.subr.bf16.mxu0 0
      %2461 = vmatpush1.bf16.msra.mxu0 %v2403
      %2462 = vmatprep.subr.bf16.mxu0 0
      %2463 = vmatpush1.bf16.msra.mxu0 %v2404
      %2464 = vmatprep.subr.bf16.mxu0 0
      %2465 = vmatpush1.bf16.msra.mxu0 %v2405
      %2466 = vmatprep.subr.bf16.mxu0 0
      %2467 = vmatpush1.bf16.msra.mxu0 %v2406
      %2468 = vmatprep.subr.bf16.mxu0 0
      %2469 = vmatpush1.bf16.msra.mxu0 %v2407
      %2470 = vmatprep.subr.bf16.mxu0 0
      %2471 = vmatpush1.bf16.msra.mxu0 %v2408
      %2472 = vmatprep.subr.bf16.mxu0 0
      %2473 = vmatpush1.bf16.msra.mxu0 %v2409
      %2474 = vmatprep.subr.bf16.mxu0 0
      %2475 = vmatpush1.bf16.msra.mxu0 %v2410
      %2476 = vmatprep.subr.bf16.mxu0 0
      %2477 = vmatpush1.bf16.msra.mxu0 %v2411
      %2478 = vmatprep.subr.bf16.mxu0 0
      %2479 = vmatpush1.bf16.msra.mxu0 %v2412
      %2480 = vmatprep.subr.bf16.mxu0 0
      %2481 = vmatpush1.bf16.msra.mxu0 %v2413
      %2482 = vmatprep.subr.bf16.mxu0 0
      %2483 = vmatpush1.bf16.msra.mxu0 %v2414
      %2484 = vmatprep.subr.bf16.mxu0 0
      %2485 = vmatpush1.bf16.msra.mxu0 %v2415
      %2486 = vmatprep.subr.bf16.mxu0 0
      %2487 = vmatpush1.bf16.msra.mxu0 %v2416
      %2488 = vmatprep.mubr.bf16.mxu0 %v2440
      %2489 = vmatmul.mubr.bf16.gmra.mrb[0].mxu0 %v2439
      %v2490 = vpop.f32.mrb[0].mxu0
      %v2491 = vadd.f32 0.0, %v2490
      %v2492 = vpop.f32.mrb[0].mxu0
      %v2493 = vpop.f32.mrb[0].mxu0
      %v2494 = vadd.f32 0.0, %v2493
      %v2495 = vpop.f32.mrb[0].mxu0
      %2496 = vmatprep.mubr.bf16.mxu0 %v2443
      %2497 = vmatmul.mubr.bf16.gmra.mrb[0].mxu0 %v2442
      %v2498 = vpop.f32.mrb[0].mxu0
      %v2499 = vadd.f32 0.0, %v2498
      %v2500 = vpop.f32.mrb[0].mxu0
      %v2501 = vpop.f32.mrb[0].mxu0
      %v2502 = vadd.f32 0.0, %v2501
      %v2503 = vpop.f32.mrb[0].mxu0
      %2504 = vdwg.mxu0
      %2505 = vmatprep.subr.bf16.mxu0 0
      %2506 = vmatpush1.bf16.msra.mxu0 %v2417
      %2507 = vmatprep.subr.bf16.mxu0 0
      %2508 = vmatpush1.bf16.msra.mxu0 %v2418
      %2509 = vmatprep.subr.bf16.mxu0 0
      %2510 = vmatpush1.bf16.msra.mxu0 0
      %2511 = vmatprep.subr.bf16.mxu0 0
      %2512 = vmatpush1.bf16.msra.mxu0 0
      %2513 = vmatprep.subr.bf16.mxu0 0
      %2514 = vmatpush1.bf16.msra.mxu0 0
      %2515 = vmatprep.subr.bf16.mxu0 0
      %2516 = vmatpush1.bf16.msra.mxu0 0
      %2517 = vmatprep.subr.bf16.mxu0 0
      %2518 = vmatpush1.bf16.msra.mxu0 0
      %2519 = vmatprep.subr.bf16.mxu0 0
      %2520 = vmatpush1.bf16.msra.mxu0 0
      %2521 = vmatprep.subr.bf16.mxu0 0
      %2522 = vmatpush1.bf16.msra.mxu0 0
      %2523 = vmatprep.subr.bf16.mxu0 0
      %2524 = vmatpush1.bf16.msra.mxu0 0
      %2525 = vmatprep.subr.bf16.mxu0 0
      %2526 = vmatpush1.bf16.msra.mxu0 0
      %2527 = vmatprep.subr.bf16.mxu0 0
      %2528 = vmatpush1.bf16.msra.mxu0 0
      %2529 = vmatprep.subr.bf16.mxu0 0
      %2530 = vmatpush1.bf16.msra.mxu0 0
      %2531 = vmatprep.subr.bf16.mxu0 0
      %2532 = vmatpush1.bf16.msra.mxu0 0
      %2533 = vmatprep.subr.bf16.mxu0 0
      %2534 = vmatpush1.bf16.msra.mxu0 0
      %2535 = vmatprep.subr.bf16.mxu0 0
      %2536 = vmatpush1.bf16.msra.mxu0 0
      %2537 = vmatprep.mubr.bf16.mxu0 0
      %2538 = vmatmul.mubr.bf16.gmra.mrb[0].mxu0 %v2451
      %v2539 = vpop.f32.mrb[0].mxu0
      %v2540 = vadd.f32 %v2491, %v2539
      %v2541 = vpop.f32.mrb[0].mxu0
      %v2542 = vpop.f32.mrb[0].mxu0
      %v2543 = vadd.f32 %v2494, %v2542
      %v2544 = vpop.f32.mrb[0].mxu0
      %2545 = vmatprep.mubr.bf16.mxu0 0
      %2546 = vmatmul.mubr.bf16.gmra.mrb[0].mxu0 %v2454
      %v2547 = vpop.f32.mrb[0].mxu0
      %v2548 = vadd.f32 %v2499, %v2547
      %v2549 = vpop.f32.mrb[0].mxu0
      %v2550 = vpop.f32.mrb[0].mxu0
      %v2551 = vadd.f32 %v2502, %v2550
      %v2552 = vpop.f32.mrb[0].mxu0
      %2553 = vdwg.mxu0
      %v2554 = vsel %vm675, %v2540, 0.0
      %2555 = vadd.xlane.f32.xlu0 %v2554
      %v2556 = vpop.xlane.xlu0 %2555
      %v2557 = vsel %vm675, %v2543, 0.0
      %2558 = vadd.xlane.f32.xlu0 %v2557
      %v2559 = vpop.xlane.xlu0 %2558
      %v2560 = vsel %vm675, %v2548, 0.0
      %2561 = vadd.xlane.f32.xlu0 %v2560
      %v2562 = vpop.xlane.xlu0 %2561
      %v2563 = vsel %vm675, %v2551, 0.0
      %2564 = vadd.xlane.f32.xlu0 %v2563
      %v2565 = vpop.xlane.xlu0 %2564
      %v2566 = vmul.f32 %v2556, 0.0625
      %v2567 = vmul.f32 %v2559, 0.0625
      %v2568 = vmul.f32 %v2562, 0.0625
      %v2569 = vmul.f32 %v2565, 0.0625
      %v2570 = vmul.f32 %v2540, %v2540
      %v2571 = vmul.f32 %v2543, %v2543
      %v2572 = vmul.f32 %v2548, %v2548
      %v2573 = vmul.f32 %v2551, %v2551
      %v2574 = vsel %vm675, %v2570, 0.0
      %2575 = vadd.xlane.f32.xlu0 %v2574
      %v2576 = vpop.xlane.xlu0 %2575
      %v2577 = vsel %vm675, %v2571, 0.0
      %2578 = vadd.xlane.f32.xlu0 %v2577
      %v2579 = vpop.xlane.xlu0 %2578
      %v2580 = vsel %vm675, %v2572, 0.0
      %2581 = vadd.xlane.f32.xlu0 %v2580
      %v2582 = vpop.xlane.xlu0 %2581
      %v2583 = vsel %vm675, %v2573, 0.0
      %2584 = vadd.xlane.f32.xlu0 %v2583
      %v2585 = vpop.xlane.xlu0 %2584
      %v2586 = vmul.f32 %v2576, 0.0625
      %v2587 = vmul.f32 %v2579, 0.0625
      %v2588 = vmul.f32 %v2582, 0.0625
      %v2589 = vmul.f32 %v2585, 0.0625
      %v2590 = vmul.f32 %v2566, %v2566
      %v2591 = vmul.f32 %v2567, %v2567
      %v2592 = vmul.f32 %v2568, %v2568
      %v2593 = vmul.f32 %v2569, %v2569
      %v2594 = vsub.f32 %v2586, %v2590
      %v2595 = vsub.f32 %v2587, %v2591
      %v2596 = vsub.f32 %v2588, %v2592
      %v2597 = vsub.f32 %v2589, %v2593
      %v2598 = vsub.f32 %v2540, %v2566
      %v2599 = vsub.f32 %v2543, %v2567
      %v2600 = vsub.f32 %v2548, %v2568
      %v2601 = vsub.f32 %v2551, %v2569
      %v2602 = vmax.f32 %v2594, 0.0
      %v2603 = vmax.f32 %v2595, 0.0
      %v2604 = vmax.f32 %v2596, 0.0
      %v2605 = vmax.f32 %v2597, 0.0
      %v2606 = vadd.f32 %v2602, 1e-05
      %v2607 = vadd.f32 %v2603, 1e-05
      %v2608 = vadd.f32 %v2604, 1e-05
      %v2609 = vadd.f32 %v2605, 1e-05
      %v2610 = vrsqrt.pop %v2606
      %v2611 = vrsqrt.pop %v2607
      %v2612 = vrsqrt.pop %v2608
      %v2613 = vrsqrt.pop %v2609
      %v2614 = vmul.f32 %v2598, %v2610
      %v2615 = vmul.f32 %v2599, %v2611
      %v2616 = vmul.f32 %v2600, %v2612
      %v2617 = vmul.f32 %v2601, %v2613
      %v2618 = vmul.f32 %v2614, 0.01
      %v2619 = vmul.f32 %v2615, 0.01
      %v2620 = vmul.f32 %v2616, 0.01
      %v2621 = vmul.f32 %v2617, 0.01
      %v2622 = vmax.f32 %v2614, %v2618
      %v2623 = vmax.f32 %v2615, %v2619
      %v2624 = vmax.f32 %v2616, %v2620
      %v2625 = vmax.f32 %v2617, %v2621
      %2626 = vst.msk [vmem:[%s634] sm:$0xff] %vm675, %v2622
      %2627 = vst.msk [vmem:[%s634 + $0x8] sm:$0xff] %vm675, %v2623
      %2628 = vst.msk [vmem:[%s634 + $0x10] sm:$0xff] %vm675, %v2624
      %2629 = vst.msk [vmem:[%s634 + $0x18] sm:$0xff] %vm675, %v2625
      %v2630 = vld [vmem:[%s12] sm:$0xff]
      %v2631 = vld [vmem:[%s12 + $0x8] sm:$0xff]
      %2636 = vrot.lane.b32.xlu0 %v2622, 127
      %v2637 = vpop.permute.xlu0 %2636
      %2638 = vrot.lane.b32.xlu0 %v2623, 127
      %v2639 = vpop.permute.xlu0 %2638
      %2640 = vrot.lane.b32.xlu0 %v2624, 127
      %v2641 = vpop.permute.xlu0 %2640
      %2642 = vrot.lane.b32.xlu0 %v2625, 127
      %v2643 = vpop.permute.xlu0 %2642
      %2648 = vrot.lane.b32.xlu0 %v2622, 15
      %v2649 = vpop.permute.xlu0 %2648
      %2650 = vrot.lane.b32.xlu0 %v2623, 15
      %v2651 = vpop.permute.xlu0 %2650
      %2652 = vrot.lane.b32.xlu0 %v2624, 15
      %v2653 = vpop.permute.xlu0 %2652
      %2654 = vrot.lane.b32.xlu0 %v2625, 15
      %v2655 = vpop.permute.xlu0 %2654
      %v2660 = vsel %vm700, %v2637, %v2649
      %v2661 = vsel %vm700, %v2639, %v2651
      %v2662 = vsel %vm700, %v2641, %v2653
      %v2663 = vsel %vm700, %v2643, %v2655
      %v2664 = vmax.f32 %v2622, %v2660
      %v2665 = vmax.f32 %v2623, %v2661
      %v2666 = vmax.f32 %v2624, %v2662
      %v2667 = vmax.f32 %v2625, %v2663
      %2672 = vrot.lane.b32.xlu0 %v2664, 124
      %v2673 = vpop.permute.xlu0 %2672
      %2674 = vrot.lane.b32.xlu0 %v2665, 124
      %v2675 = vpop.permute.xlu0 %2674
      %2676 = vrot.lane.b32.xlu0 %v2666, 124
      %v2677 = vpop.permute.xlu0 %2676
      %2678 = vrot.lane.b32.xlu0 %v2667, 124
      %v2679 = vpop.permute.xlu0 %2678
      %2684 = vrot.lane.b32.xlu0 %v2664, 12
      %v2685 = vpop.permute.xlu0 %2684
      %2686 = vrot.lane.b32.xlu0 %v2665, 12
      %v2687 = vpop.permute.xlu0 %2686
      %2688 = vrot.lane.b32.xlu0 %v2666, 12
      %v2689 = vpop.permute.xlu0 %2688
      %2690 = vrot.lane.b32.xlu0 %v2667, 12
      %v2691 = vpop.permute.xlu0 %2690
      %v2696 = vsel %vm1947, %v2673, %v2685
      %v2697 = vsel %vm1947, %v2675, %v2687
      %v2698 = vsel %vm1947, %v2677, %v2689
      %v2699 = vsel %vm1947, %v2679, %v2691
      %v2700 = vmax.f32 %v2664, %v2696
      %v2701 = vmax.f32 %v2665, %v2697
      %v2702 = vmax.f32 %v2666, %v2698
      %v2703 = vmax.f32 %v2667, %v2699
      %v2705 = vsel %vm675, %v2700, 0
      %v2708 = vsel %vm675, %v2701, 0
      %v2711 = vsel %vm675, %v2702, 0
      %v2714 = vsel %vm675, %v2703, 0
      %2716 = vmatprep.subr.mxu0 0.0
      %2717 = vmatpush1.msra.mxu0 %v2630
      %2718 = vmatprep.subr.mxu0 0.0
      %2719 = vmatpush1.msra.mxu0 %v2631
      %2720 = vmatprep.subr.mxu0 0.0
      %2721 = vmatpush1.msra.mxu0 0.0
      %2722 = vmatprep.subr.mxu0 0.0
      %2723 = vmatpush1.msra.mxu0 0.0
      %2724 = vmatprep.subr.mxu0 0.0
      %2725 = vmatpush1.msra.mxu0 0.0
      %2726 = vmatprep.subr.mxu0 0.0
      %2727 = vmatpush1.msra.mxu0 0.0
      %2728 = vmatprep.subr.mxu0 0.0
      %2729 = vmatpush1.msra.mxu0 0.0
      %2730 = vmatprep.subr.mxu0 0.0
      %2731 = vmatpush1.msra.mxu0 0.0
      %2732 = vmatprep.subr.mxu0 0.0
      %2733 = vmatpush1.msra.mxu0 0.0
      %2734 = vmatprep.subr.mxu0 0.0
      %2735 = vmatpush1.msra.mxu0 0.0
      %2736 = vmatprep.subr.mxu0 0.0
      %2737 = vmatpush1.msra.mxu0 0.0
      %2738 = vmatprep.subr.mxu0 0.0
      %2739 = vmatpush1.msra.mxu0 0.0
      %2740 = vmatprep.subr.mxu0 0.0
      %2741 = vmatpush1.msra.mxu0 0.0
      %2742 = vmatprep.subr.mxu0 0.0
      %2743 = vmatpush1.msra.mxu0 0.0
      %2744 = vmatprep.subr.mxu0 0.0
      %2745 = vmatpush1.msra.mxu0 0.0
      %2746 = vmatprep.subr.mxu0 0.0
      %2747 = vmatpush1.msra.mxu0 0.0
      %2748 = vmatprep.subr.mxu0 0.0
      %2749 = vmatpush1.msra.mxu0 0.0
      %2750 = vmatprep.subr.mxu0 0.0
      %2751 = vmatpush1.msra.mxu0 0.0
      %2752 = vmatprep.subr.mxu0 0.0
      %2753 = vmatpush1.msra.mxu0 0.0
      %2754 = vmatprep.subr.mxu0 0.0
      %2755 = vmatpush1.msra.mxu0 0.0
      %2756 = vmatprep.subr.mxu0 0.0
      %2757 = vmatpush1.msra.mxu0 0.0
      %2758 = vmatprep.subr.mxu0 0.0
      %2759 = vmatpush1.msra.mxu0 0.0
      %2760 = vmatprep.subr.mxu0 0.0
      %2761 = vmatpush1.msra.mxu0 0.0
      %2762 = vmatprep.subr.mxu0 0.0
      %2763 = vmatpush1.msra.mxu0 0.0
      %2764 = vmatprep.subr.mxu0 0.0
      %2765 = vmatpush1.msra.mxu0 0.0
      %2766 = vmatprep.subr.mxu0 0.0
      %2767 = vmatpush1.msra.mxu0 0.0
      %2768 = vmatprep.subr.mxu0 0.0
      %2769 = vmatpush1.msra.mxu0 0.0
      %2770 = vmatprep.subr.mxu0 0.0
      %2771 = vmatpush1.msra.mxu0 0.0
      %2772 = vmatprep.subr.mxu0 0.0
      %2773 = vmatpush1.msra.mxu0 0.0
      %2774 = vmatprep.subr.mxu0 0.0
      %2775 = vmatpush1.msra.mxu0 0.0
      %2776 = vmatprep.subr.mxu0 0.0
      %2777 = vmatpush1.msra.mxu0 0.0
      %2778 = vmatprep.subr.mxu0 0.0
      %2779 = vmatpush1.msra.mxu0 0.0
      %2780 = vmatprep.mubr.f32.mxu0 0.0
      %2781 = vmatmul.mubr.f32.gmra.mrb[0].mxu0 %v2705
      %v2782 = vpop.f32.mrb[0].mxu0
      %v2783 = vadd.f32 0.0, %v2782
      %v2784 = vpop.f32.mrb[0].mxu0
      %2785 = vmatprep.mubr.f32.mxu0 0.0
      %2786 = vmatmul.mubr.f32.gmra.mrb[0].mxu0 %v2708
      %v2787 = vpop.f32.mrb[0].mxu0
      %v2788 = vadd.f32 0.0, %v2787
      %v2789 = vpop.f32.mrb[0].mxu0
      %2790 = vmatprep.mubr.f32.mxu0 0.0
      %2791 = vmatmul.mubr.f32.gmra.mrb[0].mxu0 %v2711
      %v2792 = vpop.f32.mrb[0].mxu0
      %v2793 = vadd.f32 0.0, %v2792
      %v2794 = vpop.f32.mrb[0].mxu0
      %2795 = vmatprep.mubr.f32.mxu0 0.0
      %2796 = vmatmul.mubr.f32.gmra.mrb[0].mxu0 %v2714
      %v2797 = vpop.f32.mrb[0].mxu0
      %v2798 = vadd.f32 0.0, %v2797
      %v2799 = vpop.f32.mrb[0].mxu0
      %2800 = vdwg.mxu0
      %v2801 = vld [vmem:[%s13] sm:$0xff]
      %v2802 = vld [vmem:[%s13 + $0x8] sm:$0xf]
      %v2803 = vld [vmem:[%s13 + $0xc] sm:$0xff]
      %v2804 = vld [vmem:[%s13 + $0x14] sm:$0xf]
      %v2805 = vld [vmem:[%s13 + $0x18] sm:$0xff]
      %v2806 = vld [vmem:[%s13 + $0x20] sm:$0xf]
      %v2807 = vld [vmem:[%s13 + $0x24] sm:$0xff]
      %v2808 = vld [vmem:[%s13 + $0x2c] sm:$0xf]
      %v2809 = vld [vmem:[%s13 + $0x30] sm:$0xff]
      %v2810 = vld [vmem:[%s13 + $0x38] sm:$0xf]
      %v2811 = vld [vmem:[%s13 + $0x3c] sm:$0xff]
      %v2812 = vld [vmem:[%s13 + $0x44] sm:$0xf]
      %v2813 = vld [vmem:[%s13 + $0x48] sm:$0xff]
      %v2814 = vld [vmem:[%s13 + $0x50] sm:$0xf]
      %v2815 = vld [vmem:[%s13 + $0x54] sm:$0xff]
      %v2816 = vld [vmem:[%s13 + $0x5c] sm:$0xf]
      %2821 = vrot.lane.b32.xlu0 %v2783, 127
      %v2822 = vpop.permute.xlu0 %2821
      %2823 = vrot.lane.b32.xlu0 %v2788, 127
      %v2824 = vpop.permute.xlu0 %2823
      %2825 = vrot.lane.b32.xlu0 %v2793, 127
      %v2826 = vpop.permute.xlu0 %2825
      %2827 = vrot.lane.b32.xlu0 %v2798, 127
      %v2828 = vpop.permute.xlu0 %2827
      %2833 = vrot.lane.b32.xlu0 %v2783, 3
      %v2834 = vpop.permute.xlu0 %2833
      %2835 = vrot.lane.b32.xlu0 %v2788, 3
      %v2836 = vpop.permute.xlu0 %2835
      %2837 = vrot.lane.b32.xlu0 %v2793, 3
      %v2838 = vpop.permute.xlu0 %2837
      %2839 = vrot.lane.b32.xlu0 %v2798, 3
      %v2840 = vpop.permute.xlu0 %2839
      %v2845 = vsel %vm1861, %v2822, %v2834
      %v2846 = vsel %vm1861, %v2824, %v2836
      %v2847 = vsel %vm1861, %v2826, %v2838
      %v2848 = vsel %vm1861, %v2828, %v2840
      %v2849 = vld [vmem:[%s15] sm:$0x1]
      %v2850 = vlaneseq
      %v2851 = vshrl.u32 %v2850, 7
      %v2852 = vsub.s32 0, %v2851
      %v2853 = vrot.slane %v2849, %v2852
      %v2854 = vmul.f32 %v2845, %v2853
      %v2855 = vmul.f32 %v2846, %v2853
      %v2856 = vmul.f32 %v2847, %v2853
      %v2857 = vmul.f32 %v2848, %v2853
      %2858 = vrot.lane.b32.xlu0 %v2783, 126
      %v2859 = vpop.permute.xlu0 %2858
      %2860 = vrot.lane.b32.xlu0 %v2788, 126
      %v2861 = vpop.permute.xlu0 %2860
      %2862 = vrot.lane.b32.xlu0 %v2793, 126
      %v2863 = vpop.permute.xlu0 %2862
      %2864 = vrot.lane.b32.xlu0 %v2798, 126
      %v2865 = vpop.permute.xlu0 %2864
      %2870 = vrot.lane.b32.xlu0 %v2783, 2
      %v2871 = vpop.permute.xlu0 %2870
      %2872 = vrot.lane.b32.xlu0 %v2788, 2
      %v2873 = vpop.permute.xlu0 %2872
      %2874 = vrot.lane.b32.xlu0 %v2793, 2
      %v2875 = vpop.permute.xlu0 %2874
      %2876 = vrot.lane.b32.xlu0 %v2798, 2
      %v2877 = vpop.permute.xlu0 %2876
      %vm2882 = vcmask 15360
      %v2883 = vsel %vm2882, %v2859, %v2871
      %v2884 = vsel %vm2882, %v2861, %v2873
      %v2885 = vsel %vm2882, %v2863, %v2875
      %v2886 = vsel %vm2882, %v2865, %v2877
      %v2887 = vld [vmem:[%s15 + $0x1] sm:$0x1]
      %v2888 = vlaneseq
      %v2889 = vshrl.u32 %v2888, 7
      %v2890 = vsub.s32 0, %v2889
      %v2891 = vrot.slane %v2887, %v2890
      %v2892 = vmul.f32 %v2883, %v2891
      %v2893 = vmul.f32 %v2884, %v2891
      %v2894 = vmul.f32 %v2885, %v2891
      %v2895 = vmul.f32 %v2886, %v2891
      %2896 = vrot.lane.b32.xlu0 %v2783, 125
      %v2897 = vpop.permute.xlu0 %2896
      %2898 = vrot.lane.b32.xlu0 %v2788, 125
      %v2899 = vpop.permute.xlu0 %2898
      %2900 = vrot.lane.b32.xlu0 %v2793, 125
      %v2901 = vpop.permute.xlu0 %2900
      %2902 = vrot.lane.b32.xlu0 %v2798, 125
      %v2903 = vpop.permute.xlu0 %2902
      %2908 = vrot.lane.b32.xlu0 %v2783, 1
      %v2909 = vpop.permute.xlu0 %2908
      %2910 = vrot.lane.b32.xlu0 %v2788, 1
      %v2911 = vpop.permute.xlu0 %2910
      %2912 = vrot.lane.b32.xlu0 %v2793, 1
      %v2913 = vpop.permute.xlu0 %2912
      %2914 = vrot.lane.b32.xlu0 %v2798, 1
      %v2915 = vpop.permute.xlu0 %2914
      %v2920 = vsel %vm725, %v2897, %v2909
      %v2921 = vsel %vm725, %v2899, %v2911
      %v2922 = vsel %vm725, %v2901, %v2913
      %v2923 = vsel %vm725, %v2903, %v2915
      %v2924 = vld [vmem:[%s15 + $0x2] sm:$0x1]
      %v2925 = vlaneseq
      %v2926 = vshrl.u32 %v2925, 7
      %v2927 = vsub.s32 0, %v2926
      %v2928 = vrot.slane %v2924, %v2927
      %v2929 = vmul.f32 %v2920, %v2928
      %v2930 = vmul.f32 %v2921, %v2928
      %v2931 = vmul.f32 %v2922, %v2928
      %v2932 = vmul.f32 %v2923, %v2928
      %v2933 = vld [vmem:[%s15 + $0x3] sm:$0x1]
      %v2934 = vlaneseq
      %v2935 = vshrl.u32 %v2934, 7
      %v2936 = vsub.s32 0, %v2935
      %v2937 = vrot.slane %v2933, %v2936
      %v2938 = vmul.f32 %v2920, %v2937
      %v2939 = vmul.f32 %v2921, %v2937
      %v2940 = vmul.f32 %v2922, %v2937
      %v2941 = vmul.f32 %v2923, %v2937
      %v2942 = vld [vmem:[%s15 + $0x5] sm:$0x1]
      %v2943 = vlaneseq
      %v2944 = vshrl.u32 %v2943, 7
      %v2945 = vsub.s32 0, %v2944
      %v2946 = vrot.slane %v2942, %v2945
      %v2947 = vmul.f32 %v2845, %v2946
      %v2948 = vmul.f32 %v2846, %v2946
      %v2949 = vmul.f32 %v2847, %v2946
      %v2950 = vmul.f32 %v2848, %v2946
      %v2951 = vld [vmem:[%s15 + $0x6] sm:$0x1]
      %v2952 = vlaneseq
      %v2953 = vshrl.u32 %v2952, 7
      %v2954 = vsub.s32 0, %v2953
      %v2955 = vrot.slane %v2951, %v2954
      %v2956 = vmul.f32 %v2845, %v2955
      %v2957 = vmul.f32 %v2846, %v2955
      %v2958 = vmul.f32 %v2847, %v2955
      %v2959 = vmul.f32 %v2848, %v2955
      %v2960 = vld [vmem:[%s15 + $0x7] sm:$0x1]
      %v2961 = vlaneseq
      %v2962 = vshrl.u32 %v2961, 7
      %v2963 = vsub.s32 0, %v2962
      %v2964 = vrot.slane %v2960, %v2963
      %v2965 = vmul.f32 %v2883, %v2964
      %v2966 = vmul.f32 %v2884, %v2964
      %v2967 = vmul.f32 %v2885, %v2964
      %v2968 = vmul.f32 %v2886, %v2964
      %v2969 = vld [vmem:[%s15 + $0x8] sm:$0x1]
      %v2970 = vlaneseq
      %v2971 = vshrl.u32 %v2970, 7
      %v2972 = vsub.s32 0, %v2971
      %v2973 = vrot.slane %v2969, %v2972
      %v2974 = vmul.f32 %v2920, %v2973
      %v2975 = vmul.f32 %v2921, %v2973
      %v2976 = vmul.f32 %v2922, %v2973
      %v2977 = vmul.f32 %v2923, %v2973
      %v2978 = vpack.c.bf16 %v2855, %v2854
      %v2979 = vpack.c.bf16 %v2857, %v2856
      %v2980 = vpack.c.bf16 %v2893, %v2892
      %v2981 = vpack.c.bf16 %v2895, %v2894
      %v2982 = vpack.c.bf16 %v2930, %v2929
      %v2983 = vpack.c.bf16 %v2932, %v2931
      %v2984 = vpack.c.bf16 %v2939, %v2938
      %v2985 = vpack.c.bf16 %v2941, %v2940
      %v2986 = vpack.c.bf16 %v2788, %v2783
      %v2987 = vpack.c.bf16 %v2798, %v2793
      %v2988 = vpack.c.bf16 %v2948, %v2947
      %v2989 = vpack.c.bf16 %v2950, %v2949
      %v2990 = vpack.c.bf16 %v2957, %v2956
      %v2991 = vpack.c.bf16 %v2959, %v2958
      %v2992 = vpack.c.bf16 %v2966, %v2965
      %v2993 = vpack.c.bf16 %v2968, %v2967
      %v2994 = vpack.c.bf16 %v2975, %v2974
      %v2995 = vpack.c.bf16 %v2977, %v2976
      %v3012 = vunpack.c.l.b16 %v2801
      %v3013 = vunpack.c.h.b16 %v2801
      %v3014 = vunpack.c.l.b16 %v2802
      %v3015 = vunpack.c.l.b16 %v2803
      %v3016 = vunpack.c.h.b16 %v2803
      %v3017 = vunpack.c.l.b16 %v2804
      %v3018 = vunpack.c.l.b16 %v2805
      %v3019 = vunpack.c.h.b16 %v2805
      %v3020 = vunpack.c.l.b16 %v2806
      %v3021 = vunpack.c.l.b16 %v2807
      %v3022 = vunpack.c.h.b16 %v2807
      %v3023 = vunpack.c.l.b16 %v2808
      %v3024 = vunpack.c.l.b16 %v2809
      %v3025 = vunpack.c.h.b16 %v2809
      %v3026 = vunpack.c.l.b16 %v2810
      %v3027 = vunpack.c.l.b16 %v2811
      %v3028 = vunpack.c.h.b16 %v2811
      %v3029 = vunpack.c.l.b16 %v2812
      %v3030 = vunpack.c.l.b16 %v2813
      %v3031 = vunpack.c.h.b16 %v2813
      %v3032 = vunpack.c.l.b16 %v2814
      %v3033 = vunpack.c.l.b16 %v2815
      %v3034 = vunpack.c.h.b16 %v2815
      %v3035 = vunpack.c.l.b16 %v2816
      %v3036 = vpack.c.b16 %v3015, %v3012
      %v3037 = vpack.c.b16 %v3016, %v3013
      %v3038 = vpack.c.b16 %v3017, %v3014
      %v3039 = vpack.c.b16 %v3021, %v3018
      %v3040 = vpack.c.b16 %v3022, %v3019
      %v3041 = vpack.c.b16 %v3023, %v3020
      %v3042 = vpack.c.b16 %v3027, %v3024
      %v3043 = vpack.c.b16 %v3028, %v3025
      %v3044 = vpack.c.b16 %v3029, %v3026
      %v3045 = vpack.c.b16 %v3033, %v3030
      %v3046 = vpack.c.b16 %v3034, %v3031
      %v3047 = vpack.c.b16 %v3035, %v3032
      %v3057 = vsel %vm2449, %v3038, 0
      %v3060 = vsel %vm2449, %v3041, 0
      %v3063 = vsel %vm2449, %v3044, 0
      %v3066 = vsel %vm2449, %v3047, 0
      %3068 = vmatprep.subr.bf16.mxu0 0
      %3069 = vmatpush1.bf16.msra.mxu0 %v2978
      %3070 = vmatprep.subr.bf16.mxu0 0
      %3071 = vmatpush1.bf16.msra.mxu0 %v2979
      %3072 = vmatprep.subr.bf16.mxu0 0
      %3073 = vmatpush1.bf16.msra.mxu0 %v2980
      %3074 = vmatprep.subr.bf16.mxu0 0
      %3075 = vmatpush1.bf16.msra.mxu0 %v2981
      %3076 = vmatprep.subr.bf16.mxu0 0
      %3077 = vmatpush1.bf16.msra.mxu0 %v2982
      %3078 = vmatprep.subr.bf16.mxu0 0
      %3079 = vmatpush1.bf16.msra.mxu0 %v2983
      %3080 = vmatprep.subr.bf16.mxu0 0
      %3081 = vmatpush1.bf16.msra.mxu0 %v2984
      %3082 = vmatprep.subr.bf16.mxu0 0
      %3083 = vmatpush1.bf16.msra.mxu0 %v2985
      %3084 = vmatprep.subr.bf16.mxu0 0
      %3085 = vmatpush1.bf16.msra.mxu0 %v2986
      %3086 = vmatprep.subr.bf16.mxu0 0
      %3087 = vmatpush1.bf16.msra.mxu0 %v2987
      %3088 = vmatprep.subr.bf16.mxu0 0
      %3089 = vmatpush1.bf16.msra.mxu0 %v2988
      %3090 = vmatprep.subr.bf16.mxu0 0
      %3091 = vmatpush1.bf16.msra.mxu0 %v2989
      %3092 = vmatprep.subr.bf16.mxu0 0
      %3093 = vmatpush1.bf16.msra.mxu0 %v2990
      %3094 = vmatprep.subr.bf16.mxu0 0
      %3095 = vmatpush1.bf16.msra.mxu0 %v2991
      %3096 = vmatprep.subr.bf16.mxu0 0
      %3097 = vmatpush1.bf16.msra.mxu0 %v2992
      %3098 = vmatprep.subr.bf16.mxu0 0
      %3099 = vmatpush1.bf16.msra.mxu0 %v2993
      %3100 = vmatprep.mubr.bf16.mxu0 %v3037
      %3101 = vmatmul.mubr.bf16.gmra.mrb[0].mxu0 %v3036
      %v3102 = vpop.f32.mrb[0].mxu0
      %v3103 = vadd.f32 0.0, %v3102
      %v3104 = vpop.f32.mrb[0].mxu0
      %v3105 = vpop.f32.mrb[0].mxu0
      %v3106 = vadd.f32 0.0, %v3105
      %v3107 = vpop.f32.mrb[0].mxu0
      %3108 = vmatprep.mubr.bf16.mxu0 %v3040
      %3109 = vmatmul.mubr.bf16.gmra.mrb[0].mxu0 %v3039
      %v3110 = vpop.f32.mrb[0].mxu0
      %v3111 = vadd.f32 0.0, %v3110
      %v3112 = vpop.f32.mrb[0].mxu0
      %v3113 = vpop.f32.mrb[0].mxu0
      %v3114 = vadd.f32 0.0, %v3113
      %v3115 = vpop.f32.mrb[0].mxu0
      %3116 = vmatprep.mubr.bf16.mxu0 %v3043
      %3117 = vmatmul.mubr.bf16.gmra.mrb[0].mxu0 %v3042
      %v3118 = vpop.f32.mrb[0].mxu0
      %v3119 = vadd.f32 0.0, %v3118
      %v3120 = vpop.f32.mrb[0].mxu0
      %v3121 = vpop.f32.mrb[0].mxu0
      %v3122 = vadd.f32 0.0, %v3121
      %v3123 = vpop.f32.mrb[0].mxu0
      %3124 = vmatprep.mubr.bf16.mxu0 %v3046
      %3125 = vmatmul.mubr.bf16.gmra.mrb[0].mxu0 %v3045
      %v3126 = vpop.f32.mrb[0].mxu0
      %v3127 = vadd.f32 0.0, %v3126
      %v3128 = vpop.f32.mrb[0].mxu0
      %v3129 = vpop.f32.mrb[0].mxu0
      %v3130 = vadd.f32 0.0, %v3129
      %v3131 = vpop.f32.mrb[0].mxu0
      %3132 = vdwg.mxu0
      %3133 = vmatprep.subr.bf16.mxu0 0
      %3134 = vmatpush1.bf16.msra.mxu0 %v2994
      %3135 = vmatprep.subr.bf16.mxu0 0
      %3136 = vmatpush1.bf16.msra.mxu0 %v2995
      %3137 = vmatprep.subr.bf16.mxu0 0
      %3138 = vmatpush1.bf16.msra.mxu0 0
      %3139 = vmatprep.subr.bf16.mxu0 0
      %3140 = vmatpush1.bf16.msra.mxu0 0
      %3141 = vmatprep.subr.bf16.mxu0 0
      %3142 = vmatpush1.bf16.msra.mxu0 0
      %3143 = vmatprep.subr.bf16.mxu0 0
      %3144 = vmatpush1.bf16.msra.mxu0 0
      %3145 = vmatprep.subr.bf16.mxu0 0
      %3146 = vmatpush1.bf16.msra.mxu0 0
      %3147 = vmatprep.subr.bf16.mxu0 0
      %3148 = vmatpush1.bf16.msra.mxu0 0
      %3149 = vmatprep.subr.bf16.mxu0 0
      %3150 = vmatpush1.bf16.msra.mxu0 0
      %3151 = vmatprep.subr.bf16.mxu0 0
      %3152 = vmatpush1.bf16.msra.mxu0 0
      %3153 = vmatprep.subr.bf16.mxu0 0
      %3154 = vmatpush1.bf16.msra.mxu0 0
      %3155 = vmatprep.subr.bf16.mxu0 0
      %3156 = vmatpush1.bf16.msra.mxu0 0
      %3157 = vmatprep.subr.bf16.mxu0 0
      %3158 = vmatpush1.bf16.msra.mxu0 0
      %3159 = vmatprep.subr.bf16.mxu0 0
      %3160 = vmatpush1.bf16.msra.mxu0 0
      %3161 = vmatprep.subr.bf16.mxu0 0
      %3162 = vmatpush1.bf16.msra.mxu0 0
      %3163 = vmatprep.subr.bf16.mxu0 0
      %3164 = vmatpush1.bf16.msra.mxu0 0
      %3165 = vmatprep.mubr.bf16.mxu0 0
      %3166 = vmatmul.mubr.bf16.gmra.mrb[0].mxu0 %v3057
      %v3167 = vpop.f32.mrb[0].mxu0
      %v3168 = vadd.f32 %v3103, %v3167
      %v3169 = vpop.f32.mrb[0].mxu0
      %v3170 = vpop.f32.mrb[0].mxu0
      %v3171 = vadd.f32 %v3106, %v3170
      %v3172 = vpop.f32.mrb[0].mxu0
      %3173 = vmatprep.mubr.bf16.mxu0 0
      %3174 = vmatmul.mubr.bf16.gmra.mrb[0].mxu0 %v3060
      %v3175 = vpop.f32.mrb[0].mxu0
      %v3176 = vadd.f32 %v3111, %v3175
      %v3177 = vpop.f32.mrb[0].mxu0
      %v3178 = vpop.f32.mrb[0].mxu0
      %v3179 = vadd.f32 %v3114, %v3178
      %v3180 = vpop.f32.mrb[0].mxu0
      %3181 = vmatprep.mubr.bf16.mxu0 0
      %3182 = vmatmul.mubr.bf16.gmra.mrb[0].mxu0 %v3063
      %v3183 = vpop.f32.mrb[0].mxu0
      %v3184 = vadd.f32 %v3119, %v3183
      %v3185 = vpop.f32.mrb[0].mxu0
      %v3186 = vpop.f32.mrb[0].mxu0
      %v3187 = vadd.f32 %v3122, %v3186
      %v3188 = vpop.f32.mrb[0].mxu0
      %3189 = vmatprep.mubr.bf16.mxu0 0
      %3190 = vmatmul.mubr.bf16.gmra.mrb[0].mxu0 %v3066
      %v3191 = vpop.f32.mrb[0].mxu0
      %v3192 = vadd.f32 %v3127, %v3191
      %v3193 = vpop.f32.mrb[0].mxu0
      %v3194 = vpop.f32.mrb[0].mxu0
      %v3195 = vadd.f32 %v3130, %v3194
      %v3196 = vpop.f32.mrb[0].mxu0
      %3197 = vdwg.mxu0
      %v3198 = vsel %vm1839, %v3168, 0.0
      %3199 = vadd.xlane.f32.xlu0 %v3198
      %v3200 = vpop.xlane.xlu0 %3199
      %v3201 = vsel %vm1839, %v3171, 0.0
      %3202 = vadd.xlane.f32.xlu0 %v3201
      %v3203 = vpop.xlane.xlu0 %3202
      %v3204 = vsel %vm1839, %v3176, 0.0
      %3205 = vadd.xlane.f32.xlu0 %v3204
      %v3206 = vpop.xlane.xlu0 %3205
      %v3207 = vsel %vm1839, %v3179, 0.0
      %3208 = vadd.xlane.f32.xlu0 %v3207
      %v3209 = vpop.xlane.xlu0 %3208
      %v3210 = vsel %vm1839, %v3184, 0.0
      %3211 = vadd.xlane.f32.xlu0 %v3210
      %v3212 = vpop.xlane.xlu0 %3211
      %v3213 = vsel %vm1839, %v3187, 0.0
      %3214 = vadd.xlane.f32.xlu0 %v3213
      %v3215 = vpop.xlane.xlu0 %3214
      %v3216 = vsel %vm1839, %v3192, 0.0
      %3217 = vadd.xlane.f32.xlu0 %v3216
      %v3218 = vpop.xlane.xlu0 %3217
      %v3219 = vsel %vm1839, %v3195, 0.0
      %3220 = vadd.xlane.f32.xlu0 %v3219
      %v3221 = vpop.xlane.xlu0 %3220
      %v3222 = vmul.f32 %v3200, 0.25
      %v3223 = vmul.f32 %v3203, 0.25
      %v3224 = vmul.f32 %v3206, 0.25
      %v3225 = vmul.f32 %v3209, 0.25
      %v3226 = vmul.f32 %v3212, 0.25
      %v3227 = vmul.f32 %v3215, 0.25
      %v3228 = vmul.f32 %v3218, 0.25
      %v3229 = vmul.f32 %v3221, 0.25
      %v3230 = vmul.f32 %v3168, %v3168
      %v3231 = vmul.f32 %v3171, %v3171
      %v3232 = vmul.f32 %v3176, %v3176
      %v3233 = vmul.f32 %v3179, %v3179
      %v3234 = vmul.f32 %v3184, %v3184
      %v3235 = vmul.f32 %v3187, %v3187
      %v3236 = vmul.f32 %v3192, %v3192
      %v3237 = vmul.f32 %v3195, %v3195
      %v3238 = vsel %vm1839, %v3230, 0.0
      %3239 = vadd.xlane.f32.xlu0 %v3238
      %v3240 = vpop.xlane.xlu0 %3239
      %v3241 = vsel %vm1839, %v3231, 0.0
      %3242 = vadd.xlane.f32.xlu0 %v3241
      %v3243 = vpop.xlane.xlu0 %3242
      %v3244 = vsel %vm1839, %v3232, 0.0
      %3245 = vadd.xlane.f32.xlu0 %v3244
      %v3246 = vpop.xlane.xlu0 %3245
      %v3247 = vsel %vm1839, %v3233, 0.0
      %3248 = vadd.xlane.f32.xlu0 %v3247
      %v3249 = vpop.xlane.xlu0 %3248
      %v3250 = vsel %vm1839, %v3234, 0.0
      %3251 = vadd.xlane.f32.xlu0 %v3250
      %v3252 = vpop.xlane.xlu0 %3251
      %v3253 = vsel %vm1839, %v3235, 0.0
      %3254 = vadd.xlane.f32.xlu0 %v3253
      %v3255 = vpop.xlane.xlu0 %3254
      %v3256 = vsel %vm1839, %v3236, 0.0
      %3257 = vadd.xlane.f32.xlu0 %v3256
      %v3258 = vpop.xlane.xlu0 %3257
      %v3259 = vsel %vm1839, %v3237, 0.0
      %3260 = vadd.xlane.f32.xlu0 %v3259
      %v3261 = vpop.xlane.xlu0 %3260
      %v3262 = vmul.f32 %v3240, 0.25
      %v3263 = vmul.f32 %v3243, 0.25
      %v3264 = vmul.f32 %v3246, 0.25
      %v3265 = vmul.f32 %v3249, 0.25
      %v3266 = vmul.f32 %v3252, 0.25
      %v3267 = vmul.f32 %v3255, 0.25
      %v3268 = vmul.f32 %v3258, 0.25
      %v3269 = vmul.f32 %v3261, 0.25
      %v3270 = vmul.f32 %v3222, %v3222
      %v3271 = vmul.f32 %v3223, %v3223
      %v3272 = vmul.f32 %v3224, %v3224
      %v3273 = vmul.f32 %v3225, %v3225
      %v3274 = vmul.f32 %v3226, %v3226
      %v3275 = vmul.f32 %v3227, %v3227
      %v3276 = vmul.f32 %v3228, %v3228
      %v3277 = vmul.f32 %v3229, %v3229
      %v3278 = vsub.f32 %v3262, %v3270
      %v3279 = vsub.f32 %v3263, %v3271
      %v3280 = vsub.f32 %v3264, %v3272
      %v3281 = vsub.f32 %v3265, %v3273
      %v3282 = vsub.f32 %v3266, %v3274
      %v3283 = vsub.f32 %v3267, %v3275
      %v3284 = vsub.f32 %v3268, %v3276
      %v3285 = vsub.f32 %v3269, %v3277
      %v3286 = vsub.f32 %v3168, %v3222
      %v3287 = vsub.f32 %v3171, %v3223
      %v3288 = vsub.f32 %v3176, %v3224
      %v3289 = vsub.f32 %v3179, %v3225
      %v3290 = vsub.f32 %v3184, %v3226
      %v3291 = vsub.f32 %v3187, %v3227
      %v3292 = vsub.f32 %v3192, %v3228
      %v3293 = vsub.f32 %v3195, %v3229
      %v3294 = vmax.f32 %v3278, 0.0
      %v3295 = vmax.f32 %v3279, 0.0
      %v3296 = vmax.f32 %v3280, 0.0
      %v3297 = vmax.f32 %v3281, 0.0
      %v3298 = vmax.f32 %v3282, 0.0
      %v3299 = vmax.f32 %v3283, 0.0
      %v3300 = vmax.f32 %v3284, 0.0
      %v3301 = vmax.f32 %v3285, 0.0
      %v3302 = vadd.f32 %v3294, 1e-05
      %v3303 = vadd.f32 %v3295, 1e-05
      %v3304 = vadd.f32 %v3296, 1e-05
      %v3305 = vadd.f32 %v3297, 1e-05
      %v3306 = vadd.f32 %v3298, 1e-05
      %v3307 = vadd.f32 %v3299, 1e-05
      %v3308 = vadd.f32 %v3300, 1e-05
      %v3309 = vadd.f32 %v3301, 1e-05
      %v3310 = vrsqrt.pop %v3302
      %v3311 = vrsqrt.pop %v3303
      %v3312 = vrsqrt.pop %v3304
      %v3313 = vrsqrt.pop %v3305
      %v3314 = vrsqrt.pop %v3306
      %v3315 = vrsqrt.pop %v3307
      %v3316 = vrsqrt.pop %v3308
      %v3317 = vrsqrt.pop %v3309
      %v3318 = vmul.f32 %v3286, %v3310
      %v3319 = vmul.f32 %v3287, %v3311
      %v3320 = vmul.f32 %v3288, %v3312
      %v3321 = vmul.f32 %v3289, %v3313
      %v3322 = vmul.f32 %v3290, %v3314
      %v3323 = vmul.f32 %v3291, %v3315
      %v3324 = vmul.f32 %v3292, %v3316
      %v3325 = vmul.f32 %v3293, %v3317
      %v3326 = vmul.f32 %v3318, 0.01
      %v3327 = vmul.f32 %v3319, 0.01
      %v3328 = vmul.f32 %v3320, 0.01
      %v3329 = vmul.f32 %v3321, 0.01
      %v3330 = vmul.f32 %v3322, 0.01
      %v3331 = vmul.f32 %v3323, 0.01
      %v3332 = vmul.f32 %v3324, 0.01
      %v3333 = vmul.f32 %v3325, 0.01
      %v3334 = vmax.f32 %v3318, %v3326
      %v3335 = vmax.f32 %v3319, %v3327
      %v3336 = vmax.f32 %v3320, %v3328
      %v3337 = vmax.f32 %v3321, %v3329
      %v3338 = vmax.f32 %v3322, %v3330
      %v3339 = vmax.f32 %v3323, %v3331
      %v3340 = vmax.f32 %v3324, %v3332
      %v3341 = vmax.f32 %v3325, %v3333
      %v3342 = vld [vmem:[%s14] sm:$0xff]
      %v3343 = vld [vmem:[%s14 + $0x8] sm:$0xff]
      %v3344 = vld [vmem:[%s14 + $0x10] sm:$0xf]
      %v3345 = vld [vmem:[%s14 + $0x14] sm:$0xff]
      %v3346 = vld [vmem:[%s14 + $0x1c] sm:$0xff]
      %v3347 = vld [vmem:[%s14 + $0x24] sm:$0xf]
      %v3348 = vld [vmem:[%s14 + $0x28] sm:$0xff]
      %v3349 = vld [vmem:[%s14 + $0x30] sm:$0xff]
      %v3350 = vld [vmem:[%s14 + $0x38] sm:$0xf]
      %v3351 = vld [vmem:[%s14 + $0x3c] sm:$0xff]
      %v3352 = vld [vmem:[%s14 + $0x44] sm:$0xff]
      %v3353 = vld [vmem:[%s14 + $0x4c] sm:$0xf]
      %v3354 = vld [vmem:[%s14 + $0x50] sm:$0xff]
      %v3355 = vld [vmem:[%s14 + $0x58] sm:$0xff]
      %v3356 = vld [vmem:[%s14 + $0x60] sm:$0xf]
      %v3357 = vld [vmem:[%s14 + $0x64] sm:$0xff]
      %v3358 = vld [vmem:[%s14 + $0x6c] sm:$0xff]
      %v3359 = vld [vmem:[%s14 + $0x74] sm:$0xf]
      %v3360 = vld [vmem:[%s14 + $0x78] sm:$0xff]
      %v3361 = vld [vmem:[%s14 + $0x80] sm:$0xff]
      %v3362 = vld [vmem:[%s14 + $0x88] sm:$0xf]
      %v3363 = vld [vmem:[%s14 + $0x8c] sm:$0xff]
      %v3364 = vld [vmem:[%s14 + $0x94] sm:$0xff]
      %v3365 = vld [vmem:[%s14 + $0x9c] sm:$0xf]
      %3374 = vrot.lane.b32.xlu0 %v3334, 127
      %v3375 = vpop.permute.xlu0 %3374
      %3376 = vrot.lane.b32.xlu0 %v3335, 127
      %v3377 = vpop.permute.xlu0 %3376
      %3378 = vrot.lane.b32.xlu0 %v3336, 127
      %v3379 = vpop.permute.xlu0 %3378
      %3380 = vrot.lane.b32.xlu0 %v3337, 127
      %v3381 = vpop.permute.xlu0 %3380
      %3382 = vrot.lane.b32.xlu0 %v3338, 127
      %v3383 = vpop.permute.xlu0 %3382
      %3384 = vrot.lane.b32.xlu0 %v3339, 127
      %v3385 = vpop.permute.xlu0 %3384
      %3386 = vrot.lane.b32.xlu0 %v3340, 127
      %v3387 = vpop.permute.xlu0 %3386
      %3388 = vrot.lane.b32.xlu0 %v3341, 127
      %v3389 = vpop.permute.xlu0 %3388
      %3398 = vrot.lane.b32.xlu0 %v3334, 3
      %v3399 = vpop.permute.xlu0 %3398
      %3400 = vrot.lane.b32.xlu0 %v3335, 3
      %v3401 = vpop.permute.xlu0 %3400
      %3402 = vrot.lane.b32.xlu0 %v3336, 3
      %v3403 = vpop.permute.xlu0 %3402
      %3404 = vrot.lane.b32.xlu0 %v3337, 3
      %v3405 = vpop.permute.xlu0 %3404
      %3406 = vrot.lane.b32.xlu0 %v3338, 3
      %v3407 = vpop.permute.xlu0 %3406
      %3408 = vrot.lane.b32.xlu0 %v3339, 3
      %v3409 = vpop.permute.xlu0 %3408
      %3410 = vrot.lane.b32.xlu0 %v3340, 3
      %v3411 = vpop.permute.xlu0 %3410
      %3412 = vrot.lane.b32.xlu0 %v3341, 3
      %v3413 = vpop.permute.xlu0 %3412
      %v3422 = vsel %vm1861, %v3375, %v3399
      %v3423 = vsel %vm1861, %v3377, %v3401
      %v3424 = vsel %vm1861, %v3379, %v3403
      %v3425 = vsel %vm1861, %v3381, %v3405
      %v3426 = vsel %vm1861, %v3383, %v3407
      %v3427 = vsel %vm1861, %v3385, %v3409
      %v3428 = vsel %vm1861, %v3387, %v3411
      %v3429 = vsel %vm1861, %v3389, %v3413
      %v3430 = vmul.f32 %v3422, %v2853
      %v3431 = vmul.f32 %v3423, %v2853
      %v3432 = vmul.f32 %v3424, %v2853
      %v3433 = vmul.f32 %v3425, %v2853
      %v3434 = vmul.f32 %v3426, %v2853
      %v3435 = vmul.f32 %v3427, %v2853
      %v3436 = vmul.f32 %v3428, %v2853
      %v3437 = vmul.f32 %v3429, %v2853
      %3438 = vrot.lane.b32.xlu0 %v3334, 126
      %v3439 = vpop.permute.xlu0 %3438
      %3440 = vrot.lane.b32.xlu0 %v3335, 126
      %v3441 = vpop.permute.xlu0 %3440
      %3442 = vrot.lane.b32.xlu0 %v3336, 126
      %v3443 = vpop.permute.xlu0 %3442
      %3444 = vrot.lane.b32.xlu0 %v3337, 126
      %v3445 = vpop.permute.xlu0 %3444
      %3446 = vrot.lane.b32.xlu0 %v3338, 126
      %v3447 = vpop.permute.xlu0 %3446
      %3448 = vrot.lane.b32.xlu0 %v3339, 126
      %v3449 = vpop.permute.xlu0 %3448
      %3450 = vrot.lane.b32.xlu0 %v3340, 126
      %v3451 = vpop.permute.xlu0 %3450
      %3452 = vrot.lane.b32.xlu0 %v3341, 126
      %v3453 = vpop.permute.xlu0 %3452
      %3462 = vrot.lane.b32.xlu0 %v3334, 2
      %v3463 = vpop.permute.xlu0 %3462
      %3464 = vrot.lane.b32.xlu0 %v3335, 2
      %v3465 = vpop.permute.xlu0 %3464
      %3466 = vrot.lane.b32.xlu0 %v3336, 2
      %v3467 = vpop.permute.xlu0 %3466
      %3468 = vrot.lane.b32.xlu0 %v3337, 2
      %v3469 = vpop.permute.xlu0 %3468
      %3470 = vrot.lane.b32.xlu0 %v3338, 2
      %v3471 = vpop.permute.xlu0 %3470
      %3472 = vrot.lane.b32.xlu0 %v3339, 2
      %v3473 = vpop.permute.xlu0 %3472
      %3474 = vrot.lane.b32.xlu0 %v3340, 2
      %v3475 = vpop.permute.xlu0 %3474
      %3476 = vrot.lane.b32.xlu0 %v3341, 2
      %v3477 = vpop.permute.xlu0 %3476
      %v3486 = vsel %vm2882, %v3439, %v3463
      %v3487 = vsel %vm2882, %v3441, %v3465
      %v3488 = vsel %vm2882, %v3443, %v3467
      %v3489 = vsel %vm2882, %v3445, %v3469
      %v3490 = vsel %vm2882, %v3447, %v3471
      %v3491 = vsel %vm2882, %v3449, %v3473
      %v3492 = vsel %vm2882, %v3451, %v3475
      %v3493 = vsel %vm2882, %v3453, %v3477
      %v3494 = vmul.f32 %v3486, %v2891
      %v3495 = vmul.f32 %v3487, %v2891
      %v3496 = vmul.f32 %v3488, %v2891
      %v3497 = vmul.f32 %v3489, %v2891
      %v3498 = vmul.f32 %v3490, %v2891
      %v3499 = vmul.f32 %v3491, %v2891
      %v3500 = vmul.f32 %v3492, %v2891
      %v3501 = vmul.f32 %v3493, %v2891
      %3502 = vrot.lane.b32.xlu0 %v3334, 125
      %v3503 = vpop.permute.xlu0 %3502
      %3504 = vrot.lane.b32.xlu0 %v3335, 125
      %v3505 = vpop.permute.xlu0 %3504
      %3506 = vrot.lane.b32.xlu0 %v3336, 125
      %v3507 = vpop.permute.xlu0 %3506
      %3508 = vrot.lane.b32.xlu0 %v3337, 125
      %v3509 = vpop.permute.xlu0 %3508
      %3510 = vrot.lane.b32.xlu0 %v3338, 125
      %v3511 = vpop.permute.xlu0 %3510
      %3512 = vrot.lane.b32.xlu0 %v3339, 125
      %v3513 = vpop.permute.xlu0 %3512
      %3514 = vrot.lane.b32.xlu0 %v3340, 125
      %v3515 = vpop.permute.xlu0 %3514
      %3516 = vrot.lane.b32.xlu0 %v3341, 125
      %v3517 = vpop.permute.xlu0 %3516
      %3526 = vrot.lane.b32.xlu0 %v3334, 1
      %v3527 = vpop.permute.xlu0 %3526
      %3528 = vrot.lane.b32.xlu0 %v3335, 1
      %v3529 = vpop.permute.xlu0 %3528
      %3530 = vrot.lane.b32.xlu0 %v3336, 1
      %v3531 = vpop.permute.xlu0 %3530
      %3532 = vrot.lane.b32.xlu0 %v3337, 1
      %v3533 = vpop.permute.xlu0 %3532
      %3534 = vrot.lane.b32.xlu0 %v3338, 1
      %v3535 = vpop.permute.xlu0 %3534
      %3536 = vrot.lane.b32.xlu0 %v3339, 1
      %v3537 = vpop.permute.xlu0 %3536
      %3538 = vrot.lane.b32.xlu0 %v3340, 1
      %v3539 = vpop.permute.xlu0 %3538
      %3540 = vrot.lane.b32.xlu0 %v3341, 1
      %v3541 = vpop.permute.xlu0 %3540
      %v3550 = vsel %vm725, %v3503, %v3527
      %v3551 = vsel %vm725, %v3505, %v3529
      %v3552 = vsel %vm725, %v3507, %v3531
      %v3553 = vsel %vm725, %v3509, %v3533
      %v3554 = vsel %vm725, %v3511, %v3535
      %v3555 = vsel %vm725, %v3513, %v3537
      %v3556 = vsel %vm725, %v3515, %v3539
      %v3557 = vsel %vm725, %v3517, %v3541
      %v3558 = vmul.f32 %v3550, %v2928
      %v3559 = vmul.f32 %v3551, %v2928
      %v3560 = vmul.f32 %v3552, %v2928
      %v3561 = vmul.f32 %v3553, %v2928
      %v3562 = vmul.f32 %v3554, %v2928
      %v3563 = vmul.f32 %v3555, %v2928
      %v3564 = vmul.f32 %v3556, %v2928
      %v3565 = vmul.f32 %v3557, %v2928
      %v3566 = vmul.f32 %v3550, %v2937
      %v3567 = vmul.f32 %v3551, %v2937
      %v3568 = vmul.f32 %v3552, %v2937
      %v3569 = vmul.f32 %v3553, %v2937
      %v3570 = vmul.f32 %v3554, %v2937
      %v3571 = vmul.f32 %v3555, %v2937
      %v3572 = vmul.f32 %v3556, %v2937
      %v3573 = vmul.f32 %v3557, %v2937
      %v3574 = vmul.f32 %v3422, %v2946
      %v3575 = vmul.f32 %v3423, %v2946
      %v3576 = vmul.f32 %v3424, %v2946
      %v3577 = vmul.f32 %v3425, %v2946
      %v3578 = vmul.f32 %v3426, %v2946
      %v3579 = vmul.f32 %v3427, %v2946
      %v3580 = vmul.f32 %v3428, %v2946
      %v3581 = vmul.f32 %v3429, %v2946
      %v3582 = vmul.f32 %v3422, %v2955
      %v3583 = vmul.f32 %v3423, %v2955
      %v3584 = vmul.f32 %v3424, %v2955
      %v3585 = vmul.f32 %v3425, %v2955
      %v3586 = vmul.f32 %v3426, %v2955
      %v3587 = vmul.f32 %v3427, %v2955
      %v3588 = vmul.f32 %v3428, %v2955
      %v3589 = vmul.f32 %v3429, %v2955
      %v3590 = vmul.f32 %v3486, %v2964
      %v3591 = vmul.f32 %v3487, %v2964
      %v3592 = vmul.f32 %v3488, %v2964
      %v3593 = vmul.f32 %v3489, %v2964
      %v3594 = vmul.f32 %v3490, %v2964
      %v3595 = vmul.f32 %v3491, %v2964
      %v3596 = vmul.f32 %v3492, %v2964
      %v3597 = vmul.f32 %v3493, %v2964
      %v3598 = vmul.f32 %v3550, %v2973
      %v3599 = vmul.f32 %v3551, %v2973
      %v3600 = vmul.f32 %v3552, %v2973
      %v3601 = vmul.f32 %v3553, %v2973
      %v3602 = vmul.f32 %v3554, %v2973
      %v3603 = vmul.f32 %v3555, %v2973
      %v3604 = vmul.f32 %v3556, %v2973
      %v3605 = vmul.f32 %v3557, %v2973
      %v3606 = vpack.c.bf16 %v3431, %v3430
      %v3607 = vpack.c.bf16 %v3433, %v3432
      %v3608 = vpack.c.bf16 %v3435, %v3434
      %v3609 = vpack.c.bf16 %v3437, %v3436
      %v3610 = vpack.c.bf16 %v3495, %v3494
      %v3611 = vpack.c.bf16 %v3497, %v3496
      %v3612 = vpack.c.bf16 %v3499, %v3498
      %v3613 = vpack.c.bf16 %v3501, %v3500
      %v3614 = vpack.c.bf16 %v3559, %v3558
      %v3615 = vpack.c.bf16 %v3561, %v3560
      %v3616 = vpack.c.bf16 %v3563, %v3562
      %v3617 = vpack.c.bf16 %v3565, %v3564
      %v3618 = vpack.c.bf16 %v3567, %v3566
      %v3619 = vpack.c.bf16 %v3569, %v3568
      %v3620 = vpack.c.bf16 %v3571, %v3570
      %v3621 = vpack.c.bf16 %v3573, %v3572
      %v3622 = vpack.c.bf16 %v3335, %v3334
      %v3623 = vpack.c.bf16 %v3337, %v3336
      %v3624 = vpack.c.bf16 %v3339, %v3338
      %v3625 = vpack.c.bf16 %v3341, %v3340
      %v3626 = vpack.c.bf16 %v3575, %v3574
      %v3627 = vpack.c.bf16 %v3577, %v3576
      %v3628 = vpack.c.bf16 %v3579, %v3578
      %v3629 = vpack.c.bf16 %v3581, %v3580
      %v3630 = vpack.c.bf16 %v3583, %v3582
      %v3631 = vpack.c.bf16 %v3585, %v3584
      %v3632 = vpack.c.bf16 %v3587, %v3586
      %v3633 = vpack.c.bf16 %v3589, %v3588
      %v3634 = vpack.c.bf16 %v3591, %v3590
      %v3635 = vpack.c.bf16 %v3593, %v3592
      %v3636 = vpack.c.bf16 %v3595, %v3594
      %v3637 = vpack.c.bf16 %v3597, %v3596
      %v3638 = vpack.c.bf16 %v3599, %v3598
      %v3639 = vpack.c.bf16 %v3601, %v3600
      %v3640 = vpack.c.bf16 %v3603, %v3602
      %v3641 = vpack.c.bf16 %v3605, %v3604
      %v3666 = vunpack.c.l.b16 %v3342
      %v3667 = vunpack.c.h.b16 %v3342
      %v3668 = vunpack.c.l.b16 %v3343
      %v3669 = vunpack.c.h.b16 %v3343
      %v3670 = vunpack.c.l.b16 %v3344
      %v3671 = vunpack.c.l.b16 %v3345
      %v3672 = vunpack.c.h.b16 %v3345
      %v3673 = vunpack.c.l.b16 %v3346
      %v3674 = vunpack.c.h.b16 %v3346
      %v3675 = vunpack.c.l.b16 %v3347
      %v3676 = vunpack.c.l.b16 %v3348
      %v3677 = vunpack.c.h.b16 %v3348
      %v3678 = vunpack.c.l.b16 %v3349
      %v3679 = vunpack.c.h.b16 %v3349
      %v3680 = vunpack.c.l.b16 %v3350
      %v3681 = vunpack.c.l.b16 %v3351
      %v3682 = vunpack.c.h.b16 %v3351
      %v3683 = vunpack.c.l.b16 %v3352
      %v3684 = vunpack.c.h.b16 %v3352
      %v3685 = vunpack.c.l.b16 %v3353
      %v3686 = vunpack.c.l.b16 %v3354
      %v3687 = vunpack.c.h.b16 %v3354
      %v3688 = vunpack.c.l.b16 %v3355
      %v3689 = vunpack.c.h.b16 %v3355
      %v3690 = vunpack.c.l.b16 %v3356
      %v3691 = vunpack.c.l.b16 %v3357
      %v3692 = vunpack.c.h.b16 %v3357
      %v3693 = vunpack.c.l.b16 %v3358
      %v3694 = vunpack.c.h.b16 %v3358
      %v3695 = vunpack.c.l.b16 %v3359
      %v3696 = vunpack.c.l.b16 %v3360
      %v3697 = vunpack.c.h.b16 %v3360
      %v3698 = vunpack.c.l.b16 %v3361
      %v3699 = vunpack.c.h.b16 %v3361
      %v3700 = vunpack.c.l.b16 %v3362
      %v3701 = vunpack.c.l.b16 %v3363
      %v3702 = vunpack.c.h.b16 %v3363
      %v3703 = vunpack.c.l.b16 %v3364
      %v3704 = vunpack.c.h.b16 %v3364
      %v3705 = vunpack.c.l.b16 %v3365
      %v3706 = vpack.c.b16 %v3671, %v3666
      %v3707 = vpack.c.b16 %v3672, %v3667
      %v3708 = vpack.c.b16 %v3673, %v3668
      %v3709 = vpack.c.b16 %v3674, %v3669
      %v3710 = vpack.c.b16 %v3675, %v3670
      %v3711 = vpack.c.b16 %v3681, %v3676
      %v3712 = vpack.c.b16 %v3682, %v3677
      %v3713 = vpack.c.b16 %v3683, %v3678
      %v3714 = vpack.c.b16 %v3684, %v3679
      %v3715 = vpack.c.b16 %v3685, %v3680
      %v3716 = vpack.c.b16 %v3691, %v3686
      %v3717 = vpack.c.b16 %v3692, %v3687
      %v3718 = vpack.c.b16 %v3693, %v3688
      %v3719 = vpack.c.b16 %v3694, %v3689
      %v3720 = vpack.c.b16 %v3695, %v3690
      %v3721 = vpack.c.b16 %v3701, %v3696
      %v3722 = vpack.c.b16 %v3702, %v3697
      %v3723 = vpack.c.b16 %v3703, %v3698
      %v3724 = vpack.c.b16 %v3704, %v3699
      %v3725 = vpack.c.b16 %v3705, %v3700
      %v3743 = vsel %vm1405, %v3710, 0
      %v3746 = vsel %vm1405, %v3715, 0
      %v3749 = vsel %vm1405, %v3720, 0
      %v3752 = vsel %vm1405, %v3725, 0
      %3754 = vmatprep.subr.bf16.mxu0 0
      %3755 = vmatpush1.bf16.msra.mxu0 %v3606
      %3756 = vmatprep.subr.bf16.mxu0 0
      %3757 = vmatpush1.bf16.msra.mxu0 %v3607
      %3758 = vmatprep.subr.bf16.mxu0 0
      %3759 = vmatpush1.bf16.msra.mxu0 %v3608
      %3760 = vmatprep.subr.bf16.mxu0 0
      %3761 = vmatpush1.bf16.msra.mxu0 %v3609
      %3762 = vmatprep.subr.bf16.mxu0 0
      %3763 = vmatpush1.bf16.msra.mxu0 %v3610
      %3764 = vmatprep.subr.bf16.mxu0 0
      %3765 = vmatpush1.bf16.msra.mxu0 %v3611
      %3766 = vmatprep.subr.bf16.mxu0 0
      %3767 = vmatpush1.bf16.msra.mxu0 %v3612
      %3768 = vmatprep.subr.bf16.mxu0 0
      %3769 = vmatpush1.bf16.msra.mxu0 %v3613
      %3770 = vmatprep.subr.bf16.mxu0 0
      %3771 = vmatpush1.bf16.msra.mxu0 %v3614
      %3772 = vmatprep.subr.bf16.mxu0 0
      %3773 = vmatpush1.bf16.msra.mxu0 %v3615
      %3774 = vmatprep.subr.bf16.mxu0 0
      %3775 = vmatpush1.bf16.msra.mxu0 %v3616
      %3776 = vmatprep.subr.bf16.mxu0 0
      %3777 = vmatpush1.bf16.msra.mxu0 %v3617
      %3778 = vmatprep.subr.bf16.mxu0 0
      %3779 = vmatpush1.bf16.msra.mxu0 %v3618
      %3780 = vmatprep.subr.bf16.mxu0 0
      %3781 = vmatpush1.bf16.msra.mxu0 %v3619
      %3782 = vmatprep.subr.bf16.mxu0 0
      %3783 = vmatpush1.bf16.msra.mxu0 %v3620
      %3784 = vmatprep.subr.bf16.mxu0 0
      %3785 = vmatpush1.bf16.msra.mxu0 %v3621
      %3786 = vmatprep.mubr.bf16.mxu0 %v3707
      %3787 = vmatmul.mubr.bf16.gmra.mrb[0].mxu0 %v3706
      %v3788 = vpop.f32.mrb[0].mxu0
      %v3789 = vadd.f32 0.0, %v3788
      %v3790 = vpop.f32.mrb[0].mxu0
      %v3791 = vpop.f32.mrb[0].mxu0
      %v3792 = vadd.f32 0.0, %v3791
      %v3793 = vpop.f32.mrb[0].mxu0
      %3794 = vmatprep.mubr.bf16.mxu0 %v3712
      %3795 = vmatmul.mubr.bf16.gmra.mrb[0].mxu0 %v3711
      %v3796 = vpop.f32.mrb[0].mxu0
      %v3797 = vadd.f32 0.0, %v3796
      %v3798 = vpop.f32.mrb[0].mxu0
      %v3799 = vpop.f32.mrb[0].mxu0
      %v3800 = vadd.f32 0.0, %v3799
      %v3801 = vpop.f32.mrb[0].mxu0
      %3802 = vmatprep.mubr.bf16.mxu0 %v3717
      %3803 = vmatmul.mubr.bf16.gmra.mrb[0].mxu0 %v3716
      %v3804 = vpop.f32.mrb[0].mxu0
      %v3805 = vadd.f32 0.0, %v3804
      %v3806 = vpop.f32.mrb[0].mxu0
      %v3807 = vpop.f32.mrb[0].mxu0
      %v3808 = vadd.f32 0.0, %v3807
      %v3809 = vpop.f32.mrb[0].mxu0
      %3810 = vmatprep.mubr.bf16.mxu0 %v3722
      %3811 = vmatmul.mubr.bf16.gmra.mrb[0].mxu0 %v3721
      %v3812 = vpop.f32.mrb[0].mxu0
      %v3813 = vadd.f32 0.0, %v3812
      %v3814 = vpop.f32.mrb[0].mxu0
      %v3815 = vpop.f32.mrb[0].mxu0
      %v3816 = vadd.f32 0.0, %v3815
      %v3817 = vpop.f32.mrb[0].mxu0
      %3818 = vdwg.mxu0
      %3819 = vmatprep.subr.bf16.mxu0 0
      %3820 = vmatpush1.bf16.msra.mxu0 %v3622
      %3821 = vmatprep.subr.bf16.mxu0 0
      %3822 = vmatpush1.bf16.msra.mxu0 %v3623
      %3823 = vmatprep.subr.bf16.mxu0 0
      %3824 = vmatpush1.bf16.msra.mxu0 %v3624
      %3825 = vmatprep.subr.bf16.mxu0 0
      %3826 = vmatpush1.bf16.msra.mxu0 %v3625
      %3827 = vmatprep.subr.bf16.mxu0 0
      %3828 = vmatpush1.bf16.msra.mxu0 %v3626
      %3829 = vmatprep.subr.bf16.mxu0 0
      %3830 = vmatpush1.bf16.msra.mxu0 %v3627
      %3831 = vmatprep.subr.bf16.mxu0 0
      %3832 = vmatpush1.bf16.msra.mxu0 %v3628
      %3833 = vmatprep.subr.bf16.mxu0 0
      %3834 = vmatpush1.bf16.msra.mxu0 %v3629
      %3835 = vmatprep.subr.bf16.mxu0 0
      %3836 = vmatpush1.bf16.msra.mxu0 %v3630
      %3837 = vmatprep.subr.bf16.mxu0 0
      %3838 = vmatpush1.bf16.msra.mxu0 %v3631
      %3839 = vmatprep.subr.bf16.mxu0 0
      %3840 = vmatpush1.bf16.msra.mxu0 %v3632
      %3841 = vmatprep.subr.bf16.mxu0 0
      %3842 = vmatpush1.bf16.msra.mxu0 %v3633
      %3843 = vmatprep.subr.bf16.mxu0 0
      %3844 = vmatpush1.bf16.msra.mxu0 %v3634
      %3845 = vmatprep.subr.bf16.mxu0 0
      %3846 = vmatpush1.bf16.msra.mxu0 %v3635
      %3847 = vmatprep.subr.bf16.mxu0 0
      %3848 = vmatpush1.bf16.msra.mxu0 %v3636
      %3849 = vmatprep.subr.bf16.mxu0 0
      %3850 = vmatpush1.bf16.msra.mxu0 %v3637
      %3851 = vmatprep.mubr.bf16.mxu0 %v3709
      %3852 = vmatmul.mubr.bf16.gmra.mrb[0].mxu0 %v3708
      %v3853 = vpop.f32.mrb[0].mxu0
      %v3854 = vadd.f32 %v3789, %v3853
      %v3855 = vpop.f32.mrb[0].mxu0
      %v3856 = vpop.f32.mrb[0].mxu0
      %v3857 = vadd.f32 %v3792, %v3856
      %v3858 = vpop.f32.mrb[0].mxu0
      %3859 = vmatprep.mubr.bf16.mxu0 %v3714
      %3860 = vmatmul.mubr.bf16.gmra.mrb[0].mxu0 %v3713
      %v3861 = vpop.f32.mrb[0].mxu0
      %v3862 = vadd.f32 %v3797, %v3861
      %v3863 = vpop.f32.mrb[0].mxu0
      %v3864 = vpop.f32.mrb[0].mxu0
      %v3865 = vadd.f32 %v3800, %v3864
      %v3866 = vpop.f32.mrb[0].mxu0
      %3867 = vmatprep.mubr.bf16.mxu0 %v3719
      %3868 = vmatmul.mubr.bf16.gmra.mrb[0].mxu0 %v3718
      %v3869 = vpop.f32.mrb[0].mxu0
      %v3870 = vadd.f32 %v3805, %v3869
      %v3871 = vpop.f32.mrb[0].mxu0
      %v3872 = vpop.f32.mrb[0].mxu0
      %v3873 = vadd.f32 %v3808, %v3872
      %v3874 = vpop.f32.mrb[0].mxu0
      %3875 = vmatprep.mubr.bf16.mxu0 %v3724
      %3876 = vmatmul.mubr.bf16.gmra.mrb[0].mxu0 %v3723
      %v3877 = vpop.f32.mrb[0].mxu0
      %v3878 = vadd.f32 %v3813, %v3877
      %v3879 = vpop.f32.mrb[0].mxu0
      %v3880 = vpop.f32.mrb[0].mxu0
      %v3881 = vadd.f32 %v3816, %v3880
      %v3882 = vpop.f32.mrb[0].mxu0
      %3883 = vdwg.mxu0
      %3884 = vmatprep.subr.bf16.mxu0 0
      %3885 = vmatpush1.bf16.msra.mxu0 %v3638
      %3886 = vmatprep.subr.bf16.mxu0 0
      %3887 = vmatpush1.bf16.msra.mxu0 %v3639
      %3888 = vmatprep.subr.bf16.mxu0 0
      %3889 = vmatpush1.bf16.msra.mxu0 %v3640
      %3890 = vmatprep.subr.bf16.mxu0 0
      %3891 = vmatpush1.bf16.msra.mxu0 %v3641
      %3892 = vmatprep.subr.bf16.mxu0 0
      %3893 = vmatpush1.bf16.msra.mxu0 0
      %3894 = vmatprep.subr.bf16.mxu0 0
      %3895 = vmatpush1.bf16.msra.mxu0 0
      %3896 = vmatprep.subr.bf16.mxu0 0
      %3897 = vmatpush1.bf16.msra.mxu0 0
      %3898 = vmatprep.subr.bf16.mxu0 0
      %3899 = vmatpush1.bf16.msra.mxu0 0
      %3900 = vmatprep.subr.bf16.mxu0 0
      %3901 = vmatpush1.bf16.msra.mxu0 0
      %3902 = vmatprep.subr.bf16.mxu0 0
      %3903 = vmatpush1.bf16.msra.mxu0 0
      %3904 = vmatprep.subr.bf16.mxu0 0
      %3905 = vmatpush1.bf16.msra.mxu0 0
      %3906 = vmatprep.subr.bf16.mxu0 0
      %3907 = vmatpush1.bf16.msra.mxu0 0
      %3908 = vmatprep.subr.bf16.mxu0 0
      %3909 = vmatpush1.bf16.msra.mxu0 0
      %3910 = vmatprep.subr.bf16.mxu0 0
      %3911 = vmatpush1.bf16.msra.mxu0 0
      %3912 = vmatprep.subr.bf16.mxu0 0
      %3913 = vmatpush1.bf16.msra.mxu0 0
      %3914 = vmatprep.subr.bf16.mxu0 0
      %3915 = vmatpush1.bf16.msra.mxu0 0
      %3916 = vmatprep.mubr.bf16.mxu0 0
      %3917 = vmatmul.mubr.bf16.gmra.mrb[0].mxu0 %v3743
      %v3918 = vpop.f32.mrb[0].mxu0
      %v3919 = vadd.f32 %v3854, %v3918
      %v3920 = vpop.f32.mrb[0].mxu0
      %v3921 = vpop.f32.mrb[0].mxu0
      %v3922 = vadd.f32 %v3857, %v3921
      %v3923 = vpop.f32.mrb[0].mxu0
      %3924 = vmatprep.mubr.bf16.mxu0 0
      %3925 = vmatmul.mubr.bf16.gmra.mrb[0].mxu0 %v3746
      %v3926 = vpop.f32.mrb[0].mxu0
      %v3927 = vadd.f32 %v3862, %v3926
      %v3928 = vpop.f32.mrb[0].mxu0
      %v3929 = vpop.f32.mrb[0].mxu0
      %v3930 = vadd.f32 %v3865, %v3929
      %v3931 = vpop.f32.mrb[0].mxu0
      %3932 = vmatprep.mubr.bf16.mxu0 0
      %3933 = vmatmul.mubr.bf16.gmra.mrb[0].mxu0 %v3749
      %v3934 = vpop.f32.mrb[0].mxu0
      %v3935 = vadd.f32 %v3870, %v3934
      %v3936 = vpop.f32.mrb[0].mxu0
      %v3937 = vpop.f32.mrb[0].mxu0
      %v3938 = vadd.f32 %v3873, %v3937
      %v3939 = vpop.f32.mrb[0].mxu0
      %3940 = vmatprep.mubr.bf16.mxu0 0
      %3941 = vmatmul.mubr.bf16.gmra.mrb[0].mxu0 %v3752
      %v3942 = vpop.f32.mrb[0].mxu0
      %v3943 = vadd.f32 %v3878, %v3942
      %v3944 = vpop.f32.mrb[0].mxu0
      %v3945 = vpop.f32.mrb[0].mxu0
      %v3946 = vadd.f32 %v3881, %v3945
      %v3947 = vpop.f32.mrb[0].mxu0
      %3948 = vdwg.mxu0
      %v3949 = vsel %vm1839, %v3919, 0.0
      %3950 = vadd.xlane.f32.xlu0 %v3949
      %v3951 = vpop.xlane.xlu0 %3950
      %v3952 = vsel %vm1839, %v3922, 0.0
      %3953 = vadd.xlane.f32.xlu0 %v3952
      %v3954 = vpop.xlane.xlu0 %3953
      %v3955 = vsel %vm1839, %v3927, 0.0
      %3956 = vadd.xlane.f32.xlu0 %v3955
      %v3957 = vpop.xlane.xlu0 %3956
      %v3958 = vsel %vm1839, %v3930, 0.0
      %3959 = vadd.xlane.f32.xlu0 %v3958
      %v3960 = vpop.xlane.xlu0 %3959
      %v3961 = vsel %vm1839, %v3935, 0.0
      %3962 = vadd.xlane.f32.xlu0 %v3961
      %v3963 = vpop.xlane.xlu0 %3962
      %v3964 = vsel %vm1839, %v3938, 0.0
      %3965 = vadd.xlane.f32.xlu0 %v3964
      %v3966 = vpop.xlane.xlu0 %3965
      %v3967 = vsel %vm1839, %v3943, 0.0
      %3968 = vadd.xlane.f32.xlu0 %v3967
      %v3969 = vpop.xlane.xlu0 %3968
      %v3970 = vsel %vm1839, %v3946, 0.0
      %3971 = vadd.xlane.f32.xlu0 %v3970
      %v3972 = vpop.xlane.xlu0 %3971
      %v3973 = vmul.f32 %v3951, 0.25
      %v3974 = vmul.f32 %v3954, 0.25
      %v3975 = vmul.f32 %v3957, 0.25
      %v3976 = vmul.f32 %v3960, 0.25
      %v3977 = vmul.f32 %v3963, 0.25
      %v3978 = vmul.f32 %v3966, 0.25
      %v3979 = vmul.f32 %v3969, 0.25
      %v3980 = vmul.f32 %v3972, 0.25
      %v3981 = vmul.f32 %v3919, %v3919
      %v3982 = vmul.f32 %v3922, %v3922
      %v3983 = vmul.f32 %v3927, %v3927
      %v3984 = vmul.f32 %v3930, %v3930
      %v3985 = vmul.f32 %v3935, %v3935
      %v3986 = vmul.f32 %v3938, %v3938
      %v3987 = vmul.f32 %v3943, %v3943
      %v3988 = vmul.f32 %v3946, %v3946
      %v3989 = vsel %vm1839, %v3981, 0.0
      %3990 = vadd.xlane.f32.xlu0 %v3989
      %v3991 = vpop.xlane.xlu0 %3990
      %v3992 = vsel %vm1839, %v3982, 0.0
      %3993 = vadd.xlane.f32.xlu0 %v3992
      %v3994 = vpop.xlane.xlu0 %3993
      %v3995 = vsel %vm1839, %v3983, 0.0
      %3996 = vadd.xlane.f32.xlu0 %v3995
      %v3997 = vpop.xlane.xlu0 %3996
      %v3998 = vsel %vm1839, %v3984, 0.0
      %3999 = vadd.xlane.f32.xlu0 %v3998
      %v4000 = vpop.xlane.xlu0 %3999
      %v4001 = vsel %vm1839, %v3985, 0.0
      %4002 = vadd.xlane.f32.xlu0 %v4001
      %v4003 = vpop.xlane.xlu0 %4002
      %v4004 = vsel %vm1839, %v3986, 0.0
      %4005 = vadd.xlane.f32.xlu0 %v4004
      %v4006 = vpop.xlane.xlu0 %4005
      %v4007 = vsel %vm1839, %v3987, 0.0
      %4008 = vadd.xlane.f32.xlu0 %v4007
      %v4009 = vpop.xlane.xlu0 %4008
      %v4010 = vsel %vm1839, %v3988, 0.0
      %4011 = vadd.xlane.f32.xlu0 %v4010
      %v4012 = vpop.xlane.xlu0 %4011
      %v4013 = vmul.f32 %v3991, 0.25
      %v4014 = vmul.f32 %v3994, 0.25
      %v4015 = vmul.f32 %v3997, 0.25
      %v4016 = vmul.f32 %v4000, 0.25
      %v4017 = vmul.f32 %v4003, 0.25
      %v4018 = vmul.f32 %v4006, 0.25
      %v4019 = vmul.f32 %v4009, 0.25
      %v4020 = vmul.f32 %v4012, 0.25
      %v4021 = vmul.f32 %v3973, %v3973
      %v4022 = vmul.f32 %v3974, %v3974
      %v4023 = vmul.f32 %v3975, %v3975
      %v4024 = vmul.f32 %v3976, %v3976
      %v4025 = vmul.f32 %v3977, %v3977
      %v4026 = vmul.f32 %v3978, %v3978
      %v4027 = vmul.f32 %v3979, %v3979
      %v4028 = vmul.f32 %v3980, %v3980
      %v4029 = vsub.f32 %v4013, %v4021
      %v4030 = vsub.f32 %v4014, %v4022
      %v4031 = vsub.f32 %v4015, %v4023
      %v4032 = vsub.f32 %v4016, %v4024
      %v4033 = vsub.f32 %v4017, %v4025
      %v4034 = vsub.f32 %v4018, %v4026
      %v4035 = vsub.f32 %v4019, %v4027
      %v4036 = vsub.f32 %v4020, %v4028
      %v4037 = vsub.f32 %v3919, %v3973
      %v4038 = vsub.f32 %v3922, %v3974
      %v4039 = vsub.f32 %v3927, %v3975
      %v4040 = vsub.f32 %v3930, %v3976
      %v4041 = vsub.f32 %v3935, %v3977
      %v4042 = vsub.f32 %v3938, %v3978
      %v4043 = vsub.f32 %v3943, %v3979
      %v4044 = vsub.f32 %v3946, %v3980
      %v4045 = vmax.f32 %v4029, 0.0
      %v4046 = vmax.f32 %v4030, 0.0
      %v4047 = vmax.f32 %v4031, 0.0
      %v4048 = vmax.f32 %v4032, 0.0
      %v4049 = vmax.f32 %v4033, 0.0
      %v4050 = vmax.f32 %v4034, 0.0
      %v4051 = vmax.f32 %v4035, 0.0
      %v4052 = vmax.f32 %v4036, 0.0
      %v4053 = vadd.f32 %v4045, 1e-05
      %v4054 = vadd.f32 %v4046, 1e-05
      %v4055 = vadd.f32 %v4047, 1e-05
      %v4056 = vadd.f32 %v4048, 1e-05
      %v4057 = vadd.f32 %v4049, 1e-05
      %v4058 = vadd.f32 %v4050, 1e-05
      %v4059 = vadd.f32 %v4051, 1e-05
      %v4060 = vadd.f32 %v4052, 1e-05
      %v4061 = vrsqrt.pop %v4053
      %v4062 = vrsqrt.pop %v4054
      %v4063 = vrsqrt.pop %v4055
      %v4064 = vrsqrt.pop %v4056
      %v4065 = vrsqrt.pop %v4057
      %v4066 = vrsqrt.pop %v4058
      %v4067 = vrsqrt.pop %v4059
      %v4068 = vrsqrt.pop %v4060
      %v4069 = vmul.f32 %v4037, %v4061
      %v4070 = vmul.f32 %v4038, %v4062
      %v4071 = vmul.f32 %v4039, %v4063
      %v4072 = vmul.f32 %v4040, %v4064
      %v4073 = vmul.f32 %v4041, %v4065
      %v4074 = vmul.f32 %v4042, %v4066
      %v4075 = vmul.f32 %v4043, %v4067
      %v4076 = vmul.f32 %v4044, %v4068
      %v4077 = vmul.f32 %v4069, 0.01
      %v4078 = vmul.f32 %v4070, 0.01
      %v4079 = vmul.f32 %v4071, 0.01
      %v4080 = vmul.f32 %v4072, 0.01
      %v4081 = vmul.f32 %v4073, 0.01
      %v4082 = vmul.f32 %v4074, 0.01
      %v4083 = vmul.f32 %v4075, 0.01
      %v4084 = vmul.f32 %v4076, 0.01
      %v4085 = vmax.f32 %v4069, %v4077
      %v4086 = vmax.f32 %v4070, %v4078
      %v4087 = vmax.f32 %v4071, %v4079
      %v4088 = vmax.f32 %v4072, %v4080
      %v4089 = vmax.f32 %v4073, %v4081
      %v4090 = vmax.f32 %v4074, %v4082
      %v4091 = vmax.f32 %v4075, %v4083
      %v4092 = vmax.f32 %v4076, %v4084
      %4093 = vst.msk [vmem:[%s639] sm:$0xff] %vm1839, %v4085
      %4094 = vst.msk [vmem:[%s639 + $0x8] sm:$0xff] %vm1839, %v4086
      %4095 = vst.msk [vmem:[%s639 + $0x10] sm:$0xff] %vm1839, %v4087
      %4096 = vst.msk [vmem:[%s639 + $0x18] sm:$0xff] %vm1839, %v4088
      %4097 = vst.msk [vmem:[%s639 + $0x20] sm:$0xff] %vm1839, %v4089
      %4098 = vst.msk [vmem:[%s639 + $0x28] sm:$0xff] %vm1839, %v4090
      %4099 = vst.msk [vmem:[%s639 + $0x30] sm:$0xff] %vm1839, %v4091
      %4100 = vst.msk [vmem:[%s639 + $0x38] sm:$0xff] %vm1839, %v4092
      %p4101 = scmp.lt.s32.totalorder %s31, 1
      %s4102 = scalar_select %p4101, %s31, 1
      %s4103 = smul.addr %s4102, 2
      %s4104 = smul.addr %s4103, 8
      %s4105 = scalar_lea.vmem %s16, %s4104
      %p4106 = scmp.lt.s32.totalorder %s31, 1
      %s4107 = scalar_select %p4106, %s31, 1
      %s4108 = smul.addr %s4107, 2
      %s4109 = smul.addr %s4108, 8
      %s4110 = scalar_lea.vmem %s17, %s4109
      %p4111 = scmp.lt.s32.totalorder %s31, 1
      %s4112 = scalar_select %p4111, %s31, 1
      %s4113 = smul.addr %s4112, 4
      %s4114 = smul.addr %s4113, 8
      %s4115 = scalar_lea.vmem %s18, %s4114
      %p4116 = scmp.lt.s32.totalorder %s31, 1
      %s4117 = scalar_select %p4116, %s31, 1
      %s4118 = smul.addr %s4117, 8
      %s4119 = smul.addr %s4118, 8
      %s4120 = scalar_lea.vmem %s19, %s4119
      // Predicated region
      $region85: #{unet_encoder_forward.1} parent=83 // pred_check
        %p4121 = pneg %p390
      $region86: #{unet_encoder_forward.1} parent=83 // pred_check_branch
        %4123 = sbr.rel (%p4121) target = $region88
      $region87: #{unet_encoder_forward.1} parent=83 // pred_region
        _
      $region88: #{unet_encoder_forward.1} parent=83 // pred_fallthru
        _
      // Predicated region
      $region89: #{unet_encoder_forward.1} parent=83 // pred_check
        %p4124 = pneg %p416
      $region90: #{unet_encoder_forward.1} parent=83 // pred_check_branch
        %4126 = sbr.rel (%p4124) target = $region92
      $region91: #{unet_encoder_forward.1} parent=83 // pred_region
        _
      $region92: #{unet_encoder_forward.1} parent=83 // pred_fallthru
        _
      // Predicated region
      $region93: #{unet_encoder_forward.1} parent=83 // pred_check
        %p4127 = pneg %p442
      $region94: #{unet_encoder_forward.1} parent=83 // pred_check_branch
        %4129 = sbr.rel (%p4127) target = $region96
      $region95: #{unet_encoder_forward.1} parent=83 // pred_region
        _
      $region96: #{unet_encoder_forward.1} parent=83 // pred_fallthru
        _
      // Predicated region
      $region97: #{unet_encoder_forward.1} parent=83 // pred_check
        %p4130 = pneg %p468
      $region98: #{unet_encoder_forward.1} parent=83 // pred_check_branch
        %4132 = sbr.rel (%p4130) target = $region100
      $region99: #{unet_encoder_forward.1} parent=83 // pred_region
        _
      $region100: #{unet_encoder_forward.1} parent=83 // pred_fallthru
        _
    $region84: #{unet_encoder_forward.1} parent=5 // pred_fallthru
      _
    %p4133 = scmp.le.s32.totalorder 2, %s26
    // Predicated region
    $region101: #{unet_encoder_forward.1} parent=5 // pred_check
      %p4134 = pneg %p4133
    $region102: #{unet_encoder_forward.1} parent=5 // pred_check_branch
      %4136 = sbr.rel (%p4134) target = $region104
    $region103: #{unet_encoder_forward.1} parent=5 // pred_region
      %s4137 = ssub.s32 %s26, 2
      // Predicated region
      $region105: #{unet_encoder_forward.1} parent=103 // pred_check
        %p4138 = pneg %p396
      $region106: #{unet_encoder_forward.1} parent=103 // pred_check_branch
        %4140 = sbr.rel (%p4138) target = $region108
      $region107: #{unet_encoder_forward.1} parent=103 // pred_region
        %p4141 = scmp.lt.s32.totalorder %s32, 1
        %s4142 = scalar_select %p4141, %s32, 1
        %s4143 = smul.addr %s4142, 2
        %s4144 = smul.addr %s4143, 8
        %s4145 = scalar_lea.vmem %s16, %s4144
      $region108: #{unet_encoder_forward.1} parent=103 // pred_fallthru
        _
      // Predicated region
      $region109: #{unet_encoder_forward.1} parent=103 // pred_check
        %p4146 = pneg %p422
      $region110: #{unet_encoder_forward.1} parent=103 // pred_check_branch
        %4148 = sbr.rel (%p4146) target = $region112
      $region111: #{unet_encoder_forward.1} parent=103 // pred_region
        %p4149 = scmp.lt.s32.totalorder %s32, 1
        %s4150 = scalar_select %p4149, %s32, 1
        %s4151 = smul.addr %s4150, 2
        %s4152 = smul.addr %s4151, 8
        %s4153 = scalar_lea.vmem %s17, %s4152
      $region112: #{unet_encoder_forward.1} parent=103 // pred_fallthru
        _
      // Predicated region
      $region113: #{unet_encoder_forward.1} parent=103 // pred_check
        %p4154 = pneg %p448
      $region114: #{unet_encoder_forward.1} parent=103 // pred_check_branch
        %4156 = sbr.rel (%p4154) target = $region116
      $region115: #{unet_encoder_forward.1} parent=103 // pred_region
        %p4157 = scmp.lt.s32.totalorder %s32, 1
        %s4158 = scalar_select %p4157, %s32, 1
        %s4159 = smul.addr %s4158, 4
        %s4160 = smul.addr %s4159, 8
        %s4161 = scalar_lea.vmem %s18, %s4160
      $region116: #{unet_encoder_forward.1} parent=103 // pred_fallthru
        _
      // Predicated region
      $region117: #{unet_encoder_forward.1} parent=103 // pred_check
        %p4162 = pneg %p474
      $region118: #{unet_encoder_forward.1} parent=103 // pred_check_branch
        %4164 = sbr.rel (%p4162) target = $region120
      $region119: #{unet_encoder_forward.1} parent=103 // pred_region
        %p4165 = scmp.lt.s32.totalorder %s32, 1
        %s4166 = scalar_select %p4165, %s32, 1
        %s4167 = smul.addr %s4166, 8
        %s4168 = smul.addr %s4167, 8
        %s4169 = scalar_lea.vmem %s19, %s4168
      $region120: #{unet_encoder_forward.1} parent=103 // pred_fallthru
        _
    $region104: #{unet_encoder_forward.1} parent=5 // pred_fallthru
      _
  $region6: #{unet_encoder_forward.1} parent=0 // loop_footer
    %s30 = sadd.s32 1, %s26
  $region7: #{unet_encoder_forward.1} parent=0 // loop_footer_branch
    %25 = sbr.rel target = $region3
  $region8: #{unet_encoder_forward.1} parent=0 // loop_exit
    _

</llo_original>
